<compile_context>
chip_gen: v7x
topology: tpu7x:2x2x1
jax: 0.10.0
libtpu: 0.0.40
codegen_flags: <defaults>
</compile_context>

<pallas_src>
import math

import jax
import jax.numpy as jnp
from jax import lax
from jax.experimental import pallas as pl
from jax.experimental.pallas import tpu as pltpu

# ---- synthetic stand-ins for nhi_config (small shapes) ----
N_MFCC = 16          # nhi_config.N_MFCC
D = 32               # nhi_config.TRANSFORMER_DIM
H = 4                # nhi_config.TRANSFORMER_HEADS
DH = D // H
N_ENC_LAYERS = 2     # nhi_config.TRANSFORMER_ENCODER_LAYERS
FFN = 64             # dim_feedforward (PyTorch default 2048, kept small here)
LN_EPS = 1e-5
_SCALE = 1.0 / math.sqrt(DH)


# ----------------------------- shared math helpers ---------------------------
def _layernorm(x, g, b):
    # pure jnp/lax: usable both inside the kernel and for host-side folding
    mu = jnp.mean(x, axis=-1, keepdims=True)
    var = jnp.mean((x - mu) ** 2, axis=-1, keepdims=True)
    return (x - mu) * lax.rsqrt(var + LN_EPS) * g + b


def _softmax_rows(s):
    # in-kernel only (uses pl.reciprocal)
    s = s - jnp.max(s, axis=-1, keepdims=True)
    p = jnp.exp(s)
    return p * pl.reciprocal(jnp.sum(p, axis=-1, keepdims=True), approx=True)


def _heads_attend(q, k, v, wo, bo):
    """q: (Lq, D) f32, ALREADY scaled; k, v: (Lk, D) f32; wo bf16 (D, D); bo f32 (1, D)."""
    acc = None
    for h in range(H):                       # static loop, static lane slices
        q_h = q[:, h * DH:(h + 1) * DH].astype(jnp.bfloat16)
        k_h = k[:, h * DH:(h + 1) * DH].astype(jnp.bfloat16)
        v_h = v[:, h * DH:(h + 1) * DH].astype(jnp.bfloat16)
        # scores = q_h @ k_h^T  (contract last dims; MXU trans_b form)
        s = lax.dot_general(q_h, k_h, (((1,), (1,)), ((), ())),
                            preferred_element_type=jnp.float32)      # (Lq, Lk)
        p = _softmax_rows(s).astype(jnp.bfloat16)
        a_h = jnp.dot(p, v_h, preferred_element_type=jnp.float32)    # (Lq, DH)
        # per-head output projection; summing replaces concat @ Wo
        part = jnp.dot(a_h.astype(jnp.bfloat16), wo[h * DH:(h + 1) * DH, :],
                       preferred_element_type=jnp.float32)           # (Lq, D)
        acc = part if acc is None else acc + part
    return acc + bo


def _ffn(x, w1, b1, w2, b2):
    h1 = jnp.maximum(
        jnp.dot(x.astype(jnp.bfloat16), w1, preferred_element_type=jnp.float32) + b1,
        0.0)
    return jnp.dot(h1.astype(jnp.bfloat16), w2,
                   preferred_element_type=jnp.float32) + b2


# --------------------------------- fused kernel -------------------------------
def _fused_forward_kernel(x_ref, *refs):
    """One grid step == one batch element; entire forward pass in-VMEM."""
    o_ref = refs[-1]
    it = iter(refs[:-1])
    nx = lambda: next(it)[...]               # load next full weight block

    # input linear + sigmoid
    w_in, b_in = nx(), nx()
    x = x_ref[0].astype(jnp.bfloat16)                                 # (S, N_MFCC)
    h = jax.nn.sigmoid(
        jnp.dot(x, w_in, preferred_element_type=jnp.float32) + b_in)  # (S, D) f32

    # encoder stack (post-norm, dropout = identity)
    for _ in range(N_ENC_LAYERS):
        wqkv, bqkv, wo, bo = nx(), nx(), nx(), nx()
        w1, b1, w2, b2 = nx(), nx(), nx(), nx()
        g1, be1, g2, be2 = nx(), nx(), nx(), nx()
        qkv = jnp.dot(h.astype(jnp.bfloat16), wqkv,
                      preferred_element_type=jnp.float32) + bqkv      # (S, 3D)
        attn = _heads_attend(qkv[:, :D], qkv[:, D:2 * D], qkv[:, 2 * D:], wo, bo)
        h = _layernorm(h + attn, g1, be1)
        h = _layernorm(h + _ffn(h, w1, b1, w2, b2), g2, be2)

    # decoder layer: self-attention sublayer pre-folded into t0 / q_ca (host side)
    t0, q_ca = nx(), nx()                                             # (1, D) each
    wkv, bkv, wo_c, bo_c = nx(), nx(), nx(), nx()
    w1, b1, w2, b2 = nx(), nx(), nx(), nx()
    g2, be2, g3, be3 = nx(), nx(), nx(), nx()
    kv = jnp.dot(h.astype(jnp.bfloat16), wkv,
                 preferred_element_type=jnp.float32) + bkv            # (S, 2D)
    ca = _heads_attend(q_ca, kv[:, :D], kv[:, D:], wo_c, bo_c)        # (1, D)
    t = _layernorm(t0 + ca, g2, be2)
    t = _layernorm(t + _ffn(t, w1, b1, w2, b2), g3, be3)
    o_ref[0] = t                                                      # (1, D)


# ------------------------------ parameter folding ------------------------------
def _prepare_flat_params(params):
    """Fold/fuse weights (host-side, pure jnp) into the flat kernel arg list."""
    bf = lambda a: a.astype(jnp.bfloat16)
    flat = [bf(params['lin_w']), params['lin_b']]

    for p in params['enc_layers']:
        wqkv = jnp.concatenate([p['wq'] * _SCALE, p['wk'], p['wv']], axis=1)
        bqkv = jnp.concatenate([p['bq'] * _SCALE, p['bk'], p['bv']], axis=1)
        flat += [bf(wqkv), bqkv, bf(p['wo']), p['bo'],
                 bf(p['w1']), p['b1'], bf(p['w2']), p['b2'],
                 p['ln1_g'], p['ln1_b'], p['ln2_g'], p['ln2_b']]

    d = params['dec']
    sa, ca = d['sa'], d['ca']
    # decoder self-attn on tgt=zeros, len 1: softmax over 1 key -> output = bv @ Wo + bo
    sa_out = jnp.dot(sa['bv'], sa['wo']) + sa['bo']                   # (1, D)
    t0 = _layernorm(sa_out, d['ln1_g'], d['ln1_b'])                   # LN1(0 + sa)
    q_ca = (jnp.dot(t0, ca['wq']) + ca['bq']) * _SCALE                # pre-scaled query
    wkv = jnp.concatenate([ca['wk'], ca['wv']], axis=1)
    bkv = jnp.concatenate([ca['bk'], ca['bv']], axis=1)
    flat += [t0, q_ca, bf(wkv), bkv, bf(ca['wo']), ca['bo'],
             bf(d['w1']), d['b1'], bf(d['w2']), d['b2'],
             d['ln2_g'], d['ln2_b'], d['ln3_g'], d['ln3_b']]
    return flat


# ------------------------------- pallas wrapper --------------------------------
def transformer_speaker_encoder(x, params):
    B, S, F = x.shape
    flat = _prepare_flat_params(params)

    in_specs = [pl.BlockSpec((1, S, F), lambda b: (b, 0, 0))]
    in_specs += [pl.BlockSpec(a.shape, lambda b, n=a.ndim: (0,) * n) for a in flat]

    out = pl.pallas_call(
        _fused_forward_kernel,
        out_shape=jax.ShapeDtypeStruct((B, 1, D), jnp.float32),
        grid=(B,),
        in_specs=in_specs,
        out_specs=pl.BlockSpec((1, 1, D), lambda b: (b, 0, 0)),
        compiler_params=pltpu.CompilerParams(
            dimension_semantics=("parallel",),
            vmem_limit_bytes=32 * 1024 * 1024),
    )(x, *flat)
    return out[:, 0, :]                                              # (B, D)


# ------------------------------ deterministic init -----------------------------
def init_params(key):
    def lin(k, fi, fo, scale=0.05):
        k1, k2 = jax.random.split(k)
        w = jax.random.normal(k1, (fi, fo), jnp.float32) * scale
        b = jax.random.normal(k2, (1, fo), jnp.float32) * scale
        return w, b

    def attn(k):
        kq, kk, kv, ko = jax.random.split(k, 4)
        wq, bq = lin(kq, D, D)
        wk, bk = lin(kk, D, D)
        wv, bv = lin(kv, D, D)
        wo, bo = lin(ko, D, D)
        return dict(wq=wq, wk=wk, wv=wv, bq=bq, bk=bk, bv=bv, wo=wo, bo=bo)

    def ln_pair():
        return jnp.ones((1, D), jnp.float32), jnp.zeros((1, D), jnp.float32)

    def enc_layer_params(k):
        ka, k1, k2 = jax.random.split(k, 3)
        p = attn(ka)
        p['w1'], p['b1'] = lin(k1, D, FFN)
        p['w2'], p['b2'] = lin(k2, FFN, D)
        p['ln1_g'], p['ln1_b'] = ln_pair()
        p['ln2_g'], p['ln2_b'] = ln_pair()
        return p

    def dec_layer_params(k):
        ksa, kca, k1, k2 = jax.random.split(k, 4)
        p = dict(sa=attn(ksa), ca=attn(kca))
        p['w1'], p['b1'] = lin(k1, D, FFN)
        p['w2'], p['b2'] = lin(k2, FFN, D)
        p['ln1_g'], p['ln1_b'] = ln_pair()
        p['ln2_g'], p['ln2_b'] = ln_pair()
        p['ln3_g'], p['ln3_b'] = ln_pair()
        return p

    k_lin, k_enc, k_dec = jax.random.split(key, 3)
    lin_w, lin_b = lin(k_lin, N_MFCC, D)
    enc_keys = jax.random.split(k_enc, N_ENC_LAYERS)
    return dict(
        lin_w=lin_w, lin_b=lin_b,
        enc_layers=[enc_layer_params(ek) for ek in enc_keys],
        dec=dec_layer_params(k_dec),
    )


# ----------------------------------- main --------------------------------------
if __name__ == "__main__":
    key = jax.random.PRNGKey(0)
    pkey, xkey = jax.random.split(key)
    params = init_params(pkey)

    B, S = 2, 8
    x = jax.random.normal(xkey, (B, S, N_MFCC), jnp.float32)

    out = jax.block_until_ready(transformer_speaker_encoder(x, params))
    assert out.shape == (B, D), out.shape
    assert bool(jnp.all(jnp.isfinite(out)))
    print("KERNEL_OK")
</pallas_src>

<mosaic_0001>
module attributes {stable_mosaic.version = 11 : i64} {
  func.func @_fused_forward_kernel(%arg0: i32, %arg1: memref<1x8x16xf32, #tpu.memory_space<vmem>>, %arg2: memref<16x32xbf16, #tpu.memory_space<vmem>>, %arg3: memref<1x32xf32, #tpu.memory_space<vmem>>, %arg4: memref<32x96xbf16, #tpu.memory_space<vmem>>, %arg5: memref<1x96xf32, #tpu.memory_space<vmem>>, %arg6: memref<32x32xbf16, #tpu.memory_space<vmem>>, %arg7: memref<1x32xf32, #tpu.memory_space<vmem>>, %arg8: memref<32x64xbf16, #tpu.memory_space<vmem>>, %arg9: memref<1x64xf32, #tpu.memory_space<vmem>>, %arg10: memref<64x32xbf16, #tpu.memory_space<vmem>>, %arg11: memref<1x32xf32, #tpu.memory_space<vmem>>, %arg12: memref<1x32xf32, #tpu.memory_space<vmem>>, %arg13: memref<1x32xf32, #tpu.memory_space<vmem>>, %arg14: memref<1x32xf32, #tpu.memory_space<vmem>>, %arg15: memref<1x32xf32, #tpu.memory_space<vmem>>, %arg16: memref<32x96xbf16, #tpu.memory_space<vmem>>, %arg17: memref<1x96xf32, #tpu.memory_space<vmem>>, %arg18: memref<32x32xbf16, #tpu.memory_space<vmem>>, %arg19: memref<1x32xf32, #tpu.memory_space<vmem>>, %arg20: memref<32x64xbf16, #tpu.memory_space<vmem>>, %arg21: memref<1x64xf32, #tpu.memory_space<vmem>>, %arg22: memref<64x32xbf16, #tpu.memory_space<vmem>>, %arg23: memref<1x32xf32, #tpu.memory_space<vmem>>, %arg24: memref<1x32xf32, #tpu.memory_space<vmem>>, %arg25: memref<1x32xf32, #tpu.memory_space<vmem>>, %arg26: memref<1x32xf32, #tpu.memory_space<vmem>>, %arg27: memref<1x32xf32, #tpu.memory_space<vmem>>, %arg28: memref<1x32xf32, #tpu.memory_space<vmem>>, %arg29: memref<1x32xf32, #tpu.memory_space<vmem>>, %arg30: memref<32x64xbf16, #tpu.memory_space<vmem>>, %arg31: memref<1x64xf32, #tpu.memory_space<vmem>>, %arg32: memref<32x32xbf16, #tpu.memory_space<vmem>>, %arg33: memref<1x32xf32, #tpu.memory_space<vmem>>, %arg34: memref<32x64xbf16, #tpu.memory_space<vmem>>, %arg35: memref<1x64xf32, #tpu.memory_space<vmem>>, %arg36: memref<64x32xbf16, #tpu.memory_space<vmem>>, %arg37: memref<1x32xf32, #tpu.memory_space<vmem>>, %arg38: memref<1x32xf32, #tpu.memory_space<vmem>>, %arg39: memref<1x32xf32, #tpu.memory_space<vmem>>, %arg40: memref<1x32xf32, #tpu.memory_space<vmem>>, %arg41: memref<1x32xf32, #tpu.memory_space<vmem>>, %arg42: memref<1x1x32xf32, #tpu.memory_space<vmem>>) attributes {dimension_semantics = [#tpu.dimension_semantics<parallel>], iteration_bounds = array<i64: 2>, scalar_prefetch = 0 : i64, scratch_operands = 0 : i64, tpu.core_type = #tpu.core_type<tc>, window_params = [{transform_indices = @transform_0, window_bounds = array<i64: 1, 8, 16>}, {pipeline_mode = #tpu.pipeline_mode<synchronous>, transform_indices = @transform_1, window_bounds = array<i64: 16, 32>}, {pipeline_mode = #tpu.pipeline_mode<synchronous>, transform_indices = @transform_2, window_bounds = array<i64: 1, 32>}, {pipeline_mode = #tpu.pipeline_mode<synchronous>, transform_indices = @transform_3, window_bounds = array<i64: 32, 96>}, {pipeline_mode = #tpu.pipeline_mode<synchronous>, transform_indices = @transform_4, window_bounds = array<i64: 1, 96>}, {pipeline_mode = #tpu.pipeline_mode<synchronous>, transform_indices = @transform_5, window_bounds = array<i64: 32, 32>}, {pipeline_mode = #tpu.pipeline_mode<synchronous>, transform_indices = @transform_6, window_bounds = array<i64: 1, 32>}, {pipeline_mode = #tpu.pipeline_mode<synchronous>, transform_indices = @transform_7, window_bounds = array<i64: 32, 64>}, {pipeline_mode = #tpu.pipeline_mode<synchronous>, transform_indices = @transform_8, window_bounds = array<i64: 1, 64>}, {pipeline_mode = #tpu.pipeline_mode<synchronous>, transform_indices = @transform_9, window_bounds = array<i64: 64, 32>}, {pipeline_mode = #tpu.pipeline_mode<synchronous>, transform_indices = @transform_10, window_bounds = array<i64: 1, 32>}, {pipeline_mode = #tpu.pipeline_mode<synchronous>, transform_indices = @transform_11, window_bounds = array<i64: 1, 32>}, {pipeline_mode = #tpu.pipeline_mode<synchronous>, transform_indices = @transform_12, window_bounds = array<i64: 1, 32>}, {pipeline_mode = #tpu.pipeline_mode<synchronous>, transform_indices = @transform_13, window_bounds = array<i64: 1, 32>}, {pipeline_mode = #tpu.pipeline_mode<synchronous>, transform_indices = @transform_14, window_bounds = array<i64: 1, 32>}, {pipeline_mode = #tpu.pipeline_mode<synchronous>, transform_indices = @transform_15, window_bounds = array<i64: 32, 96>}, {pipeline_mode = #tpu.pipeline_mode<synchronous>, transform_indices = @transform_16, window_bounds = array<i64: 1, 96>}, {pipeline_mode = #tpu.pipeline_mode<synchronous>, transform_indices = @transform_17, window_bounds = array<i64: 32, 32>}, {pipeline_mode = #tpu.pipeline_mode<synchronous>, transform_indices = @transform_18, window_bounds = array<i64: 1, 32>}, {pipeline_mode = #tpu.pipeline_mode<synchronous>, transform_indices = @transform_19, window_bounds = array<i64: 32, 64>}, {pipeline_mode = #tpu.pipeline_mode<synchronous>, transform_indices = @transform_20, window_bounds = array<i64: 1, 64>}, {pipeline_mode = #tpu.pipeline_mode<synchronous>, transform_indices = @transform_21, window_bounds = array<i64: 64, 32>}, {pipeline_mode = #tpu.pipeline_mode<synchronous>, transform_indices = @transform_22, window_bounds = array<i64: 1, 32>}, {pipeline_mode = #tpu.pipeline_mode<synchronous>, transform_indices = @transform_23, window_bounds = array<i64: 1, 32>}, {pipeline_mode = #tpu.pipeline_mode<synchronous>, transform_indices = @transform_24, window_bounds = array<i64: 1, 32>}, {pipeline_mode = #tpu.pipeline_mode<synchronous>, transform_indices = @transform_25, window_bounds = array<i64: 1, 32>}, {pipeline_mode = #tpu.pipeline_mode<synchronous>, transform_indices = @transform_26, window_bounds = array<i64: 1, 32>}, {pipeline_mode = #tpu.pipeline_mode<synchronous>, transform_indices = @transform_27, window_bounds = array<i64: 1, 32>}, {pipeline_mode = #tpu.pipeline_mode<synchronous>, transform_indices = @transform_28, window_bounds = array<i64: 1, 32>}, {pipeline_mode = #tpu.pipeline_mode<synchronous>, transform_indices = @transform_29, window_bounds = array<i64: 32, 64>}, {pipeline_mode = #tpu.pipeline_mode<synchronous>, transform_indices = @transform_30, window_bounds = array<i64: 1, 64>}, {pipeline_mode = #tpu.pipeline_mode<synchronous>, transform_indices = @transform_31, window_bounds = array<i64: 32, 32>}, {pipeline_mode = #tpu.pipeline_mode<synchronous>, transform_indices = @transform_32, window_bounds = array<i64: 1, 32>}, {pipeline_mode = #tpu.pipeline_mode<synchronous>, transform_indices = @transform_33, window_bounds = array<i64: 32, 64>}, {pipeline_mode = #tpu.pipeline_mode<synchronous>, transform_indices = @transform_34, window_bounds = array<i64: 1, 64>}, {pipeline_mode = #tpu.pipeline_mode<synchronous>, transform_indices = @transform_35, window_bounds = array<i64: 64, 32>}, {pipeline_mode = #tpu.pipeline_mode<synchronous>, transform_indices = @transform_36, window_bounds = array<i64: 1, 32>}, {pipeline_mode = #tpu.pipeline_mode<synchronous>, transform_indices = @transform_37, window_bounds = array<i64: 1, 32>}, {pipeline_mode = #tpu.pipeline_mode<synchronous>, transform_indices = @transform_38, window_bounds = array<i64: 1, 32>}, {pipeline_mode = #tpu.pipeline_mode<synchronous>, transform_indices = @transform_39, window_bounds = array<i64: 1, 32>}, {pipeline_mode = #tpu.pipeline_mode<synchronous>, transform_indices = @transform_40, window_bounds = array<i64: 1, 32>}, {transform_indices = @transform_41, window_bounds = array<i64: 1, 1, 32>}]} {
    %c0 = arith.constant 0 : index
    %c0_0 = arith.constant 0 : index
    %0 = vector.load %arg2[%c0, %c0_0] : memref<16x32xbf16, #tpu.memory_space<vmem>>, vector<16x32xbf16>
    %c0_1 = arith.constant 0 : index
    %c0_2 = arith.constant 0 : index
    %1 = vector.load %arg3[%c0_1, %c0_2] : memref<1x32xf32, #tpu.memory_space<vmem>>, vector<1x32xf32>
    %c0_3 = arith.constant 0 : index
    %c0_4 = arith.constant 0 : index
    %c0_5 = arith.constant 0 : index
    %2 = vector.load %arg1[%c0_3, %c0_4, %c0_5] : memref<1x8x16xf32, #tpu.memory_space<vmem>>, vector<1x8x16xf32>
    %3 = vector.shape_cast %2 : vector<1x8x16xf32> to vector<8x16xf32>
    %4 = arith.truncf %3 : vector<8x16xf32> to vector<8x16xbf16>
    %cst = arith.constant dense<0.000000e+00> : vector<8x32xf32>
    %5 = tpu.matmul %4, %0, %cst {dimension_numbers = #tpu.dot_dimension_numbers<[1], [0], [0], [1], [0, 0, 1, 1], [], []>} : vector<8x16xbf16>, vector<16x32xbf16>, vector<8x32xf32> -> vector<8x32xf32>
    %6 = vector.broadcast %1 : vector<1x32xf32> to vector<8x32xf32>
    %7 = arith.addf %5, %6 : vector<8x32xf32>
    %8 = arith.negf %7 : vector<8x32xf32>
    %9 = math.exp %8 : vector<8x32xf32>
    %cst_6 = arith.constant 1.000000e+00 : f32
    %10 = vector.broadcast %cst_6 : f32 to vector<8x32xf32>
    %11 = arith.addf %10, %9 : vector<8x32xf32>
    %12 = arith.divf %10, %11 : vector<8x32xf32>
    %c0_7 = arith.constant 0 : index
    %c0_8 = arith.constant 0 : index
    %13 = vector.load %arg4[%c0_7, %c0_8] : memref<32x96xbf16, #tpu.memory_space<vmem>>, vector<32x96xbf16>
    %c0_9 = arith.constant 0 : index
    %c0_10 = arith.constant 0 : index
    %14 = vector.load %arg5[%c0_9, %c0_10] : memref<1x96xf32, #tpu.memory_space<vmem>>, vector<1x96xf32>
    %c0_11 = arith.constant 0 : index
    %c0_12 = arith.constant 0 : index
    %15 = vector.load %arg6[%c0_11, %c0_12] : memref<32x32xbf16, #tpu.memory_space<vmem>>, vector<32x32xbf16>
    %c0_13 = arith.constant 0 : index
    %c0_14 = arith.constant 0 : index
    %16 = vector.load %arg7[%c0_13, %c0_14] : memref<1x32xf32, #tpu.memory_space<vmem>>, vector<1x32xf32>
    %c0_15 = arith.constant 0 : index
    %c0_16 = arith.constant 0 : index
    %17 = vector.load %arg8[%c0_15, %c0_16] : memref<32x64xbf16, #tpu.memory_space<vmem>>, vector<32x64xbf16>
    %c0_17 = arith.constant 0 : index
    %c0_18 = arith.constant 0 : index
    %18 = vector.load %arg9[%c0_17, %c0_18] : memref<1x64xf32, #tpu.memory_space<vmem>>, vector<1x64xf32>
    %c0_19 = arith.constant 0 : index
    %c0_20 = arith.constant 0 : index
    %19 = vector.load %arg10[%c0_19, %c0_20] : memref<64x32xbf16, #tpu.memory_space<vmem>>, vector<64x32xbf16>
    %c0_21 = arith.constant 0 : index
    %c0_22 = arith.constant 0 : index
    %20 = vector.load %arg11[%c0_21, %c0_22] : memref<1x32xf32, #tpu.memory_space<vmem>>, vector<1x32xf32>
    %c0_23 = arith.constant 0 : index
    %c0_24 = arith.constant 0 : index
    %21 = vector.load %arg12[%c0_23, %c0_24] : memref<1x32xf32, #tpu.memory_space<vmem>>, vector<1x32xf32>
    %c0_25 = arith.constant 0 : index
    %c0_26 = arith.constant 0 : index
    %22 = vector.load %arg13[%c0_25, %c0_26] : memref<1x32xf32, #tpu.memory_space<vmem>>, vector<1x32xf32>
    %c0_27 = arith.constant 0 : index
    %c0_28 = arith.constant 0 : index
    %23 = vector.load %arg14[%c0_27, %c0_28] : memref<1x32xf32, #tpu.memory_space<vmem>>, vector<1x32xf32>
    %c0_29 = arith.constant 0 : index
    %c0_30 = arith.constant 0 : index
    %24 = vector.load %arg15[%c0_29, %c0_30] : memref<1x32xf32, #tpu.memory_space<vmem>>, vector<1x32xf32>
    %25 = arith.truncf %12 : vector<8x32xf32> to vector<8x32xbf16>
    %cst_31 = arith.constant dense<0.000000e+00> : vector<8x96xf32>
    %26 = tpu.matmul %25, %13, %cst_31 {dimension_numbers = #tpu.dot_dimension_numbers<[1], [0], [0], [1], [0, 0, 1, 1], [], []>} : vector<8x32xbf16>, vector<32x96xbf16>, vector<8x96xf32> -> vector<8x96xf32>
    %27 = vector.broadcast %14 : vector<1x96xf32> to vector<8x96xf32>
    %28 = arith.addf %26, %27 : vector<8x96xf32>
    %29 = vector.extract_strided_slice %28 {offsets = [0, 0], sizes = [8, 32], strides = [1, 1]} : vector<8x96xf32> to vector<8x32xf32>
    %30 = vector.extract_strided_slice %28 {offsets = [0, 32], sizes = [8, 32], strides = [1, 1]} : vector<8x96xf32> to vector<8x32xf32>
    %31 = vector.extract_strided_slice %28 {offsets = [0, 64], sizes = [8, 32], strides = [1, 1]} : vector<8x96xf32> to vector<8x32xf32>
    %32 = vector.extract_strided_slice %29 {offsets = [0, 0], sizes = [8, 8], strides = [1, 1]} : vector<8x32xf32> to vector<8x8xf32>
    %33 = arith.truncf %32 : vector<8x8xf32> to vector<8x8xbf16>
    %34 = vector.extract_strided_slice %30 {offsets = [0, 0], sizes = [8, 8], strides = [1, 1]} : vector<8x32xf32> to vector<8x8xf32>
    %35 = arith.truncf %34 : vector<8x8xf32> to vector<8x8xbf16>
    %36 = vector.extract_strided_slice %31 {offsets = [0, 0], sizes = [8, 8], strides = [1, 1]} : vector<8x32xf32> to vector<8x8xf32>
    %37 = arith.truncf %36 : vector<8x8xf32> to vector<8x8xbf16>
    %cst_32 = arith.constant dense<0.000000e+00> : vector<8x8xf32>
    %38 = tpu.matmul %33, %35, %cst_32 {dimension_numbers = #tpu.dot_dimension_numbers<[1], [1], [0], [0], [0, 0, 1, 0], [], []>} : vector<8x8xbf16>, vector<8x8xbf16>, vector<8x8xf32> -> vector<8x8xf32>
    %cst_33 = arith.constant dense<0xFF800000> : vector<8xf32>
    %39 = vector.multi_reduction <maximumf>, %38, %cst_33 [1] : vector<8x8xf32> to vector<8xf32>
    %40 = vector.shape_cast %39 : vector<8xf32> to vector<8x1xf32>
    %41 = vector.broadcast %40 : vector<8x1xf32> to vector<8x8xf32>
    %42 = arith.subf %38, %41 : vector<8x8xf32>
    %43 = math.exp %42 : vector<8x8xf32>
    %cst_34 = arith.constant dense<0.000000e+00> : vector<8xf32>
    %44 = vector.multi_reduction <add>, %43, %cst_34 [1] : vector<8x8xf32> to vector<8xf32>
    %45 = vector.shape_cast %44 : vector<8xf32> to vector<8x1xf32>
    %46 = tpu.reciprocal %45 {approx = true} : vector<8x1xf32> -> vector<8x1xf32>
    %47 = vector.broadcast %46 : vector<8x1xf32> to vector<8x8xf32>
    %48 = arith.mulf %43, %47 : vector<8x8xf32>
    %49 = arith.truncf %48 : vector<8x8xf32> to vector<8x8xbf16>
    %cst_35 = arith.constant dense<0.000000e+00> : vector<8x8xf32>
    %50 = tpu.matmul %49, %37, %cst_35 {dimension_numbers = #tpu.dot_dimension_numbers<[1], [0], [0], [1], [0, 0, 1, 1], [], []>} : vector<8x8xbf16>, vector<8x8xbf16>, vector<8x8xf32> -> vector<8x8xf32>
    %51 = arith.truncf %50 : vector<8x8xf32> to vector<8x8xbf16>
    %52 = vector.extract_strided_slice %15 {offsets = [0, 0], sizes = [8, 32], strides = [1, 1]} : vector<32x32xbf16> to vector<8x32xbf16>
    %cst_36 = arith.constant dense<0.000000e+00> : vector<8x32xf32>
    %53 = tpu.matmul %51, %52, %cst_36 {dimension_numbers = #tpu.dot_dimension_numbers<[1], [0], [0], [1], [0, 0, 1, 1], [], []>} : vector<8x8xbf16>, vector<8x32xbf16>, vector<8x32xf32> -> vector<8x32xf32>
    %54 = vector.extract_strided_slice %29 {offsets = [0, 8], sizes = [8, 8], strides = [1, 1]} : vector<8x32xf32> to vector<8x8xf32>
    %55 = arith.truncf %54 : vector<8x8xf32> to vector<8x8xbf16>
    %56 = vector.extract_strided_slice %30 {offsets = [0, 8], sizes = [8, 8], strides = [1, 1]} : vector<8x32xf32> to vector<8x8xf32>
    %57 = arith.truncf %56 : vector<8x8xf32> to vector<8x8xbf16>
    %58 = vector.extract_strided_slice %31 {offsets = [0, 8], sizes = [8, 8], strides = [1, 1]} : vector<8x32xf32> to vector<8x8xf32>
    %59 = arith.truncf %58 : vector<8x8xf32> to vector<8x8xbf16>
    %cst_37 = arith.constant dense<0.000000e+00> : vector<8x8xf32>
    %60 = tpu.matmul %55, %57, %cst_37 {dimension_numbers = #tpu.dot_dimension_numbers<[1], [1], [0], [0], [0, 0, 1, 0], [], []>} : vector<8x8xbf16>, vector<8x8xbf16>, vector<8x8xf32> -> vector<8x8xf32>
    %cst_38 = arith.constant dense<0xFF800000> : vector<8xf32>
    %61 = vector.multi_reduction <maximumf>, %60, %cst_38 [1] : vector<8x8xf32> to vector<8xf32>
    %62 = vector.shape_cast %61 : vector<8xf32> to vector<8x1xf32>
    %63 = vector.broadcast %62 : vector<8x1xf32> to vector<8x8xf32>
    %64 = arith.subf %60, %63 : vector<8x8xf32>
    %65 = math.exp %64 : vector<8x8xf32>
    %cst_39 = arith.constant dense<0.000000e+00> : vector<8xf32>
    %66 = vector.multi_reduction <add>, %65, %cst_39 [1] : vector<8x8xf32> to vector<8xf32>
    %67 = vector.shape_cast %66 : vector<8xf32> to vector<8x1xf32>
    %68 = tpu.reciprocal %67 {approx = true} : vector<8x1xf32> -> vector<8x1xf32>
    %69 = vector.broadcast %68 : vector<8x1xf32> to vector<8x8xf32>
    %70 = arith.mulf %65, %69 : vector<8x8xf32>
    %71 = arith.truncf %70 : vector<8x8xf32> to vector<8x8xbf16>
    %cst_40 = arith.constant dense<0.000000e+00> : vector<8x8xf32>
    %72 = tpu.matmul %71, %59, %cst_40 {dimension_numbers = #tpu.dot_dimension_numbers<[1], [0], [0], [1], [0, 0, 1, 1], [], []>} : vector<8x8xbf16>, vector<8x8xbf16>, vector<8x8xf32> -> vector<8x8xf32>
    %73 = arith.truncf %72 : vector<8x8xf32> to vector<8x8xbf16>
    %74 = vector.extract_strided_slice %15 {offsets = [8, 0], sizes = [8, 32], strides = [1, 1]} : vector<32x32xbf16> to vector<8x32xbf16>
    %cst_41 = arith.constant dense<0.000000e+00> : vector<8x32xf32>
    %75 = tpu.matmul %73, %74, %cst_41 {dimension_numbers = #tpu.dot_dimension_numbers<[1], [0], [0], [1], [0, 0, 1, 1], [], []>} : vector<8x8xbf16>, vector<8x32xbf16>, vector<8x32xf32> -> vector<8x32xf32>
    %76 = arith.addf %53, %75 : vector<8x32xf32>
    %77 = vector.extract_strided_slice %29 {offsets = [0, 16], sizes = [8, 8], strides = [1, 1]} : vector<8x32xf32> to vector<8x8xf32>
    %78 = arith.truncf %77 : vector<8x8xf32> to vector<8x8xbf16>
    %79 = vector.extract_strided_slice %30 {offsets = [0, 16], sizes = [8, 8], strides = [1, 1]} : vector<8x32xf32> to vector<8x8xf32>
    %80 = arith.truncf %79 : vector<8x8xf32> to vector<8x8xbf16>
    %81 = vector.extract_strided_slice %31 {offsets = [0, 16], sizes = [8, 8], strides = [1, 1]} : vector<8x32xf32> to vector<8x8xf32>
    %82 = arith.truncf %81 : vector<8x8xf32> to vector<8x8xbf16>
    %cst_42 = arith.constant dense<0.000000e+00> : vector<8x8xf32>
    %83 = tpu.matmul %78, %80, %cst_42 {dimension_numbers = #tpu.dot_dimension_numbers<[1], [1], [0], [0], [0, 0, 1, 0], [], []>} : vector<8x8xbf16>, vector<8x8xbf16>, vector<8x8xf32> -> vector<8x8xf32>
    %cst_43 = arith.constant dense<0xFF800000> : vector<8xf32>
    %84 = vector.multi_reduction <maximumf>, %83, %cst_43 [1] : vector<8x8xf32> to vector<8xf32>
    %85 = vector.shape_cast %84 : vector<8xf32> to vector<8x1xf32>
    %86 = vector.broadcast %85 : vector<8x1xf32> to vector<8x8xf32>
    %87 = arith.subf %83, %86 : vector<8x8xf32>
    %88 = math.exp %87 : vector<8x8xf32>
    %cst_44 = arith.constant dense<0.000000e+00> : vector<8xf32>
    %89 = vector.multi_reduction <add>, %88, %cst_44 [1] : vector<8x8xf32> to vector<8xf32>
    %90 = vector.shape_cast %89 : vector<8xf32> to vector<8x1xf32>
    %91 = tpu.reciprocal %90 {approx = true} : vector<8x1xf32> -> vector<8x1xf32>
    %92 = vector.broadcast %91 : vector<8x1xf32> to vector<8x8xf32>
    %93 = arith.mulf %88, %92 : vector<8x8xf32>
    %94 = arith.truncf %93 : vector<8x8xf32> to vector<8x8xbf16>
    %cst_45 = arith.constant dense<0.000000e+00> : vector<8x8xf32>
    %95 = tpu.matmul %94, %82, %cst_45 {dimension_numbers = #tpu.dot_dimension_numbers<[1], [0], [0], [1], [0, 0, 1, 1], [], []>} : vector<8x8xbf16>, vector<8x8xbf16>, vector<8x8xf32> -> vector<8x8xf32>
    %96 = arith.truncf %95 : vector<8x8xf32> to vector<8x8xbf16>
    %97 = vector.extract_strided_slice %15 {offsets = [16, 0], sizes = [8, 32], strides = [1, 1]} : vector<32x32xbf16> to vector<8x32xbf16>
    %cst_46 = arith.constant dense<0.000000e+00> : vector<8x32xf32>
    %98 = tpu.matmul %96, %97, %cst_46 {dimension_numbers = #tpu.dot_dimension_numbers<[1], [0], [0], [1], [0, 0, 1, 1], [], []>} : vector<8x8xbf16>, vector<8x32xbf16>, vector<8x32xf32> -> vector<8x32xf32>
    %99 = arith.addf %76, %98 : vector<8x32xf32>
    %100 = vector.extract_strided_slice %29 {offsets = [0, 24], sizes = [8, 8], strides = [1, 1]} : vector<8x32xf32> to vector<8x8xf32>
    %101 = arith.truncf %100 : vector<8x8xf32> to vector<8x8xbf16>
    %102 = vector.extract_strided_slice %30 {offsets = [0, 24], sizes = [8, 8], strides = [1, 1]} : vector<8x32xf32> to vector<8x8xf32>
    %103 = arith.truncf %102 : vector<8x8xf32> to vector<8x8xbf16>
    %104 = vector.extract_strided_slice %31 {offsets = [0, 24], sizes = [8, 8], strides = [1, 1]} : vector<8x32xf32> to vector<8x8xf32>
    %105 = arith.truncf %104 : vector<8x8xf32> to vector<8x8xbf16>
    %cst_47 = arith.constant dense<0.000000e+00> : vector<8x8xf32>
    %106 = tpu.matmul %101, %103, %cst_47 {dimension_numbers = #tpu.dot_dimension_numbers<[1], [1], [0], [0], [0, 0, 1, 0], [], []>} : vector<8x8xbf16>, vector<8x8xbf16>, vector<8x8xf32> -> vector<8x8xf32>
    %cst_48 = arith.constant dense<0xFF800000> : vector<8xf32>
    %107 = vector.multi_reduction <maximumf>, %106, %cst_48 [1] : vector<8x8xf32> to vector<8xf32>
    %108 = vector.shape_cast %107 : vector<8xf32> to vector<8x1xf32>
    %109 = vector.broadcast %108 : vector<8x1xf32> to vector<8x8xf32>
    %110 = arith.subf %106, %109 : vector<8x8xf32>
    %111 = math.exp %110 : vector<8x8xf32>
    %cst_49 = arith.constant dense<0.000000e+00> : vector<8xf32>
    %112 = vector.multi_reduction <add>, %111, %cst_49 [1] : vector<8x8xf32> to vector<8xf32>
    %113 = vector.shape_cast %112 : vector<8xf32> to vector<8x1xf32>
    %114 = tpu.reciprocal %113 {approx = true} : vector<8x1xf32> -> vector<8x1xf32>
    %115 = vector.broadcast %114 : vector<8x1xf32> to vector<8x8xf32>
    %116 = arith.mulf %111, %115 : vector<8x8xf32>
    %117 = arith.truncf %116 : vector<8x8xf32> to vector<8x8xbf16>
    %cst_50 = arith.constant dense<0.000000e+00> : vector<8x8xf32>
    %118 = tpu.matmul %117, %105, %cst_50 {dimension_numbers = #tpu.dot_dimension_numbers<[1], [0], [0], [1], [0, 0, 1, 1], [], []>} : vector<8x8xbf16>, vector<8x8xbf16>, vector<8x8xf32> -> vector<8x8xf32>
    %119 = arith.truncf %118 : vector<8x8xf32> to vector<8x8xbf16>
    %120 = vector.extract_strided_slice %15 {offsets = [24, 0], sizes = [8, 32], strides = [1, 1]} : vector<32x32xbf16> to vector<8x32xbf16>
    %cst_51 = arith.constant dense<0.000000e+00> : vector<8x32xf32>
    %121 = tpu.matmul %119, %120, %cst_51 {dimension_numbers = #tpu.dot_dimension_numbers<[1], [0], [0], [1], [0, 0, 1, 1], [], []>} : vector<8x8xbf16>, vector<8x32xbf16>, vector<8x32xf32> -> vector<8x32xf32>
    %122 = arith.addf %99, %121 : vector<8x32xf32>
    %123 = vector.broadcast %16 : vector<1x32xf32> to vector<8x32xf32>
    %124 = arith.addf %122, %123 : vector<8x32xf32>
    %125 = arith.addf %12, %124 : vector<8x32xf32>
    %cst_52 = arith.constant dense<0.000000e+00> : vector<8xf32>
    %126 = vector.multi_reduction <add>, %125, %cst_52 [1] : vector<8x32xf32> to vector<8xf32>
    %127 = vector.shape_cast %126 : vector<8xf32> to vector<8x1xf32>
    %cst_53 = arith.constant 3.200000e+01 : f32
    %128 = vector.broadcast %cst_53 : f32 to vector<8x1xf32>
    %129 = arith.divf %127, %128 : vector<8x1xf32>
    %130 = vector.broadcast %129 : vector<8x1xf32> to vector<8x32xf32>
    %131 = arith.subf %125, %130 : vector<8x32xf32>
    %132 = arith.mulf %131, %131 : vector<8x32xf32>
    %cst_54 = arith.constant dense<0.000000e+00> : vector<8xf32>
    %133 = vector.multi_reduction <add>, %132, %cst_54 [1] : vector<8x32xf32> to vector<8xf32>
    %134 = vector.shape_cast %133 : vector<8xf32> to vector<8x1xf32>
    %cst_55 = arith.constant 3.200000e+01 : f32
    %135 = vector.broadcast %cst_55 : f32 to vector<8x1xf32>
    %136 = arith.divf %134, %135 : vector<8x1xf32>
    %137 = vector.broadcast %129 : vector<8x1xf32> to vector<8x32xf32>
    %138 = arith.subf %125, %137 : vector<8x32xf32>
    %cst_56 = arith.constant 9.99999974E-6 : f32
    %139 = vector.broadcast %cst_56 : f32 to vector<8x1xf32>
    %140 = arith.addf %136, %139 : vector<8x1xf32>
    %141 = math.rsqrt %140 : vector<8x1xf32>
    %142 = vector.broadcast %141 : vector<8x1xf32> to vector<8x32xf32>
    %143 = arith.mulf %138, %142 : vector<8x32xf32>
    %144 = vector.broadcast %21 : vector<1x32xf32> to vector<8x32xf32>
    %145 = arith.mulf %143, %144 : vector<8x32xf32>
    %146 = vector.broadcast %22 : vector<1x32xf32> to vector<8x32xf32>
    %147 = arith.addf %145, %146 : vector<8x32xf32>
    %148 = arith.truncf %147 : vector<8x32xf32> to vector<8x32xbf16>
    %cst_57 = arith.constant dense<0.000000e+00> : vector<8x64xf32>
    %149 = tpu.matmul %148, %17, %cst_57 {dimension_numbers = #tpu.dot_dimension_numbers<[1], [0], [0], [1], [0, 0, 1, 1], [], []>} : vector<8x32xbf16>, vector<32x64xbf16>, vector<8x64xf32> -> vector<8x64xf32>
    %150 = vector.broadcast %18 : vector<1x64xf32> to vector<8x64xf32>
    %151 = arith.addf %149, %150 : vector<8x64xf32>
    %cst_58 = arith.constant 0.000000e+00 : f32
    %152 = vector.broadcast %cst_58 : f32 to vector<8x64xf32>
    %153 = arith.maximumf %151, %152 : vector<8x64xf32>
    %154 = arith.truncf %153 : vector<8x64xf32> to vector<8x64xbf16>
    %cst_59 = arith.constant dense<0.000000e+00> : vector<8x32xf32>
    %155 = tpu.matmul %154, %19, %cst_59 {dimension_numbers = #tpu.dot_dimension_numbers<[1], [0], [0], [1], [0, 0, 1, 1], [], []>} : vector<8x64xbf16>, vector<64x32xbf16>, vector<8x32xf32> -> vector<8x32xf32>
    %156 = vector.broadcast %20 : vector<1x32xf32> to vector<8x32xf32>
    %157 = arith.addf %155, %156 : vector<8x32xf32>
    %158 = arith.addf %147, %157 : vector<8x32xf32>
    %cst_60 = arith.constant dense<0.000000e+00> : vector<8xf32>
    %159 = vector.multi_reduction <add>, %158, %cst_60 [1] : vector<8x32xf32> to vector<8xf32>
    %160 = vector.shape_cast %159 : vector<8xf32> to vector<8x1xf32>
    %cst_61 = arith.constant 3.200000e+01 : f32
    %161 = vector.broadcast %cst_61 : f32 to vector<8x1xf32>
    %162 = arith.divf %160, %161 : vector<8x1xf32>
    %163 = vector.broadcast %162 : vector<8x1xf32> to vector<8x32xf32>
    %164 = arith.subf %158, %163 : vector<8x32xf32>
    %165 = arith.mulf %164, %164 : vector<8x32xf32>
    %cst_62 = arith.constant dense<0.000000e+00> : vector<8xf32>
    %166 = vector.multi_reduction <add>, %165, %cst_62 [1] : vector<8x32xf32> to vector<8xf32>
    %167 = vector.shape_cast %166 : vector<8xf32> to vector<8x1xf32>
    %cst_63 = arith.constant 3.200000e+01 : f32
    %168 = vector.broadcast %cst_63 : f32 to vector<8x1xf32>
    %169 = arith.divf %167, %168 : vector<8x1xf32>
    %170 = vector.broadcast %162 : vector<8x1xf32> to vector<8x32xf32>
    %171 = arith.subf %158, %170 : vector<8x32xf32>
    %cst_64 = arith.constant 9.99999974E-6 : f32
    %172 = vector.broadcast %cst_64 : f32 to vector<8x1xf32>
    %173 = arith.addf %169, %172 : vector<8x1xf32>
    %174 = math.rsqrt %173 : vector<8x1xf32>
    %175 = vector.broadcast %174 : vector<8x1xf32> to vector<8x32xf32>
    %176 = arith.mulf %171, %175 : vector<8x32xf32>
    %177 = vector.broadcast %23 : vector<1x32xf32> to vector<8x32xf32>
    %178 = arith.mulf %176, %177 : vector<8x32xf32>
    %179 = vector.broadcast %24 : vector<1x32xf32> to vector<8x32xf32>
    %180 = arith.addf %178, %179 : vector<8x32xf32>
    %c0_65 = arith.constant 0 : index
    %c0_66 = arith.constant 0 : index
    %181 = vector.load %arg16[%c0_65, %c0_66] : memref<32x96xbf16, #tpu.memory_space<vmem>>, vector<32x96xbf16>
    %c0_67 = arith.constant 0 : index
    %c0_68 = arith.constant 0 : index
    %182 = vector.load %arg17[%c0_67, %c0_68] : memref<1x96xf32, #tpu.memory_space<vmem>>, vector<1x96xf32>
    %c0_69 = arith.constant 0 : index
    %c0_70 = arith.constant 0 : index
    %183 = vector.load %arg18[%c0_69, %c0_70] : memref<32x32xbf16, #tpu.memory_space<vmem>>, vector<32x32xbf16>
    %c0_71 = arith.constant 0 : index
    %c0_72 = arith.constant 0 : index
    %184 = vector.load %arg19[%c0_71, %c0_72] : memref<1x32xf32, #tpu.memory_space<vmem>>, vector<1x32xf32>
    %c0_73 = arith.constant 0 : index
    %c0_74 = arith.constant 0 : index
    %185 = vector.load %arg20[%c0_73, %c0_74] : memref<32x64xbf16, #tpu.memory_space<vmem>>, vector<32x64xbf16>
    %c0_75 = arith.constant 0 : index
    %c0_76 = arith.constant 0 : index
    %186 = vector.load %arg21[%c0_75, %c0_76] : memref<1x64xf32, #tpu.memory_space<vmem>>, vector<1x64xf32>
    %c0_77 = arith.constant 0 : index
    %c0_78 = arith.constant 0 : index
    %187 = vector.load %arg22[%c0_77, %c0_78] : memref<64x32xbf16, #tpu.memory_space<vmem>>, vector<64x32xbf16>
    %c0_79 = arith.constant 0 : index
    %c0_80 = arith.constant 0 : index
    %188 = vector.load %arg23[%c0_79, %c0_80] : memref<1x32xf32, #tpu.memory_space<vmem>>, vector<1x32xf32>
    %c0_81 = arith.constant 0 : index
    %c0_82 = arith.constant 0 : index
    %189 = vector.load %arg24[%c0_81, %c0_82] : memref<1x32xf32, #tpu.memory_space<vmem>>, vector<1x32xf32>
    %c0_83 = arith.constant 0 : index
    %c0_84 = arith.constant 0 : index
    %190 = vector.load %arg25[%c0_83, %c0_84] : memref<1x32xf32, #tpu.memory_space<vmem>>, vector<1x32xf32>
    %c0_85 = arith.constant 0 : index
    %c0_86 = arith.constant 0 : index
    %191 = vector.load %arg26[%c0_85, %c0_86] : memref<1x32xf32, #tpu.memory_space<vmem>>, vector<1x32xf32>
    %c0_87 = arith.constant 0 : index
    %c0_88 = arith.constant 0 : index
    %192 = vector.load %arg27[%c0_87, %c0_88] : memref<1x32xf32, #tpu.memory_space<vmem>>, vector<1x32xf32>
    %193 = arith.truncf %180 : vector<8x32xf32> to vector<8x32xbf16>
    %cst_89 = arith.constant dense<0.000000e+00> : vector<8x96xf32>
    %194 = tpu.matmul %193, %181, %cst_89 {dimension_numbers = #tpu.dot_dimension_numbers<[1], [0], [0], [1], [0, 0, 1, 1], [], []>} : vector<8x32xbf16>, vector<32x96xbf16>, vector<8x96xf32> -> vector<8x96xf32>
    %195 = vector.broadcast %182 : vector<1x96xf32> to vector<8x96xf32>
    %196 = arith.addf %194, %195 : vector<8x96xf32>
    %197 = vector.extract_strided_slice %196 {offsets = [0, 0], sizes = [8, 32], strides = [1, 1]} : vector<8x96xf32> to vector<8x32xf32>
    %198 = vector.extract_strided_slice %196 {offsets = [0, 32], sizes = [8, 32], strides = [1, 1]} : vector<8x96xf32> to vector<8x32xf32>
    %199 = vector.extract_strided_slice %196 {offsets = [0, 64], sizes = [8, 32], strides = [1, 1]} : vector<8x96xf32> to vector<8x32xf32>
    %200 = vector.extract_strided_slice %197 {offsets = [0, 0], sizes = [8, 8], strides = [1, 1]} : vector<8x32xf32> to vector<8x8xf32>
    %201 = arith.truncf %200 : vector<8x8xf32> to vector<8x8xbf16>
    %202 = vector.extract_strided_slice %198 {offsets = [0, 0], sizes = [8, 8], strides = [1, 1]} : vector<8x32xf32> to vector<8x8xf32>
    %203 = arith.truncf %202 : vector<8x8xf32> to vector<8x8xbf16>
    %204 = vector.extract_strided_slice %199 {offsets = [0, 0], sizes = [8, 8], strides = [1, 1]} : vector<8x32xf32> to vector<8x8xf32>
    %205 = arith.truncf %204 : vector<8x8xf32> to vector<8x8xbf16>
    %cst_90 = arith.constant dense<0.000000e+00> : vector<8x8xf32>
    %206 = tpu.matmul %201, %203, %cst_90 {dimension_numbers = #tpu.dot_dimension_numbers<[1], [1], [0], [0], [0, 0, 1, 0], [], []>} : vector<8x8xbf16>, vector<8x8xbf16>, vector<8x8xf32> -> vector<8x8xf32>
    %cst_91 = arith.constant dense<0xFF800000> : vector<8xf32>
    %207 = vector.multi_reduction <maximumf>, %206, %cst_91 [1] : vector<8x8xf32> to vector<8xf32>
    %208 = vector.shape_cast %207 : vector<8xf32> to vector<8x1xf32>
    %209 = vector.broadcast %208 : vector<8x1xf32> to vector<8x8xf32>
    %210 = arith.subf %206, %209 : vector<8x8xf32>
    %211 = math.exp %210 : vector<8x8xf32>
    %cst_92 = arith.constant dense<0.000000e+00> : vector<8xf32>
    %212 = vector.multi_reduction <add>, %211, %cst_92 [1] : vector<8x8xf32> to vector<8xf32>
    %213 = vector.shape_cast %212 : vector<8xf32> to vector<8x1xf32>
    %214 = tpu.reciprocal %213 {approx = true} : vector<8x1xf32> -> vector<8x1xf32>
    %215 = vector.broadcast %214 : vector<8x1xf32> to vector<8x8xf32>
    %216 = arith.mulf %211, %215 : vector<8x8xf32>
    %217 = arith.truncf %216 : vector<8x8xf32> to vector<8x8xbf16>
    %cst_93 = arith.constant dense<0.000000e+00> : vector<8x8xf32>
    %218 = tpu.matmul %217, %205, %cst_93 {dimension_numbers = #tpu.dot_dimension_numbers<[1], [0], [0], [1], [0, 0, 1, 1], [], []>} : vector<8x8xbf16>, vector<8x8xbf16>, vector<8x8xf32> -> vector<8x8xf32>
    %219 = arith.truncf %218 : vector<8x8xf32> to vector<8x8xbf16>
    %220 = vector.extract_strided_slice %183 {offsets = [0, 0], sizes = [8, 32], strides = [1, 1]} : vector<32x32xbf16> to vector<8x32xbf16>
    %cst_94 = arith.constant dense<0.000000e+00> : vector<8x32xf32>
    %221 = tpu.matmul %219, %220, %cst_94 {dimension_numbers = #tpu.dot_dimension_numbers<[1], [0], [0], [1], [0, 0, 1, 1], [], []>} : vector<8x8xbf16>, vector<8x32xbf16>, vector<8x32xf32> -> vector<8x32xf32>
    %222 = vector.extract_strided_slice %197 {offsets = [0, 8], sizes = [8, 8], strides = [1, 1]} : vector<8x32xf32> to vector<8x8xf32>
    %223 = arith.truncf %222 : vector<8x8xf32> to vector<8x8xbf16>
    %224 = vector.extract_strided_slice %198 {offsets = [0, 8], sizes = [8, 8], strides = [1, 1]} : vector<8x32xf32> to vector<8x8xf32>
    %225 = arith.truncf %224 : vector<8x8xf32> to vector<8x8xbf16>
    %226 = vector.extract_strided_slice %199 {offsets = [0, 8], sizes = [8, 8], strides = [1, 1]} : vector<8x32xf32> to vector<8x8xf32>
    %227 = arith.truncf %226 : vector<8x8xf32> to vector<8x8xbf16>
    %cst_95 = arith.constant dense<0.000000e+00> : vector<8x8xf32>
    %228 = tpu.matmul %223, %225, %cst_95 {dimension_numbers = #tpu.dot_dimension_numbers<[1], [1], [0], [0], [0, 0, 1, 0], [], []>} : vector<8x8xbf16>, vector<8x8xbf16>, vector<8x8xf32> -> vector<8x8xf32>
    %cst_96 = arith.constant dense<0xFF800000> : vector<8xf32>
    %229 = vector.multi_reduction <maximumf>, %228, %cst_96 [1] : vector<8x8xf32> to vector<8xf32>
    %230 = vector.shape_cast %229 : vector<8xf32> to vector<8x1xf32>
    %231 = vector.broadcast %230 : vector<8x1xf32> to vector<8x8xf32>
    %232 = arith.subf %228, %231 : vector<8x8xf32>
    %233 = math.exp %232 : vector<8x8xf32>
    %cst_97 = arith.constant dense<0.000000e+00> : vector<8xf32>
    %234 = vector.multi_reduction <add>, %233, %cst_97 [1] : vector<8x8xf32> to vector<8xf32>
    %235 = vector.shape_cast %234 : vector<8xf32> to vector<8x1xf32>
    %236 = tpu.reciprocal %235 {approx = true} : vector<8x1xf32> -> vector<8x1xf32>
    %237 = vector.broadcast %236 : vector<8x1xf32> to vector<8x8xf32>
    %238 = arith.mulf %233, %237 : vector<8x8xf32>
    %239 = arith.truncf %238 : vector<8x8xf32> to vector<8x8xbf16>
    %cst_98 = arith.constant dense<0.000000e+00> : vector<8x8xf32>
    %240 = tpu.matmul %239, %227, %cst_98 {dimension_numbers = #tpu.dot_dimension_numbers<[1], [0], [0], [1], [0, 0, 1, 1], [], []>} : vector<8x8xbf16>, vector<8x8xbf16>, vector<8x8xf32> -> vector<8x8xf32>
    %241 = arith.truncf %240 : vector<8x8xf32> to vector<8x8xbf16>
    %242 = vector.extract_strided_slice %183 {offsets = [8, 0], sizes = [8, 32], strides = [1, 1]} : vector<32x32xbf16> to vector<8x32xbf16>
    %cst_99 = arith.constant dense<0.000000e+00> : vector<8x32xf32>
    %243 = tpu.matmul %241, %242, %cst_99 {dimension_numbers = #tpu.dot_dimension_numbers<[1], [0], [0], [1], [0, 0, 1, 1], [], []>} : vector<8x8xbf16>, vector<8x32xbf16>, vector<8x32xf32> -> vector<8x32xf32>
    %244 = arith.addf %221, %243 : vector<8x32xf32>
    %245 = vector.extract_strided_slice %197 {offsets = [0, 16], sizes = [8, 8], strides = [1, 1]} : vector<8x32xf32> to vector<8x8xf32>
    %246 = arith.truncf %245 : vector<8x8xf32> to vector<8x8xbf16>
    %247 = vector.extract_strided_slice %198 {offsets = [0, 16], sizes = [8, 8], strides = [1, 1]} : vector<8x32xf32> to vector<8x8xf32>
    %248 = arith.truncf %247 : vector<8x8xf32> to vector<8x8xbf16>
    %249 = vector.extract_strided_slice %199 {offsets = [0, 16], sizes = [8, 8], strides = [1, 1]} : vector<8x32xf32> to vector<8x8xf32>
    %250 = arith.truncf %249 : vector<8x8xf32> to vector<8x8xbf16>
    %cst_100 = arith.constant dense<0.000000e+00> : vector<8x8xf32>
    %251 = tpu.matmul %246, %248, %cst_100 {dimension_numbers = #tpu.dot_dimension_numbers<[1], [1], [0], [0], [0, 0, 1, 0], [], []>} : vector<8x8xbf16>, vector<8x8xbf16>, vector<8x8xf32> -> vector<8x8xf32>
    %cst_101 = arith.constant dense<0xFF800000> : vector<8xf32>
    %252 = vector.multi_reduction <maximumf>, %251, %cst_101 [1] : vector<8x8xf32> to vector<8xf32>
    %253 = vector.shape_cast %252 : vector<8xf32> to vector<8x1xf32>
    %254 = vector.broadcast %253 : vector<8x1xf32> to vector<8x8xf32>
    %255 = arith.subf %251, %254 : vector<8x8xf32>
    %256 = math.exp %255 : vector<8x8xf32>
    %cst_102 = arith.constant dense<0.000000e+00> : vector<8xf32>
    %257 = vector.multi_reduction <add>, %256, %cst_102 [1] : vector<8x8xf32> to vector<8xf32>
    %258 = vector.shape_cast %257 : vector<8xf32> to vector<8x1xf32>
    %259 = tpu.reciprocal %258 {approx = true} : vector<8x1xf32> -> vector<8x1xf32>
    %260 = vector.broadcast %259 : vector<8x1xf32> to vector<8x8xf32>
    %261 = arith.mulf %256, %260 : vector<8x8xf32>
    %262 = arith.truncf %261 : vector<8x8xf32> to vector<8x8xbf16>
    %cst_103 = arith.constant dense<0.000000e+00> : vector<8x8xf32>
    %263 = tpu.matmul %262, %250, %cst_103 {dimension_numbers = #tpu.dot_dimension_numbers<[1], [0], [0], [1], [0, 0, 1, 1], [], []>} : vector<8x8xbf16>, vector<8x8xbf16>, vector<8x8xf32> -> vector<8x8xf32>
    %264 = arith.truncf %263 : vector<8x8xf32> to vector<8x8xbf16>
    %265 = vector.extract_strided_slice %183 {offsets = [16, 0], sizes = [8, 32], strides = [1, 1]} : vector<32x32xbf16> to vector<8x32xbf16>
    %cst_104 = arith.constant dense<0.000000e+00> : vector<8x32xf32>
    %266 = tpu.matmul %264, %265, %cst_104 {dimension_numbers = #tpu.dot_dimension_numbers<[1], [0], [0], [1], [0, 0, 1, 1], [], []>} : vector<8x8xbf16>, vector<8x32xbf16>, vector<8x32xf32> -> vector<8x32xf32>
    %267 = arith.addf %244, %266 : vector<8x32xf32>
    %268 = vector.extract_strided_slice %197 {offsets = [0, 24], sizes = [8, 8], strides = [1, 1]} : vector<8x32xf32> to vector<8x8xf32>
    %269 = arith.truncf %268 : vector<8x8xf32> to vector<8x8xbf16>
    %270 = vector.extract_strided_slice %198 {offsets = [0, 24], sizes = [8, 8], strides = [1, 1]} : vector<8x32xf32> to vector<8x8xf32>
    %271 = arith.truncf %270 : vector<8x8xf32> to vector<8x8xbf16>
    %272 = vector.extract_strided_slice %199 {offsets = [0, 24], sizes = [8, 8], strides = [1, 1]} : vector<8x32xf32> to vector<8x8xf32>
    %273 = arith.truncf %272 : vector<8x8xf32> to vector<8x8xbf16>
    %cst_105 = arith.constant dense<0.000000e+00> : vector<8x8xf32>
    %274 = tpu.matmul %269, %271, %cst_105 {dimension_numbers = #tpu.dot_dimension_numbers<[1], [1], [0], [0], [0, 0, 1, 0], [], []>} : vector<8x8xbf16>, vector<8x8xbf16>, vector<8x8xf32> -> vector<8x8xf32>
    %cst_106 = arith.constant dense<0xFF800000> : vector<8xf32>
    %275 = vector.multi_reduction <maximumf>, %274, %cst_106 [1] : vector<8x8xf32> to vector<8xf32>
    %276 = vector.shape_cast %275 : vector<8xf32> to vector<8x1xf32>
    %277 = vector.broadcast %276 : vector<8x1xf32> to vector<8x8xf32>
    %278 = arith.subf %274, %277 : vector<8x8xf32>
    %279 = math.exp %278 : vector<8x8xf32>
    %cst_107 = arith.constant dense<0.000000e+00> : vector<8xf32>
    %280 = vector.multi_reduction <add>, %279, %cst_107 [1] : vector<8x8xf32> to vector<8xf32>
    %281 = vector.shape_cast %280 : vector<8xf32> to vector<8x1xf32>
    %282 = tpu.reciprocal %281 {approx = true} : vector<8x1xf32> -> vector<8x1xf32>
    %283 = vector.broadcast %282 : vector<8x1xf32> to vector<8x8xf32>
    %284 = arith.mulf %279, %283 : vector<8x8xf32>
    %285 = arith.truncf %284 : vector<8x8xf32> to vector<8x8xbf16>
    %cst_108 = arith.constant dense<0.000000e+00> : vector<8x8xf32>
    %286 = tpu.matmul %285, %273, %cst_108 {dimension_numbers = #tpu.dot_dimension_numbers<[1], [0], [0], [1], [0, 0, 1, 1], [], []>} : vector<8x8xbf16>, vector<8x8xbf16>, vector<8x8xf32> -> vector<8x8xf32>
    %287 = arith.truncf %286 : vector<8x8xf32> to vector<8x8xbf16>
    %288 = vector.extract_strided_slice %183 {offsets = [24, 0], sizes = [8, 32], strides = [1, 1]} : vector<32x32xbf16> to vector<8x32xbf16>
    %cst_109 = arith.constant dense<0.000000e+00> : vector<8x32xf32>
    %289 = tpu.matmul %287, %288, %cst_109 {dimension_numbers = #tpu.dot_dimension_numbers<[1], [0], [0], [1], [0, 0, 1, 1], [], []>} : vector<8x8xbf16>, vector<8x32xbf16>, vector<8x32xf32> -> vector<8x32xf32>
    %290 = arith.addf %267, %289 : vector<8x32xf32>
    %291 = vector.broadcast %184 : vector<1x32xf32> to vector<8x32xf32>
    %292 = arith.addf %290, %291 : vector<8x32xf32>
    %293 = arith.addf %180, %292 : vector<8x32xf32>
    %cst_110 = arith.constant dense<0.000000e+00> : vector<8xf32>
    %294 = vector.multi_reduction <add>, %293, %cst_110 [1] : vector<8x32xf32> to vector<8xf32>
    %295 = vector.shape_cast %294 : vector<8xf32> to vector<8x1xf32>
    %cst_111 = arith.constant 3.200000e+01 : f32
    %296 = vector.broadcast %cst_111 : f32 to vector<8x1xf32>
    %297 = arith.divf %295, %296 : vector<8x1xf32>
    %298 = vector.broadcast %297 : vector<8x1xf32> to vector<8x32xf32>
    %299 = arith.subf %293, %298 : vector<8x32xf32>
    %300 = arith.mulf %299, %299 : vector<8x32xf32>
    %cst_112 = arith.constant dense<0.000000e+00> : vector<8xf32>
    %301 = vector.multi_reduction <add>, %300, %cst_112 [1] : vector<8x32xf32> to vector<8xf32>
    %302 = vector.shape_cast %301 : vector<8xf32> to vector<8x1xf32>
    %cst_113 = arith.constant 3.200000e+01 : f32
    %303 = vector.broadcast %cst_113 : f32 to vector<8x1xf32>
    %304 = arith.divf %302, %303 : vector<8x1xf32>
    %305 = vector.broadcast %297 : vector<8x1xf32> to vector<8x32xf32>
    %306 = arith.subf %293, %305 : vector<8x32xf32>
    %cst_114 = arith.constant 9.99999974E-6 : f32
    %307 = vector.broadcast %cst_114 : f32 to vector<8x1xf32>
    %308 = arith.addf %304, %307 : vector<8x1xf32>
    %309 = math.rsqrt %308 : vector<8x1xf32>
    %310 = vector.broadcast %309 : vector<8x1xf32> to vector<8x32xf32>
    %311 = arith.mulf %306, %310 : vector<8x32xf32>
    %312 = vector.broadcast %189 : vector<1x32xf32> to vector<8x32xf32>
    %313 = arith.mulf %311, %312 : vector<8x32xf32>
    %314 = vector.broadcast %190 : vector<1x32xf32> to vector<8x32xf32>
    %315 = arith.addf %313, %314 : vector<8x32xf32>
    %316 = arith.truncf %315 : vector<8x32xf32> to vector<8x32xbf16>
    %cst_115 = arith.constant dense<0.000000e+00> : vector<8x64xf32>
    %317 = tpu.matmul %316, %185, %cst_115 {dimension_numbers = #tpu.dot_dimension_numbers<[1], [0], [0], [1], [0, 0, 1, 1], [], []>} : vector<8x32xbf16>, vector<32x64xbf16>, vector<8x64xf32> -> vector<8x64xf32>
    %318 = vector.broadcast %186 : vector<1x64xf32> to vector<8x64xf32>
    %319 = arith.addf %317, %318 : vector<8x64xf32>
    %cst_116 = arith.constant 0.000000e+00 : f32
    %320 = vector.broadcast %cst_116 : f32 to vector<8x64xf32>
    %321 = arith.maximumf %319, %320 : vector<8x64xf32>
    %322 = arith.truncf %321 : vector<8x64xf32> to vector<8x64xbf16>
    %cst_117 = arith.constant dense<0.000000e+00> : vector<8x32xf32>
    %323 = tpu.matmul %322, %187, %cst_117 {dimension_numbers = #tpu.dot_dimension_numbers<[1], [0], [0], [1], [0, 0, 1, 1], [], []>} : vector<8x64xbf16>, vector<64x32xbf16>, vector<8x32xf32> -> vector<8x32xf32>
    %324 = vector.broadcast %188 : vector<1x32xf32> to vector<8x32xf32>
    %325 = arith.addf %323, %324 : vector<8x32xf32>
    %326 = arith.addf %315, %325 : vector<8x32xf32>
    %cst_118 = arith.constant dense<0.000000e+00> : vector<8xf32>
    %327 = vector.multi_reduction <add>, %326, %cst_118 [1] : vector<8x32xf32> to vector<8xf32>
    %328 = vector.shape_cast %327 : vector<8xf32> to vector<8x1xf32>
    %cst_119 = arith.constant 3.200000e+01 : f32
    %329 = vector.broadcast %cst_119 : f32 to vector<8x1xf32>
    %330 = arith.divf %328, %329 : vector<8x1xf32>
    %331 = vector.broadcast %330 : vector<8x1xf32> to vector<8x32xf32>
    %332 = arith.subf %326, %331 : vector<8x32xf32>
    %333 = arith.mulf %332, %332 : vector<8x32xf32>
    %cst_120 = arith.constant dense<0.000000e+00> : vector<8xf32>
    %334 = vector.multi_reduction <add>, %333, %cst_120 [1] : vector<8x32xf32> to vector<8xf32>
    %335 = vector.shape_cast %334 : vector<8xf32> to vector<8x1xf32>
    %cst_121 = arith.constant 3.200000e+01 : f32
    %336 = vector.broadcast %cst_121 : f32 to vector<8x1xf32>
    %337 = arith.divf %335, %336 : vector<8x1xf32>
    %338 = vector.broadcast %330 : vector<8x1xf32> to vector<8x32xf32>
    %339 = arith.subf %326, %338 : vector<8x32xf32>
    %cst_122 = arith.constant 9.99999974E-6 : f32
    %340 = vector.broadcast %cst_122 : f32 to vector<8x1xf32>
    %341 = arith.addf %337, %340 : vector<8x1xf32>
    %342 = math.rsqrt %341 : vector<8x1xf32>
    %343 = vector.broadcast %342 : vector<8x1xf32> to vector<8x32xf32>
    %344 = arith.mulf %339, %343 : vector<8x32xf32>
    %345 = vector.broadcast %191 : vector<1x32xf32> to vector<8x32xf32>
    %346 = arith.mulf %344, %345 : vector<8x32xf32>
    %347 = vector.broadcast %192 : vector<1x32xf32> to vector<8x32xf32>
    %348 = arith.addf %346, %347 : vector<8x32xf32>
    %c0_123 = arith.constant 0 : index
    %c0_124 = arith.constant 0 : index
    %349 = vector.load %arg28[%c0_123, %c0_124] : memref<1x32xf32, #tpu.memory_space<vmem>>, vector<1x32xf32>
    %c0_125 = arith.constant 0 : index
    %c0_126 = arith.constant 0 : index
    %350 = vector.load %arg29[%c0_125, %c0_126] : memref<1x32xf32, #tpu.memory_space<vmem>>, vector<1x32xf32>
    %c0_127 = arith.constant 0 : index
    %c0_128 = arith.constant 0 : index
    %351 = vector.load %arg30[%c0_127, %c0_128] : memref<32x64xbf16, #tpu.memory_space<vmem>>, vector<32x64xbf16>
    %c0_129 = arith.constant 0 : index
    %c0_130 = arith.constant 0 : index
    %352 = vector.load %arg31[%c0_129, %c0_130] : memref<1x64xf32, #tpu.memory_space<vmem>>, vector<1x64xf32>
    %c0_131 = arith.constant 0 : index
    %c0_132 = arith.constant 0 : index
    %353 = vector.load %arg32[%c0_131, %c0_132] : memref<32x32xbf16, #tpu.memory_space<vmem>>, vector<32x32xbf16>
    %c0_133 = arith.constant 0 : index
    %c0_134 = arith.constant 0 : index
    %354 = vector.load %arg33[%c0_133, %c0_134] : memref<1x32xf32, #tpu.memory_space<vmem>>, vector<1x32xf32>
    %c0_135 = arith.constant 0 : index
    %c0_136 = arith.constant 0 : index
    %355 = vector.load %arg34[%c0_135, %c0_136] : memref<32x64xbf16, #tpu.memory_space<vmem>>, vector<32x64xbf16>
    %c0_137 = arith.constant 0 : index
    %c0_138 = arith.constant 0 : index
    %356 = vector.load %arg35[%c0_137, %c0_138] : memref<1x64xf32, #tpu.memory_space<vmem>>, vector<1x64xf32>
    %c0_139 = arith.constant 0 : index
    %c0_140 = arith.constant 0 : index
    %357 = vector.load %arg36[%c0_139, %c0_140] : memref<64x32xbf16, #tpu.memory_space<vmem>>, vector<64x32xbf16>
    %c0_141 = arith.constant 0 : index
    %c0_142 = arith.constant 0 : index
    %358 = vector.load %arg37[%c0_141, %c0_142] : memref<1x32xf32, #tpu.memory_space<vmem>>, vector<1x32xf32>
    %c0_143 = arith.constant 0 : index
    %c0_144 = arith.constant 0 : index
    %359 = vector.load %arg38[%c0_143, %c0_144] : memref<1x32xf32, #tpu.memory_space<vmem>>, vector<1x32xf32>
    %c0_145 = arith.constant 0 : index
    %c0_146 = arith.constant 0 : index
    %360 = vector.load %arg39[%c0_145, %c0_146] : memref<1x32xf32, #tpu.memory_space<vmem>>, vector<1x32xf32>
    %c0_147 = arith.constant 0 : index
    %c0_148 = arith.constant 0 : index
    %361 = vector.load %arg40[%c0_147, %c0_148] : memref<1x32xf32, #tpu.memory_space<vmem>>, vector<1x32xf32>
    %c0_149 = arith.constant 0 : index
    %c0_150 = arith.constant 0 : index
    %362 = vector.load %arg41[%c0_149, %c0_150] : memref<1x32xf32, #tpu.memory_space<vmem>>, vector<1x32xf32>
    %363 = arith.truncf %348 : vector<8x32xf32> to vector<8x32xbf16>
    %cst_151 = arith.constant dense<0.000000e+00> : vector<8x64xf32>
    %364 = tpu.matmul %363, %351, %cst_151 {dimension_numbers = #tpu.dot_dimension_numbers<[1], [0], [0], [1], [0, 0, 1, 1], [], []>} : vector<8x32xbf16>, vector<32x64xbf16>, vector<8x64xf32> -> vector<8x64xf32>
    %365 = vector.broadcast %352 : vector<1x64xf32> to vector<8x64xf32>
    %366 = arith.addf %364, %365 : vector<8x64xf32>
    %367 = vector.extract_strided_slice %366 {offsets = [0, 0], sizes = [8, 32], strides = [1, 1]} : vector<8x64xf32> to vector<8x32xf32>
    %368 = vector.extract_strided_slice %366 {offsets = [0, 32], sizes = [8, 32], strides = [1, 1]} : vector<8x64xf32> to vector<8x32xf32>
    %369 = vector.extract_strided_slice %350 {offsets = [0, 0], sizes = [1, 8], strides = [1, 1]} : vector<1x32xf32> to vector<1x8xf32>
    %370 = arith.truncf %369 : vector<1x8xf32> to vector<1x8xbf16>
    %371 = vector.extract_strided_slice %367 {offsets = [0, 0], sizes = [8, 8], strides = [1, 1]} : vector<8x32xf32> to vector<8x8xf32>
    %372 = arith.truncf %371 : vector<8x8xf32> to vector<8x8xbf16>
    %373 = vector.extract_strided_slice %368 {offsets = [0, 0], sizes = [8, 8], strides = [1, 1]} : vector<8x32xf32> to vector<8x8xf32>
    %374 = arith.truncf %373 : vector<8x8xf32> to vector<8x8xbf16>
    %cst_152 = arith.constant dense<0.000000e+00> : vector<1x8xf32>
    %375 = tpu.matmul %370, %372, %cst_152 {dimension_numbers = #tpu.dot_dimension_numbers<[1], [1], [0], [0], [0, 0, 1, 0], [], []>} : vector<1x8xbf16>, vector<8x8xbf16>, vector<1x8xf32> -> vector<1x8xf32>
    %cst_153 = arith.constant dense<0xFF800000> : vector<1xf32>
    %376 = vector.multi_reduction <maximumf>, %375, %cst_153 [1] : vector<1x8xf32> to vector<1xf32>
    %377 = vector.shape_cast %376 : vector<1xf32> to vector<1x1xf32>
    %378 = vector.broadcast %377 : vector<1x1xf32> to vector<1x8xf32>
    %379 = arith.subf %375, %378 : vector<1x8xf32>
    %380 = math.exp %379 : vector<1x8xf32>
    %cst_154 = arith.constant dense<0.000000e+00> : vector<1xf32>
    %381 = vector.multi_reduction <add>, %380, %cst_154 [1] : vector<1x8xf32> to vector<1xf32>
    %382 = vector.shape_cast %381 : vector<1xf32> to vector<1x1xf32>
    %383 = tpu.reciprocal %382 {approx = true} : vector<1x1xf32> -> vector<1x1xf32>
    %384 = vector.broadcast %383 : vector<1x1xf32> to vector<1x8xf32>
    %385 = arith.mulf %380, %384 : vector<1x8xf32>
    %386 = arith.truncf %385 : vector<1x8xf32> to vector<1x8xbf16>
    %cst_155 = arith.constant dense<0.000000e+00> : vector<1x8xf32>
    %387 = tpu.matmul %386, %374, %cst_155 {dimension_numbers = #tpu.dot_dimension_numbers<[1], [0], [0], [1], [0, 0, 1, 1], [], []>} : vector<1x8xbf16>, vector<8x8xbf16>, vector<1x8xf32> -> vector<1x8xf32>
    %388 = arith.truncf %387 : vector<1x8xf32> to vector<1x8xbf16>
    %389 = vector.extract_strided_slice %353 {offsets = [0, 0], sizes = [8, 32], strides = [1, 1]} : vector<32x32xbf16> to vector<8x32xbf16>
    %cst_156 = arith.constant dense<0.000000e+00> : vector<1x32xf32>
    %390 = tpu.matmul %388, %389, %cst_156 {dimension_numbers = #tpu.dot_dimension_numbers<[1], [0], [0], [1], [0, 0, 1, 1], [], []>} : vector<1x8xbf16>, vector<8x32xbf16>, vector<1x32xf32> -> vector<1x32xf32>
    %391 = vector.extract_strided_slice %350 {offsets = [0, 8], sizes = [1, 8], strides = [1, 1]} : vector<1x32xf32> to vector<1x8xf32>
    %392 = arith.truncf %391 : vector<1x8xf32> to vector<1x8xbf16>
    %393 = vector.extract_strided_slice %367 {offsets = [0, 8], sizes = [8, 8], strides = [1, 1]} : vector<8x32xf32> to vector<8x8xf32>
    %394 = arith.truncf %393 : vector<8x8xf32> to vector<8x8xbf16>
    %395 = vector.extract_strided_slice %368 {offsets = [0, 8], sizes = [8, 8], strides = [1, 1]} : vector<8x32xf32> to vector<8x8xf32>
    %396 = arith.truncf %395 : vector<8x8xf32> to vector<8x8xbf16>
    %cst_157 = arith.constant dense<0.000000e+00> : vector<1x8xf32>
    %397 = tpu.matmul %392, %394, %cst_157 {dimension_numbers = #tpu.dot_dimension_numbers<[1], [1], [0], [0], [0, 0, 1, 0], [], []>} : vector<1x8xbf16>, vector<8x8xbf16>, vector<1x8xf32> -> vector<1x8xf32>
    %cst_158 = arith.constant dense<0xFF800000> : vector<1xf32>
    %398 = vector.multi_reduction <maximumf>, %397, %cst_158 [1] : vector<1x8xf32> to vector<1xf32>
    %399 = vector.shape_cast %398 : vector<1xf32> to vector<1x1xf32>
    %400 = vector.broadcast %399 : vector<1x1xf32> to vector<1x8xf32>
    %401 = arith.subf %397, %400 : vector<1x8xf32>
    %402 = math.exp %401 : vector<1x8xf32>
    %cst_159 = arith.constant dense<0.000000e+00> : vector<1xf32>
    %403 = vector.multi_reduction <add>, %402, %cst_159 [1] : vector<1x8xf32> to vector<1xf32>
    %404 = vector.shape_cast %403 : vector<1xf32> to vector<1x1xf32>
    %405 = tpu.reciprocal %404 {approx = true} : vector<1x1xf32> -> vector<1x1xf32>
    %406 = vector.broadcast %405 : vector<1x1xf32> to vector<1x8xf32>
    %407 = arith.mulf %402, %406 : vector<1x8xf32>
    %408 = arith.truncf %407 : vector<1x8xf32> to vector<1x8xbf16>
    %cst_160 = arith.constant dense<0.000000e+00> : vector<1x8xf32>
    %409 = tpu.matmul %408, %396, %cst_160 {dimension_numbers = #tpu.dot_dimension_numbers<[1], [0], [0], [1], [0, 0, 1, 1], [], []>} : vector<1x8xbf16>, vector<8x8xbf16>, vector<1x8xf32> -> vector<1x8xf32>
    %410 = arith.truncf %409 : vector<1x8xf32> to vector<1x8xbf16>
    %411 = vector.extract_strided_slice %353 {offsets = [8, 0], sizes = [8, 32], strides = [1, 1]} : vector<32x32xbf16> to vector<8x32xbf16>
    %cst_161 = arith.constant dense<0.000000e+00> : vector<1x32xf32>
    %412 = tpu.matmul %410, %411, %cst_161 {dimension_numbers = #tpu.dot_dimension_numbers<[1], [0], [0], [1], [0, 0, 1, 1], [], []>} : vector<1x8xbf16>, vector<8x32xbf16>, vector<1x32xf32> -> vector<1x32xf32>
    %413 = arith.addf %390, %412 : vector<1x32xf32>
    %414 = vector.extract_strided_slice %350 {offsets = [0, 16], sizes = [1, 8], strides = [1, 1]} : vector<1x32xf32> to vector<1x8xf32>
    %415 = arith.truncf %414 : vector<1x8xf32> to vector<1x8xbf16>
    %416 = vector.extract_strided_slice %367 {offsets = [0, 16], sizes = [8, 8], strides = [1, 1]} : vector<8x32xf32> to vector<8x8xf32>
    %417 = arith.truncf %416 : vector<8x8xf32> to vector<8x8xbf16>
    %418 = vector.extract_strided_slice %368 {offsets = [0, 16], sizes = [8, 8], strides = [1, 1]} : vector<8x32xf32> to vector<8x8xf32>
    %419 = arith.truncf %418 : vector<8x8xf32> to vector<8x8xbf16>
    %cst_162 = arith.constant dense<0.000000e+00> : vector<1x8xf32>
    %420 = tpu.matmul %415, %417, %cst_162 {dimension_numbers = #tpu.dot_dimension_numbers<[1], [1], [0], [0], [0, 0, 1, 0], [], []>} : vector<1x8xbf16>, vector<8x8xbf16>, vector<1x8xf32> -> vector<1x8xf32>
    %cst_163 = arith.constant dense<0xFF800000> : vector<1xf32>
    %421 = vector.multi_reduction <maximumf>, %420, %cst_163 [1] : vector<1x8xf32> to vector<1xf32>
    %422 = vector.shape_cast %421 : vector<1xf32> to vector<1x1xf32>
    %423 = vector.broadcast %422 : vector<1x1xf32> to vector<1x8xf32>
    %424 = arith.subf %420, %423 : vector<1x8xf32>
    %425 = math.exp %424 : vector<1x8xf32>
    %cst_164 = arith.constant dense<0.000000e+00> : vector<1xf32>
    %426 = vector.multi_reduction <add>, %425, %cst_164 [1] : vector<1x8xf32> to vector<1xf32>
    %427 = vector.shape_cast %426 : vector<1xf32> to vector<1x1xf32>
    %428 = tpu.reciprocal %427 {approx = true} : vector<1x1xf32> -> vector<1x1xf32>
    %429 = vector.broadcast %428 : vector<1x1xf32> to vector<1x8xf32>
    %430 = arith.mulf %425, %429 : vector<1x8xf32>
    %431 = arith.truncf %430 : vector<1x8xf32> to vector<1x8xbf16>
    %cst_165 = arith.constant dense<0.000000e+00> : vector<1x8xf32>
    %432 = tpu.matmul %431, %419, %cst_165 {dimension_numbers = #tpu.dot_dimension_numbers<[1], [0], [0], [1], [0, 0, 1, 1], [], []>} : vector<1x8xbf16>, vector<8x8xbf16>, vector<1x8xf32> -> vector<1x8xf32>
    %433 = arith.truncf %432 : vector<1x8xf32> to vector<1x8xbf16>
    %434 = vector.extract_strided_slice %353 {offsets = [16, 0], sizes = [8, 32], strides = [1, 1]} : vector<32x32xbf16> to vector<8x32xbf16>
    %cst_166 = arith.constant dense<0.000000e+00> : vector<1x32xf32>
    %435 = tpu.matmul %433, %434, %cst_166 {dimension_numbers = #tpu.dot_dimension_numbers<[1], [0], [0], [1], [0, 0, 1, 1], [], []>} : vector<1x8xbf16>, vector<8x32xbf16>, vector<1x32xf32> -> vector<1x32xf32>
    %436 = arith.addf %413, %435 : vector<1x32xf32>
    %437 = vector.extract_strided_slice %350 {offsets = [0, 24], sizes = [1, 8], strides = [1, 1]} : vector<1x32xf32> to vector<1x8xf32>
    %438 = arith.truncf %437 : vector<1x8xf32> to vector<1x8xbf16>
    %439 = vector.extract_strided_slice %367 {offsets = [0, 24], sizes = [8, 8], strides = [1, 1]} : vector<8x32xf32> to vector<8x8xf32>
    %440 = arith.truncf %439 : vector<8x8xf32> to vector<8x8xbf16>
    %441 = vector.extract_strided_slice %368 {offsets = [0, 24], sizes = [8, 8], strides = [1, 1]} : vector<8x32xf32> to vector<8x8xf32>
    %442 = arith.truncf %441 : vector<8x8xf32> to vector<8x8xbf16>
    %cst_167 = arith.constant dense<0.000000e+00> : vector<1x8xf32>
    %443 = tpu.matmul %438, %440, %cst_167 {dimension_numbers = #tpu.dot_dimension_numbers<[1], [1], [0], [0], [0, 0, 1, 0], [], []>} : vector<1x8xbf16>, vector<8x8xbf16>, vector<1x8xf32> -> vector<1x8xf32>
    %cst_168 = arith.constant dense<0xFF800000> : vector<1xf32>
    %444 = vector.multi_reduction <maximumf>, %443, %cst_168 [1] : vector<1x8xf32> to vector<1xf32>
    %445 = vector.shape_cast %444 : vector<1xf32> to vector<1x1xf32>
    %446 = vector.broadcast %445 : vector<1x1xf32> to vector<1x8xf32>
    %447 = arith.subf %443, %446 : vector<1x8xf32>
    %448 = math.exp %447 : vector<1x8xf32>
    %cst_169 = arith.constant dense<0.000000e+00> : vector<1xf32>
    %449 = vector.multi_reduction <add>, %448, %cst_169 [1] : vector<1x8xf32> to vector<1xf32>
    %450 = vector.shape_cast %449 : vector<1xf32> to vector<1x1xf32>
    %451 = tpu.reciprocal %450 {approx = true} : vector<1x1xf32> -> vector<1x1xf32>
    %452 = vector.broadcast %451 : vector<1x1xf32> to vector<1x8xf32>
    %453 = arith.mulf %448, %452 : vector<1x8xf32>
    %454 = arith.truncf %453 : vector<1x8xf32> to vector<1x8xbf16>
    %cst_170 = arith.constant dense<0.000000e+00> : vector<1x8xf32>
    %455 = tpu.matmul %454, %442, %cst_170 {dimension_numbers = #tpu.dot_dimension_numbers<[1], [0], [0], [1], [0, 0, 1, 1], [], []>} : vector<1x8xbf16>, vector<8x8xbf16>, vector<1x8xf32> -> vector<1x8xf32>
    %456 = arith.truncf %455 : vector<1x8xf32> to vector<1x8xbf16>
    %457 = vector.extract_strided_slice %353 {offsets = [24, 0], sizes = [8, 32], strides = [1, 1]} : vector<32x32xbf16> to vector<8x32xbf16>
    %cst_171 = arith.constant dense<0.000000e+00> : vector<1x32xf32>
    %458 = tpu.matmul %456, %457, %cst_171 {dimension_numbers = #tpu.dot_dimension_numbers<[1], [0], [0], [1], [0, 0, 1, 1], [], []>} : vector<1x8xbf16>, vector<8x32xbf16>, vector<1x32xf32> -> vector<1x32xf32>
    %459 = arith.addf %436, %458 : vector<1x32xf32>
    %460 = arith.addf %459, %354 : vector<1x32xf32>
    %461 = arith.addf %349, %460 : vector<1x32xf32>
    %cst_172 = arith.constant dense<0.000000e+00> : vector<1xf32>
    %462 = vector.multi_reduction <add>, %461, %cst_172 [1] : vector<1x32xf32> to vector<1xf32>
    %463 = vector.shape_cast %462 : vector<1xf32> to vector<1x1xf32>
    %cst_173 = arith.constant 3.200000e+01 : f32
    %464 = vector.broadcast %cst_173 : f32 to vector<1x1xf32>
    %465 = arith.divf %463, %464 : vector<1x1xf32>
    %466 = vector.broadcast %465 : vector<1x1xf32> to vector<1x32xf32>
    %467 = arith.subf %461, %466 : vector<1x32xf32>
    %468 = arith.mulf %467, %467 : vector<1x32xf32>
    %cst_174 = arith.constant dense<0.000000e+00> : vector<1xf32>
    %469 = vector.multi_reduction <add>, %468, %cst_174 [1] : vector<1x32xf32> to vector<1xf32>
    %470 = vector.shape_cast %469 : vector<1xf32> to vector<1x1xf32>
    %cst_175 = arith.constant 3.200000e+01 : f32
    %471 = vector.broadcast %cst_175 : f32 to vector<1x1xf32>
    %472 = arith.divf %470, %471 : vector<1x1xf32>
    %473 = vector.broadcast %465 : vector<1x1xf32> to vector<1x32xf32>
    %474 = arith.subf %461, %473 : vector<1x32xf32>
    %cst_176 = arith.constant 9.99999974E-6 : f32
    %475 = vector.broadcast %cst_176 : f32 to vector<1x1xf32>
    %476 = arith.addf %472, %475 : vector<1x1xf32>
    %477 = math.rsqrt %476 : vector<1x1xf32>
    %478 = vector.broadcast %477 : vector<1x1xf32> to vector<1x32xf32>
    %479 = arith.mulf %474, %478 : vector<1x32xf32>
    %480 = arith.mulf %479, %359 : vector<1x32xf32>
    %481 = arith.addf %480, %360 : vector<1x32xf32>
    %482 = arith.truncf %481 : vector<1x32xf32> to vector<1x32xbf16>
    %cst_177 = arith.constant dense<0.000000e+00> : vector<1x64xf32>
    %483 = tpu.matmul %482, %355, %cst_177 {dimension_numbers = #tpu.dot_dimension_numbers<[1], [0], [0], [1], [0, 0, 1, 1], [], []>} : vector<1x32xbf16>, vector<32x64xbf16>, vector<1x64xf32> -> vector<1x64xf32>
    %484 = arith.addf %483, %356 : vector<1x64xf32>
    %cst_178 = arith.constant 0.000000e+00 : f32
    %485 = vector.broadcast %cst_178 : f32 to vector<1x64xf32>
    %486 = arith.maximumf %484, %485 : vector<1x64xf32>
    %487 = arith.truncf %486 : vector<1x64xf32> to vector<1x64xbf16>
    %cst_179 = arith.constant dense<0.000000e+00> : vector<1x32xf32>
    %488 = tpu.matmul %487, %357, %cst_179 {dimension_numbers = #tpu.dot_dimension_numbers<[1], [0], [0], [1], [0, 0, 1, 1], [], []>} : vector<1x64xbf16>, vector<64x32xbf16>, vector<1x32xf32> -> vector<1x32xf32>
    %489 = arith.addf %488, %358 : vector<1x32xf32>
    %490 = arith.addf %481, %489 : vector<1x32xf32>
    %cst_180 = arith.constant dense<0.000000e+00> : vector<1xf32>
    %491 = vector.multi_reduction <add>, %490, %cst_180 [1] : vector<1x32xf32> to vector<1xf32>
    %492 = vector.shape_cast %491 : vector<1xf32> to vector<1x1xf32>
    %cst_181 = arith.constant 3.200000e+01 : f32
    %493 = vector.broadcast %cst_181 : f32 to vector<1x1xf32>
    %494 = arith.divf %492, %493 : vector<1x1xf32>
    %495 = vector.broadcast %494 : vector<1x1xf32> to vector<1x32xf32>
    %496 = arith.subf %490, %495 : vector<1x32xf32>
    %497 = arith.mulf %496, %496 : vector<1x32xf32>
    %cst_182 = arith.constant dense<0.000000e+00> : vector<1xf32>
    %498 = vector.multi_reduction <add>, %497, %cst_182 [1] : vector<1x32xf32> to vector<1xf32>
    %499 = vector.shape_cast %498 : vector<1xf32> to vector<1x1xf32>
    %cst_183 = arith.constant 3.200000e+01 : f32
    %500 = vector.broadcast %cst_183 : f32 to vector<1x1xf32>
    %501 = arith.divf %499, %500 : vector<1x1xf32>
    %502 = vector.broadcast %494 : vector<1x1xf32> to vector<1x32xf32>
    %503 = arith.subf %490, %502 : vector<1x32xf32>
    %cst_184 = arith.constant 9.99999974E-6 : f32
    %504 = vector.broadcast %cst_184 : f32 to vector<1x1xf32>
    %505 = arith.addf %501, %504 : vector<1x1xf32>
    %506 = math.rsqrt %505 : vector<1x1xf32>
    %507 = vector.broadcast %506 : vector<1x1xf32> to vector<1x32xf32>
    %508 = arith.mulf %503, %507 : vector<1x32xf32>
    %509 = arith.mulf %508, %361 : vector<1x32xf32>
    %510 = arith.addf %509, %362 : vector<1x32xf32>
    %c0_185 = arith.constant 0 : index
    %c0_186 = arith.constant 0 : index
    %c0_187 = arith.constant 0 : index
    %511 = vector.load %arg42[%c0_185, %c0_186, %c0_187] : memref<1x1x32xf32, #tpu.memory_space<vmem>>, vector<1x1x32xf32>
    %512 = vector.shape_cast %511 : vector<1x1x32xf32> to vector<1x32xf32>
    %513 = vector.shape_cast %510 : vector<1x32xf32> to vector<1x1x32xf32>
    tpu.vector_store %arg42[%c0_185, %c0_186, %c0_187], %513 {strides = array<i32>} : memref<1x1x32xf32, #tpu.memory_space<vmem>>, vector<1x1x32xf32>,
    return
  }
  func.func @transform_0(%arg0: i32) -> (i32, i32, i32) {
    %c0_i32 = arith.constant 0 : i32
    %c0_i32_0 = arith.constant 0 : i32
    %c0_i32_1 = arith.constant 0 : i32
    return %arg0, %c0_i32, %c0_i32_0 : i32, i32, i32
  }
  func.func @transform_1(%arg0: i32) -> (i32, i32) {
    %c0_i32 = arith.constant 0 : i32
    %c0_i32_0 = arith.constant 0 : i32
    %c0_i32_1 = arith.constant 0 : i32
    return %c0_i32, %c0_i32_0 : i32, i32
  }
  func.func @transform_2(%arg0: i32) -> (i32, i32) {
    %c0_i32 = arith.constant 0 : i32
    %c0_i32_0 = arith.constant 0 : i32
    %c0_i32_1 = arith.constant 0 : i32
    return %c0_i32, %c0_i32_0 : i32, i32
  }
  func.func @transform_3(%arg0: i32) -> (i32, i32) {
    %c0_i32 = arith.constant 0 : i32
    %c0_i32_0 = arith.constant 0 : i32
    %c0_i32_1 = arith.constant 0 : i32
    return %c0_i32, %c0_i32_0 : i32, i32
  }
  func.func @transform_4(%arg0: i32) -> (i32, i32) {
    %c0_i32 = arith.constant 0 : i32
    %c0_i32_0 = arith.constant 0 : i32
    %c0_i32_1 = arith.constant 0 : i32
    return %c0_i32, %c0_i32_0 : i32, i32
  }
  func.func @transform_5(%arg0: i32) -> (i32, i32) {
    %c0_i32 = arith.constant 0 : i32
    %c0_i32_0 = arith.constant 0 : i32
    %c0_i32_1 = arith.constant 0 : i32
    return %c0_i32, %c0_i32_0 : i32, i32
  }
  func.func @transform_6(%arg0: i32) -> (i32, i32) {
    %c0_i32 = arith.constant 0 : i32
    %c0_i32_0 = arith.constant 0 : i32
    %c0_i32_1 = arith.constant 0 : i32
    return %c0_i32, %c0_i32_0 : i32, i32
  }
  func.func @transform_7(%arg0: i32) -> (i32, i32) {
    %c0_i32 = arith.constant 0 : i32
    %c0_i32_0 = arith.constant 0 : i32
    %c0_i32_1 = arith.constant 0 : i32
    return %c0_i32, %c0_i32_0 : i32, i32
  }
  func.func @transform_8(%arg0: i32) -> (i32, i32) {
    %c0_i32 = arith.constant 0 : i32
    %c0_i32_0 = arith.constant 0 : i32
    %c0_i32_1 = arith.constant 0 : i32
    return %c0_i32, %c0_i32_0 : i32, i32
  }
  func.func @transform_9(%arg0: i32) -> (i32, i32) {
    %c0_i32 = arith.constant 0 : i32
    %c0_i32_0 = arith.constant 0 : i32
    %c0_i32_1 = arith.constant 0 : i32
    return %c0_i32, %c0_i32_0 : i32, i32
  }
  func.func @transform_10(%arg0: i32) -> (i32, i32) {
    %c0_i32 = arith.constant 0 : i32
    %c0_i32_0 = arith.constant 0 : i32
    %c0_i32_1 = arith.constant 0 : i32
    return %c0_i32, %c0_i32_0 : i32, i32
  }
  func.func @transform_11(%arg0: i32) -> (i32, i32) {
    %c0_i32 = arith.constant 0 : i32
    %c0_i32_0 = arith.constant 0 : i32
    %c0_i32_1 = arith.constant 0 : i32
    return %c0_i32, %c0_i32_0 : i32, i32
  }
  func.func @transform_12(%arg0: i32) -> (i32, i32) {
    %c0_i32 = arith.constant 0 : i32
    %c0_i32_0 = arith.constant 0 : i32
    %c0_i32_1 = arith.constant 0 : i32
    return %c0_i32, %c0_i32_0 : i32, i32
  }
  func.func @transform_13(%arg0: i32) -> (i32, i32) {
    %c0_i32 = arith.constant 0 : i32
    %c0_i32_0 = arith.constant 0 : i32
    %c0_i32_1 = arith.constant 0 : i32
    return %c0_i32, %c0_i32_0 : i32, i32
  }
  func.func @transform_14(%arg0: i32) -> (i32, i32) {
    %c0_i32 = arith.constant 0 : i32
    %c0_i32_0 = arith.constant 0 : i32
    %c0_i32_1 = arith.constant 0 : i32
    return %c0_i32, %c0_i32_0 : i32, i32
  }
  func.func @transform_15(%arg0: i32) -> (i32, i32) {
    %c0_i32 = arith.constant 0 : i32
    %c0_i32_0 = arith.constant 0 : i32
    %c0_i32_1 = arith.constant 0 : i32
    return %c0_i32, %c0_i32_0 : i32, i32
  }
  func.func @transform_16(%arg0: i32) -> (i32, i32) {
    %c0_i32 = arith.constant 0 : i32
    %c0_i32_0 = arith.constant 0 : i32
    %c0_i32_1 = arith.constant 0 : i32
    return %c0_i32, %c0_i32_0 : i32, i32
  }
  func.func @transform_17(%arg0: i32) -> (i32, i32) {
    %c0_i32 = arith.constant 0 : i32
    %c0_i32_0 = arith.constant 0 : i32
    %c0_i32_1 = arith.constant 0 : i32
    return %c0_i32, %c0_i32_0 : i32, i32
  }
  func.func @transform_18(%arg0: i32) -> (i32, i32) {
    %c0_i32 = arith.constant 0 : i32
    %c0_i32_0 = arith.constant 0 : i32
    %c0_i32_1 = arith.constant 0 : i32
    return %c0_i32, %c0_i32_0 : i32, i32
  }
  func.func @transform_19(%arg0: i32) -> (i32, i32) {
    %c0_i32 = arith.constant 0 : i32
    %c0_i32_0 = arith.constant 0 : i32
    %c0_i32_1 = arith.constant 0 : i32
    return %c0_i32, %c0_i32_0 : i32, i32
  }
  func.func @transform_20(%arg0: i32) -> (i32, i32) {
    %c0_i32 = arith.constant 0 : i32
    %c0_i32_0 = arith.constant 0 : i32
    %c0_i32_1 = arith.constant 0 : i32
    return %c0_i32, %c0_i32_0 : i32, i32
  }
  func.func @transform_21(%arg0: i32) -> (i32, i32) {
    %c0_i32 = arith.constant 0 : i32
    %c0_i32_0 = arith.constant 0 : i32
    %c0_i32_1 = arith.constant 0 : i32
    return %c0_i32, %c0_i32_0 : i32, i32
  }
  func.func @transform_22(%arg0: i32) -> (i32, i32) {
    %c0_i32 = arith.constant 0 : i32
    %c0_i32_0 = arith.constant 0 : i32
    %c0_i32_1 = arith.constant 0 : i32
    return %c0_i32, %c0_i32_0 : i32, i32
  }
  func.func @transform_23(%arg0: i32) -> (i32, i32) {
    %c0_i32 = arith.constant 0 : i32
    %c0_i32_0 = arith.constant 0 : i32
    %c0_i32_1 = arith.constant 0 : i32
    return %c0_i32, %c0_i32_0 : i32, i32
  }
  func.func @transform_24(%arg0: i32) -> (i32, i32) {
    %c0_i32 = arith.constant 0 : i32
    %c0_i32_0 = arith.constant 0 : i32
    %c0_i32_1 = arith.constant 0 : i32
    return %c0_i32, %c0_i32_0 : i32, i32
  }
  func.func @transform_25(%arg0: i32) -> (i32, i32) {
    %c0_i32 = arith.constant 0 : i32
    %c0_i32_0 = arith.constant 0 : i32
    %c0_i32_1 = arith.constant 0 : i32
    return %c0_i32, %c0_i32_0 : i32, i32
  }
  func.func @transform_26(%arg0: i32) -> (i32, i32) {
    %c0_i32 = arith.constant 0 : i32
    %c0_i32_0 = arith.constant 0 : i32
    %c0_i32_1 = arith.constant 0 : i32
    return %c0_i32, %c0_i32_0 : i32, i32
  }
  func.func @transform_27(%arg0: i32) -> (i32, i32) {
    %c0_i32 = arith.constant 0 : i32
    %c0_i32_0 = arith.constant 0 : i32
    %c0_i32_1 = arith.constant 0 : i32
    return %c0_i32, %c0_i32_0 : i32, i32
  }
  func.func @transform_28(%arg0: i32) -> (i32, i32) {
    %c0_i32 = arith.constant 0 : i32
    %c0_i32_0 = arith.constant 0 : i32
    %c0_i32_1 = arith.constant 0 : i32
    return %c0_i32, %c0_i32_0 : i32, i32
  }
  func.func @transform_29(%arg0: i32) -> (i32, i32) {
    %c0_i32 = arith.constant 0 : i32
    %c0_i32_0 = arith.constant 0 : i32
    %c0_i32_1 = arith.constant 0 : i32
    return %c0_i32, %c0_i32_0 : i32, i32
  }
  func.func @transform_30(%arg0: i32) -> (i32, i32) {
    %c0_i32 = arith.constant 0 : i32
    %c0_i32_0 = arith.constant 0 : i32
    %c0_i32_1 = arith.constant 0 : i32
    return %c0_i32, %c0_i32_0 : i32, i32
  }
  func.func @transform_31(%arg0: i32) -> (i32, i32) {
    %c0_i32 = arith.constant 0 : i32
    %c0_i32_0 = arith.constant 0 : i32
    %c0_i32_1 = arith.constant 0 : i32
    return %c0_i32, %c0_i32_0 : i32, i32
  }
  func.func @transform_32(%arg0: i32) -> (i32, i32) {
    %c0_i32 = arith.constant 0 : i32
    %c0_i32_0 = arith.constant 0 : i32
    %c0_i32_1 = arith.constant 0 : i32
    return %c0_i32, %c0_i32_0 : i32, i32
  }
  func.func @transform_33(%arg0: i32) -> (i32, i32) {
    %c0_i32 = arith.constant 0 : i32
    %c0_i32_0 = arith.constant 0 : i32
    %c0_i32_1 = arith.constant 0 : i32
    return %c0_i32, %c0_i32_0 : i32, i32
  }
  func.func @transform_34(%arg0: i32) -> (i32, i32) {
    %c0_i32 = arith.constant 0 : i32
    %c0_i32_0 = arith.constant 0 : i32
    %c0_i32_1 = arith.constant 0 : i32
    return %c0_i32, %c0_i32_0 : i32, i32
  }
  func.func @transform_35(%arg0: i32) -> (i32, i32) {
    %c0_i32 = arith.constant 0 : i32
    %c0_i32_0 = arith.constant 0 : i32
    %c0_i32_1 = arith.constant 0 : i32
    return %c0_i32, %c0_i32_0 : i32, i32
  }
  func.func @transform_36(%arg0: i32) -> (i32, i32) {
    %c0_i32 = arith.constant 0 : i32
    %c0_i32_0 = arith.constant 0 : i32
    %c0_i32_1 = arith.constant 0 : i32
    return %c0_i32, %c0_i32_0 : i32, i32
  }
  func.func @transform_37(%arg0: i32) -> (i32, i32) {
    %c0_i32 = arith.constant 0 : i32
    %c0_i32_0 = arith.constant 0 : i32
    %c0_i32_1 = arith.constant 0 : i32
    return %c0_i32, %c0_i32_0 : i32, i32
  }
  func.func @transform_38(%arg0: i32) -> (i32, i32) {
    %c0_i32 = arith.constant 0 : i32
    %c0_i32_0 = arith.constant 0 : i32
    %c0_i32_1 = arith.constant 0 : i32
    return %c0_i32, %c0_i32_0 : i32, i32
  }
  func.func @transform_39(%arg0: i32) -> (i32, i32) {
    %c0_i32 = arith.constant 0 : i32
    %c0_i32_0 = arith.constant 0 : i32
    %c0_i32_1 = arith.constant 0 : i32
    return %c0_i32, %c0_i32_0 : i32, i32
  }
  func.func @transform_40(%arg0: i32) -> (i32, i32) {
    %c0_i32 = arith.constant 0 : i32
    %c0_i32_0 = arith.constant 0 : i32
    %c0_i32_1 = arith.constant 0 : i32
    return %c0_i32, %c0_i32_0 : i32, i32
  }
  func.func @transform_41(%arg0: i32) -> (i32, i32, i32) {
    %c0_i32 = arith.constant 0 : i32
    %c0_i32_0 = arith.constant 0 : i32
    %c0_i32_1 = arith.constant 0 : i32
    return %arg0, %c0_i32, %c0_i32_0 : i32, i32, i32
  }
}

</mosaic_0001>

<llo_original>
// kernel: tpu_custom_call.1
$region0: #{tpu_custom_call.1}
  #allocation0 [shape = 'u32[]', space=smem, size = 0x4, offset = 0x4, fixed_abs, tag = 'smem constant byte address 0x4 - core index']
  #allocation1 [shape = 'u32[144,128]{1,0:T(1,128)}', space=vmem, size = 0x12000, scoped, tag = 'internal scratch']
  %s0 = inlined_call_operand.smem [shape: u32[42], index: -1, kind: input, shape index: {}]
  %s1 = sld [smem:[%s0]]
  %s2 = scalar_lea.smem %s0, 1
  %s3 = sld [smem:[%s2]]
  %s4 = scalar_lea.smem %s0, 2
  %s5 = sld [smem:[%s4]]
  %s6 = scalar_lea.smem %s0, 3
  %s7 = sld [smem:[%s6]]
  %s8 = scalar_lea.smem %s0, 4
  %s9 = sld [smem:[%s8]]
  %s10 = scalar_lea.smem %s0, 5
  %s11 = sld [smem:[%s10]]
  %s12 = scalar_lea.smem %s0, 6
  %s13 = sld [smem:[%s12]]
  %s14 = scalar_lea.smem %s0, 7
  %s15 = sld [smem:[%s14]]
  %s16 = scalar_lea.smem %s0, 8
  %s17 = sld [smem:[%s16]]
  %s18 = scalar_lea.smem %s0, 9
  %s19 = sld [smem:[%s18]]
  %s20 = scalar_lea.smem %s0, 10
  %s21 = sld [smem:[%s20]]
  %s22 = scalar_lea.smem %s0, 11
  %s23 = sld [smem:[%s22]]
  %s24 = scalar_lea.smem %s0, 12
  %s25 = sld [smem:[%s24]]
  %s26 = scalar_lea.smem %s0, 13
  %s27 = sld [smem:[%s26]]
  %s28 = scalar_lea.smem %s0, 14
  %s29 = sld [smem:[%s28]]
  %s30 = scalar_lea.smem %s0, 15
  %s31 = sld [smem:[%s30]]
  %s32 = scalar_lea.smem %s0, 16
  %s33 = sld [smem:[%s32]]
  %s34 = scalar_lea.smem %s0, 17
  %s35 = sld [smem:[%s34]]
  %s36 = scalar_lea.smem %s0, 18
  %s37 = sld [smem:[%s36]]
  %s38 = scalar_lea.smem %s0, 19
  %s39 = sld [smem:[%s38]]
  %s40 = scalar_lea.smem %s0, 20
  %s41 = sld [smem:[%s40]]
  %s42 = scalar_lea.smem %s0, 21
  %s43 = sld [smem:[%s42]]
  %s44 = scalar_lea.smem %s0, 22
  %s45 = sld [smem:[%s44]]
  %s46 = scalar_lea.smem %s0, 23
  %s47 = sld [smem:[%s46]]
  %s48 = scalar_lea.smem %s0, 24
  %s49 = sld [smem:[%s48]]
  %s50 = scalar_lea.smem %s0, 25
  %s51 = sld [smem:[%s50]]
  %s52 = scalar_lea.smem %s0, 26
  %s53 = sld [smem:[%s52]]
  %s54 = scalar_lea.smem %s0, 27
  %s55 = sld [smem:[%s54]]
  %s56 = scalar_lea.smem %s0, 28
  %s57 = sld [smem:[%s56]]
  %s58 = scalar_lea.smem %s0, 29
  %s59 = sld [smem:[%s58]]
  %s60 = scalar_lea.smem %s0, 30
  %s61 = sld [smem:[%s60]]
  %s62 = scalar_lea.smem %s0, 31
  %s63 = sld [smem:[%s62]]
  %s64 = scalar_lea.smem %s0, 32
  %s65 = sld [smem:[%s64]]
  %s66 = scalar_lea.smem %s0, 33
  %s67 = sld [smem:[%s66]]
  %s68 = scalar_lea.smem %s0, 34
  %s69 = sld [smem:[%s68]]
  %s70 = scalar_lea.smem %s0, 35
  %s71 = sld [smem:[%s70]]
  %s72 = scalar_lea.smem %s0, 36
  %s73 = sld [smem:[%s72]]
  %s74 = scalar_lea.smem %s0, 37
  %s75 = sld [smem:[%s74]]
  %s76 = scalar_lea.smem %s0, 38
  %s77 = sld [smem:[%s76]]
  %s78 = scalar_lea.smem %s0, 39
  %s79 = sld [smem:[%s78]]
  %s80 = scalar_lea.smem %s0, 40
  %s81 = sld [smem:[%s80]]
  %s82 = scalar_lea.smem %s0, 41
  %s83 = sld [smem:[%s82]]
  %s84 = sld [smem:[#allocation0]]
  $region241: #{tpu_custom_call.1} parent=0
    _
  %s86 = ssub.s32 1, %s84
  %s87 = scalar_select 0, %s86, %s84
  $region1: #{tpu_custom_call.1} parent=0
    #allocation2 [shape = 'u8[4096]{0}', space=vmem, size = 0x1000, scoped, tag = 'input window, operand 1, single buffered']
    #allocation3 [shape = 's32[2]{0}', space=sflag, size = 0x8, scoped, tag = 'scoped memory for tpu_custom_call.1']
    #allocation4 [shape = 's32[2]{0}', space=sflag, size = 0x8, scoped, tag = 'scoped memory for tpu_custom_call.1']
    #allocation5 [shape = 'u8[512]{0}', space=vmem, size = 0x400, scoped, tag = 'input window, operand 2, single buffered']
    #allocation6 [shape = 's32[1]{0}', space=sflag, size = 0x4, scoped, tag = 'scoped memory for tpu_custom_call.1']
    #allocation7 [shape = 'u8[512]{0}', space=vmem, size = 0x400, scoped, tag = 'input window, operand 4, single buffered']
    #allocation8 [shape = 'u8[512]{0}', space=vmem, size = 0x400, scoped, tag = 'input window, operand 6, single buffered']
    #allocation9 [shape = 's32[1]{0}', space=sflag, size = 0x4, scoped, tag = 'scoped memory for tpu_custom_call.1']
    #allocation10 [shape = 'u8[512]{0}', space=vmem, size = 0x400, scoped, tag = 'input window, operand 8, single buffered']
    #allocation11 [shape = 'u8[512]{0}', space=vmem, size = 0x400, scoped, tag = 'input window, operand 10, single buffered']
    #allocation12 [shape = 's32[1]{0}', space=sflag, size = 0x4, scoped, tag = 'scoped memory for tpu_custom_call.1']
    #allocation13 [shape = 'u8[512]{0}', space=vmem, size = 0x400, scoped, tag = 'input window, operand 11, single buffered']
    #allocation14 [shape = 'u8[512]{0}', space=vmem, size = 0x400, scoped, tag = 'input window, operand 12, single buffered']
    #allocation15 [shape = 's32[1]{0}', space=sflag, size = 0x4, scoped, tag = 'scoped memory for tpu_custom_call.1']
    #allocation16 [shape = 'u8[512]{0}', space=vmem, size = 0x400, scoped, tag = 'input window, operand 13, single buffered']
    #allocation17 [shape = 'u8[512]{0}', space=vmem, size = 0x400, scoped, tag = 'input window, operand 14, single buffered']
    #allocation18 [shape = 's32[1]{0}', space=sflag, size = 0x4, scoped, tag = 'scoped memory for tpu_custom_call.1']
    #allocation19 [shape = 'u8[512]{0}', space=vmem, size = 0x400, scoped, tag = 'input window, operand 16, single buffered']
    #allocation20 [shape = 'u8[1024]{0}', space=vmem, size = 0x400, scoped, tag = 'output window, operand 0']
    %88 = vsyncpa [#allocation3], 0
    %89 = vsyncpa [#allocation6], 0
    %90 = vsyncpa [#allocation9], 0
    %91 = vsyncpa [#allocation12], 0
    %92 = vsyncpa [#allocation15], 0
    %93 = vsyncpa [#allocation18], 0
    %94 = vsyncpa [#allocation4], 0
    %s95 = scalar_lea.sflag [#allocation4], 1
    %96 = vsyncpa %s95, 0
    loop: start=0, step=1, limit=4
    $region2: #{tpu_custom_call.1} parent=1 // loop_pre_header
      _
    $region3: #{tpu_custom_call.1} parent=1 // loop_header
      %s98 = sphi 0, %s102
      %p99 = scmp.ge.s32.totalorder %s98, 4
      %s108 = sphi 0, %s110
      %s111 = sphi 0, %s108
      %s112 = sphi 0, %s111
      %s128 = sphi 0, %s112
      %s132 = sphi 0, %s132
      %s134 = sphi 0, %s132
      %s135 = sphi 0, %s134
      %s149 = sphi 0, %s135
      %s153 = sphi 0, %s153
      %s155 = sphi 0, %s153
      %s156 = sphi 0, %s155
      %s170 = sphi 0, %s156
      %s174 = sphi 0, %s174
      %s176 = sphi 0, %s174
      %s177 = sphi 0, %s176
      %s191 = sphi 0, %s177
      %s195 = sphi 0, %s195
      %s197 = sphi 0, %s195
      %s198 = sphi 0, %s197
      %s212 = sphi 0, %s198
      %s216 = sphi 0, %s216
      %s218 = sphi 0, %s216
      %s219 = sphi 0, %s218
      %s233 = sphi 0, %s219
      %s237 = sphi 0, %s237
      %s239 = sphi 0, %s237
      %s240 = sphi 0, %s239
      %s254 = sphi 0, %s240
      %s258 = sphi 0, %s258
      %s260 = sphi 0, %s258
      %s261 = sphi 0, %s260
      %s275 = sphi 0, %s261
      %s279 = sphi 0, %s279
      %s281 = sphi 0, %s279
      %s282 = sphi 0, %s281
      %s296 = sphi 0, %s282
      %s300 = sphi 0, %s300
      %s302 = sphi 0, %s300
      %s303 = sphi 0, %s302
      %s317 = sphi 0, %s303
      %s321 = sphi 0, %s321
      %s323 = sphi 0, %s321
      %s324 = sphi 0, %s323
      %s338 = sphi 0, %s324
      %s342 = sphi 0, %s342
      %s344 = sphi 0, %s342
      %s345 = sphi 0, %s344
      %s359 = sphi 0, %s345
      %s363 = sphi 0, %s363
      %s365 = sphi 0, %s363
      %s366 = sphi 0, %s365
      %s380 = sphi 0, %s366
      %s384 = sphi 0, %s384
      %s386 = sphi 0, %s384
      %s387 = sphi 0, %s386
      %s401 = sphi 0, %s387
      %s405 = sphi 0, %s405
      %s407 = sphi 0, %s405
      %s408 = sphi 0, %s407
      %s422 = sphi 0, %s408
      %s426 = sphi 0, %s426
      %s428 = sphi 0, %s426
      %s429 = sphi 0, %s428
      %s443 = sphi 0, %s429
      %s447 = sphi 0, %s447
      %s449 = sphi 0, %s447
      %s450 = sphi 0, %s449
      %s464 = sphi 0, %s450
      %s468 = sphi 0, %s468
      %s470 = sphi 0, %s468
      %s471 = sphi 0, %s470
      %s485 = sphi 0, %s471
      %s489 = sphi 0, %s489
      %s491 = sphi 0, %s489
      %s492 = sphi 0, %s491
      %s506 = sphi 0, %s492
      %s510 = sphi 0, %s510
      %s512 = sphi 0, %s510
      %s513 = sphi 0, %s512
      %s527 = sphi 0, %s513
      %s531 = sphi 0, %s531
      %s533 = sphi 0, %s531
      %s534 = sphi 0, %s533
      %s548 = sphi 0, %s534
      %s552 = sphi 0, %s552
      %s554 = sphi 0, %s552
      %s555 = sphi 0, %s554
      %s569 = sphi 0, %s555
      %s573 = sphi 0, %s573
      %s575 = sphi 0, %s573
      %s576 = sphi 0, %s575
      %s590 = sphi 0, %s576
      %s594 = sphi 0, %s594
      %s596 = sphi 0, %s594
      %s597 = sphi 0, %s596
      %s611 = sphi 0, %s597
      %s615 = sphi 0, %s615
      %s617 = sphi 0, %s615
      %s618 = sphi 0, %s617
      %s632 = sphi 0, %s618
      %s636 = sphi 0, %s636
      %s638 = sphi 0, %s636
      %s639 = sphi 0, %s638
      %s653 = sphi 0, %s639
      %s657 = sphi 0, %s657
      %s659 = sphi 0, %s657
      %s660 = sphi 0, %s659
      %s674 = sphi 0, %s660
      %s678 = sphi 0, %s678
      %s680 = sphi 0, %s678
      %s681 = sphi 0, %s680
      %s695 = sphi 0, %s681
      %s699 = sphi 0, %s699
      %s701 = sphi 0, %s699
      %s702 = sphi 0, %s701
      %s716 = sphi 0, %s702
      %s720 = sphi 0, %s720
      %s722 = sphi 0, %s720
      %s723 = sphi 0, %s722
      %s737 = sphi 0, %s723
      %s741 = sphi 0, %s741
      %s743 = sphi 0, %s741
      %s744 = sphi 0, %s743
      %s758 = sphi 0, %s744
      %s762 = sphi 0, %s762
      %s764 = sphi 0, %s762
      %s765 = sphi 0, %s764
      %s779 = sphi 0, %s765
      %s783 = sphi 0, %s783
      %s785 = sphi 0, %s783
      %s786 = sphi 0, %s785
      %s800 = sphi 0, %s786
      %s804 = sphi 0, %s804
      %s806 = sphi 0, %s804
      %s807 = sphi 0, %s806
      %s821 = sphi 0, %s807
      %s825 = sphi 0, %s825
      %s827 = sphi 0, %s825
      %s828 = sphi 0, %s827
      %s842 = sphi 0, %s828
      %s846 = sphi 0, %s846
      %s848 = sphi 0, %s846
      %s849 = sphi 0, %s848
      %s863 = sphi 0, %s849
      %s867 = sphi 0, %s867
      %s869 = sphi 0, %s867
      %s870 = sphi 0, %s869
      %s884 = sphi 0, %s870
      %s888 = sphi 0, %s888
      %s890 = sphi 0, %s888
      %s891 = sphi 0, %s890
      %s905 = sphi 0, %s891
      %s909 = sphi 0, %s909
      %s911 = sphi 0, %s909
      %s912 = sphi 0, %s911
      %s926 = sphi 0, %s912
      %s930 = sphi 0, %s930
      %s932 = sphi 0, %s930
      %s933 = sphi 0, %s932
      %s947 = sphi 0, %s933
      %s951 = sphi 0, %s951
      %s953 = sphi 0, %s951
      %s954 = sphi 0, %s953
      %s968 = sphi 0, %s954
      %s974 = sphi 0, %s976
      %s977 = sphi 0, %s974
      %s978 = sphi 0, %s977
      %s994 = sphi 0, %s978
    $region4: #{tpu_custom_call.1} parent=1 // loop_header_branch
      %101 = sbr.rel (%p99) target = $region8
    $region5: #{tpu_custom_call.1} parent=1 // loop_body
      %s103 = ssub.s32 %s98, 1
      %s104 = ssub.s32 %s98, 2
      %s105 = sadd.s32 %s98, 1
      %s106 = ssub.s32 %s98, %s105
      %p107 = scmp.eq.s32.totalorder %s106, 0
      %s109 = sadd.s32 %s108, 1
      %s110 = scalar_select %p107, %s108, %s109
      %p113 = pneg %p107
      %p114 = scmp.eq.s32.totalorder %s98, 1
      %p115 = por %p113, %p114
      %p116 = scmp.ne.s32.totalorder %s108, %s111
      %p117 = scmp.eq.s32.totalorder %s98, 0
      %p118 = por %p116, %p117
      %p119 = scmp.ne.s32.totalorder %s108, %s111
      %p120 = scmp.eq.s32.totalorder %s103, 1
      %p121 = por %p119, %p120
      %p122 = scmp.ne.s32.totalorder %s111, %s112
      %p123 = scmp.eq.s32.totalorder %s103, 0
      %p124 = por %p122, %p123
      %p125 = scmp.ne.s32.totalorder %s111, %s112
      %p126 = scmp.eq.s32.totalorder %s104, 1
      %p127 = por %p125, %p126
      %p129 = scmp.ne.s32.totalorder %s112, %s128
      %p130 = scmp.eq.s32.totalorder %s104, 0
      %p131 = por %p129, %p130
      %s133 = sadd.s32 %s132, 1
      %p136 = scmp.eq.s32.totalorder %s98, 1
      %p137 = scmp.ne.s32.totalorder %s132, %s134
      %p138 = scmp.eq.s32.totalorder %s98, 0
      %p139 = por %p137, %p138
      %p140 = scmp.ne.s32.totalorder %s132, %s134
      %p141 = scmp.eq.s32.totalorder %s103, 1
      %p142 = por %p140, %p141
      %p143 = scmp.ne.s32.totalorder %s134, %s135
      %p144 = scmp.eq.s32.totalorder %s103, 0
      %p145 = por %p143, %p144
      %p146 = scmp.ne.s32.totalorder %s134, %s135
      %p147 = scmp.eq.s32.totalorder %s104, 1
      %p148 = por %p146, %p147
      %p150 = scmp.ne.s32.totalorder %s135, %s149
      %p151 = scmp.eq.s32.totalorder %s104, 0
      %p152 = por %p150, %p151
      %s154 = sadd.s32 %s153, 1
      %p157 = scmp.eq.s32.totalorder %s98, 1
      %p158 = scmp.ne.s32.totalorder %s153, %s155
      %p159 = scmp.eq.s32.totalorder %s98, 0
      %p160 = por %p158, %p159
      %p161 = scmp.ne.s32.totalorder %s153, %s155
      %p162 = scmp.eq.s32.totalorder %s103, 1
      %p163 = por %p161, %p162
      %p164 = scmp.ne.s32.totalorder %s155, %s156
      %p165 = scmp.eq.s32.totalorder %s103, 0
      %p166 = por %p164, %p165
      %p167 = scmp.ne.s32.totalorder %s155, %s156
      %p168 = scmp.eq.s32.totalorder %s104, 1
      %p169 = por %p167, %p168
      %p171 = scmp.ne.s32.totalorder %s156, %s170
      %p172 = scmp.eq.s32.totalorder %s104, 0
      %p173 = por %p171, %p172
      %s175 = sadd.s32 %s174, 1
      %p178 = scmp.eq.s32.totalorder %s98, 1
      %p179 = scmp.ne.s32.totalorder %s174, %s176
      %p180 = scmp.eq.s32.totalorder %s98, 0
      %p181 = por %p179, %p180
      %p182 = scmp.ne.s32.totalorder %s174, %s176
      %p183 = scmp.eq.s32.totalorder %s103, 1
      %p184 = por %p182, %p183
      %p185 = scmp.ne.s32.totalorder %s176, %s177
      %p186 = scmp.eq.s32.totalorder %s103, 0
      %p187 = por %p185, %p186
      %p188 = scmp.ne.s32.totalorder %s176, %s177
      %p189 = scmp.eq.s32.totalorder %s104, 1
      %p190 = por %p188, %p189
      %p192 = scmp.ne.s32.totalorder %s177, %s191
      %p193 = scmp.eq.s32.totalorder %s104, 0
      %p194 = por %p192, %p193
      %s196 = sadd.s32 %s195, 1
      %p199 = scmp.eq.s32.totalorder %s98, 1
      %p200 = scmp.ne.s32.totalorder %s195, %s197
      %p201 = scmp.eq.s32.totalorder %s98, 0
      %p202 = por %p200, %p201
      %p203 = scmp.ne.s32.totalorder %s195, %s197
      %p204 = scmp.eq.s32.totalorder %s103, 1
      %p205 = por %p203, %p204
      %p206 = scmp.ne.s32.totalorder %s197, %s198
      %p207 = scmp.eq.s32.totalorder %s103, 0
      %p208 = por %p206, %p207
      %p209 = scmp.ne.s32.totalorder %s197, %s198
      %p210 = scmp.eq.s32.totalorder %s104, 1
      %p211 = por %p209, %p210
      %p213 = scmp.ne.s32.totalorder %s198, %s212
      %p214 = scmp.eq.s32.totalorder %s104, 0
      %p215 = por %p213, %p214
      %s217 = sadd.s32 %s216, 1
      %p220 = scmp.eq.s32.totalorder %s98, 1
      %p221 = scmp.ne.s32.totalorder %s216, %s218
      %p222 = scmp.eq.s32.totalorder %s98, 0
      %p223 = por %p221, %p222
      %p224 = scmp.ne.s32.totalorder %s216, %s218
      %p225 = scmp.eq.s32.totalorder %s103, 1
      %p226 = por %p224, %p225
      %p227 = scmp.ne.s32.totalorder %s218, %s219
      %p228 = scmp.eq.s32.totalorder %s103, 0
      %p229 = por %p227, %p228
      %p230 = scmp.ne.s32.totalorder %s218, %s219
      %p231 = scmp.eq.s32.totalorder %s104, 1
      %p232 = por %p230, %p231
      %p234 = scmp.ne.s32.totalorder %s219, %s233
      %p235 = scmp.eq.s32.totalorder %s104, 0
      %p236 = por %p234, %p235
      %s238 = sadd.s32 %s237, 1
      %p241 = scmp.eq.s32.totalorder %s98, 1
      %p242 = scmp.ne.s32.totalorder %s237, %s239
      %p243 = scmp.eq.s32.totalorder %s98, 0
      %p244 = por %p242, %p243
      %p245 = scmp.ne.s32.totalorder %s237, %s239
      %p246 = scmp.eq.s32.totalorder %s103, 1
      %p247 = por %p245, %p246
      %p248 = scmp.ne.s32.totalorder %s239, %s240
      %p249 = scmp.eq.s32.totalorder %s103, 0
      %p250 = por %p248, %p249
      %p251 = scmp.ne.s32.totalorder %s239, %s240
      %p252 = scmp.eq.s32.totalorder %s104, 1
      %p253 = por %p251, %p252
      %p255 = scmp.ne.s32.totalorder %s240, %s254
      %p256 = scmp.eq.s32.totalorder %s104, 0
      %p257 = por %p255, %p256
      %s259 = sadd.s32 %s258, 1
      %p262 = scmp.eq.s32.totalorder %s98, 1
      %p263 = scmp.ne.s32.totalorder %s258, %s260
      %p264 = scmp.eq.s32.totalorder %s98, 0
      %p265 = por %p263, %p264
      %p266 = scmp.ne.s32.totalorder %s258, %s260
      %p267 = scmp.eq.s32.totalorder %s103, 1
      %p268 = por %p266, %p267
      %p269 = scmp.ne.s32.totalorder %s260, %s261
      %p270 = scmp.eq.s32.totalorder %s103, 0
      %p271 = por %p269, %p270
      %p272 = scmp.ne.s32.totalorder %s260, %s261
      %p273 = scmp.eq.s32.totalorder %s104, 1
      %p274 = por %p272, %p273
      %p276 = scmp.ne.s32.totalorder %s261, %s275
      %p277 = scmp.eq.s32.totalorder %s104, 0
      %p278 = por %p276, %p277
      %s280 = sadd.s32 %s279, 1
      %p283 = scmp.eq.s32.totalorder %s98, 1
      %p284 = scmp.ne.s32.totalorder %s279, %s281
      %p285 = scmp.eq.s32.totalorder %s98, 0
      %p286 = por %p284, %p285
      %p287 = scmp.ne.s32.totalorder %s279, %s281
      %p288 = scmp.eq.s32.totalorder %s103, 1
      %p289 = por %p287, %p288
      %p290 = scmp.ne.s32.totalorder %s281, %s282
      %p291 = scmp.eq.s32.totalorder %s103, 0
      %p292 = por %p290, %p291
      %p293 = scmp.ne.s32.totalorder %s281, %s282
      %p294 = scmp.eq.s32.totalorder %s104, 1
      %p295 = por %p293, %p294
      %p297 = scmp.ne.s32.totalorder %s282, %s296
      %p298 = scmp.eq.s32.totalorder %s104, 0
      %p299 = por %p297, %p298
      %s301 = sadd.s32 %s300, 1
      %p304 = scmp.eq.s32.totalorder %s98, 1
      %p305 = scmp.ne.s32.totalorder %s300, %s302
      %p306 = scmp.eq.s32.totalorder %s98, 0
      %p307 = por %p305, %p306
      %p308 = scmp.ne.s32.totalorder %s300, %s302
      %p309 = scmp.eq.s32.totalorder %s103, 1
      %p310 = por %p308, %p309
      %p311 = scmp.ne.s32.totalorder %s302, %s303
      %p312 = scmp.eq.s32.totalorder %s103, 0
      %p313 = por %p311, %p312
      %p314 = scmp.ne.s32.totalorder %s302, %s303
      %p315 = scmp.eq.s32.totalorder %s104, 1
      %p316 = por %p314, %p315
      %p318 = scmp.ne.s32.totalorder %s303, %s317
      %p319 = scmp.eq.s32.totalorder %s104, 0
      %p320 = por %p318, %p319
      %s322 = sadd.s32 %s321, 1
      %p325 = scmp.eq.s32.totalorder %s98, 1
      %p326 = scmp.ne.s32.totalorder %s321, %s323
      %p327 = scmp.eq.s32.totalorder %s98, 0
      %p328 = por %p326, %p327
      %p329 = scmp.ne.s32.totalorder %s321, %s323
      %p330 = scmp.eq.s32.totalorder %s103, 1
      %p331 = por %p329, %p330
      %p332 = scmp.ne.s32.totalorder %s323, %s324
      %p333 = scmp.eq.s32.totalorder %s103, 0
      %p334 = por %p332, %p333
      %p335 = scmp.ne.s32.totalorder %s323, %s324
      %p336 = scmp.eq.s32.totalorder %s104, 1
      %p337 = por %p335, %p336
      %p339 = scmp.ne.s32.totalorder %s324, %s338
      %p340 = scmp.eq.s32.totalorder %s104, 0
      %p341 = por %p339, %p340
      %s343 = sadd.s32 %s342, 1
      %p346 = scmp.eq.s32.totalorder %s98, 1
      %p347 = scmp.ne.s32.totalorder %s342, %s344
      %p348 = scmp.eq.s32.totalorder %s98, 0
      %p349 = por %p347, %p348
      %p350 = scmp.ne.s32.totalorder %s342, %s344
      %p351 = scmp.eq.s32.totalorder %s103, 1
      %p352 = por %p350, %p351
      %p353 = scmp.ne.s32.totalorder %s344, %s345
      %p354 = scmp.eq.s32.totalorder %s103, 0
      %p355 = por %p353, %p354
      %p356 = scmp.ne.s32.totalorder %s344, %s345
      %p357 = scmp.eq.s32.totalorder %s104, 1
      %p358 = por %p356, %p357
      %p360 = scmp.ne.s32.totalorder %s345, %s359
      %p361 = scmp.eq.s32.totalorder %s104, 0
      %p362 = por %p360, %p361
      %s364 = sadd.s32 %s363, 1
      %p367 = scmp.eq.s32.totalorder %s98, 1
      %p368 = scmp.ne.s32.totalorder %s363, %s365
      %p369 = scmp.eq.s32.totalorder %s98, 0
      %p370 = por %p368, %p369
      %p371 = scmp.ne.s32.totalorder %s363, %s365
      %p372 = scmp.eq.s32.totalorder %s103, 1
      %p373 = por %p371, %p372
      %p374 = scmp.ne.s32.totalorder %s365, %s366
      %p375 = scmp.eq.s32.totalorder %s103, 0
      %p376 = por %p374, %p375
      %p377 = scmp.ne.s32.totalorder %s365, %s366
      %p378 = scmp.eq.s32.totalorder %s104, 1
      %p379 = por %p377, %p378
      %p381 = scmp.ne.s32.totalorder %s366, %s380
      %p382 = scmp.eq.s32.totalorder %s104, 0
      %p383 = por %p381, %p382
      %s385 = sadd.s32 %s384, 1
      %p388 = scmp.eq.s32.totalorder %s98, 1
      %p389 = scmp.ne.s32.totalorder %s384, %s386
      %p390 = scmp.eq.s32.totalorder %s98, 0
      %p391 = por %p389, %p390
      %p392 = scmp.ne.s32.totalorder %s384, %s386
      %p393 = scmp.eq.s32.totalorder %s103, 1
      %p394 = por %p392, %p393
      %p395 = scmp.ne.s32.totalorder %s386, %s387
      %p396 = scmp.eq.s32.totalorder %s103, 0
      %p397 = por %p395, %p396
      %p398 = scmp.ne.s32.totalorder %s386, %s387
      %p399 = scmp.eq.s32.totalorder %s104, 1
      %p400 = por %p398, %p399
      %p402 = scmp.ne.s32.totalorder %s387, %s401
      %p403 = scmp.eq.s32.totalorder %s104, 0
      %p404 = por %p402, %p403
      %s406 = sadd.s32 %s405, 1
      %p409 = scmp.eq.s32.totalorder %s98, 1
      %p410 = scmp.ne.s32.totalorder %s405, %s407
      %p411 = scmp.eq.s32.totalorder %s98, 0
      %p412 = por %p410, %p411
      %p413 = scmp.ne.s32.totalorder %s405, %s407
      %p414 = scmp.eq.s32.totalorder %s103, 1
      %p415 = por %p413, %p414
      %p416 = scmp.ne.s32.totalorder %s407, %s408
      %p417 = scmp.eq.s32.totalorder %s103, 0
      %p418 = por %p416, %p417
      %p419 = scmp.ne.s32.totalorder %s407, %s408
      %p420 = scmp.eq.s32.totalorder %s104, 1
      %p421 = por %p419, %p420
      %p423 = scmp.ne.s32.totalorder %s408, %s422
      %p424 = scmp.eq.s32.totalorder %s104, 0
      %p425 = por %p423, %p424
      %s427 = sadd.s32 %s426, 1
      %p430 = scmp.eq.s32.totalorder %s98, 1
      %p431 = scmp.ne.s32.totalorder %s426, %s428
      %p432 = scmp.eq.s32.totalorder %s98, 0
      %p433 = por %p431, %p432
      %p434 = scmp.ne.s32.totalorder %s426, %s428
      %p435 = scmp.eq.s32.totalorder %s103, 1
      %p436 = por %p434, %p435
      %p437 = scmp.ne.s32.totalorder %s428, %s429
      %p438 = scmp.eq.s32.totalorder %s103, 0
      %p439 = por %p437, %p438
      %p440 = scmp.ne.s32.totalorder %s428, %s429
      %p441 = scmp.eq.s32.totalorder %s104, 1
      %p442 = por %p440, %p441
      %p444 = scmp.ne.s32.totalorder %s429, %s443
      %p445 = scmp.eq.s32.totalorder %s104, 0
      %p446 = por %p444, %p445
      %s448 = sadd.s32 %s447, 1
      %p451 = scmp.eq.s32.totalorder %s98, 1
      %p452 = scmp.ne.s32.totalorder %s447, %s449
      %p453 = scmp.eq.s32.totalorder %s98, 0
      %p454 = por %p452, %p453
      %p455 = scmp.ne.s32.totalorder %s447, %s449
      %p456 = scmp.eq.s32.totalorder %s103, 1
      %p457 = por %p455, %p456
      %p458 = scmp.ne.s32.totalorder %s449, %s450
      %p459 = scmp.eq.s32.totalorder %s103, 0
      %p460 = por %p458, %p459
      %p461 = scmp.ne.s32.totalorder %s449, %s450
      %p462 = scmp.eq.s32.totalorder %s104, 1
      %p463 = por %p461, %p462
      %p465 = scmp.ne.s32.totalorder %s450, %s464
      %p466 = scmp.eq.s32.totalorder %s104, 0
      %p467 = por %p465, %p466
      %s469 = sadd.s32 %s468, 1
      %p472 = scmp.eq.s32.totalorder %s98, 1
      %p473 = scmp.ne.s32.totalorder %s468, %s470
      %p474 = scmp.eq.s32.totalorder %s98, 0
      %p475 = por %p473, %p474
      %p476 = scmp.ne.s32.totalorder %s468, %s470
      %p477 = scmp.eq.s32.totalorder %s103, 1
      %p478 = por %p476, %p477
      %p479 = scmp.ne.s32.totalorder %s470, %s471
      %p480 = scmp.eq.s32.totalorder %s103, 0
      %p481 = por %p479, %p480
      %p482 = scmp.ne.s32.totalorder %s470, %s471
      %p483 = scmp.eq.s32.totalorder %s104, 1
      %p484 = por %p482, %p483
      %p486 = scmp.ne.s32.totalorder %s471, %s485
      %p487 = scmp.eq.s32.totalorder %s104, 0
      %p488 = por %p486, %p487
      %s490 = sadd.s32 %s489, 1
      %p493 = scmp.eq.s32.totalorder %s98, 1
      %p494 = scmp.ne.s32.totalorder %s489, %s491
      %p495 = scmp.eq.s32.totalorder %s98, 0
      %p496 = por %p494, %p495
      %p497 = scmp.ne.s32.totalorder %s489, %s491
      %p498 = scmp.eq.s32.totalorder %s103, 1
      %p499 = por %p497, %p498
      %p500 = scmp.ne.s32.totalorder %s491, %s492
      %p501 = scmp.eq.s32.totalorder %s103, 0
      %p502 = por %p500, %p501
      %p503 = scmp.ne.s32.totalorder %s491, %s492
      %p504 = scmp.eq.s32.totalorder %s104, 1
      %p505 = por %p503, %p504
      %p507 = scmp.ne.s32.totalorder %s492, %s506
      %p508 = scmp.eq.s32.totalorder %s104, 0
      %p509 = por %p507, %p508
      %s511 = sadd.s32 %s510, 1
      %p514 = scmp.eq.s32.totalorder %s98, 1
      %p515 = scmp.ne.s32.totalorder %s510, %s512
      %p516 = scmp.eq.s32.totalorder %s98, 0
      %p517 = por %p515, %p516
      %p518 = scmp.ne.s32.totalorder %s510, %s512
      %p519 = scmp.eq.s32.totalorder %s103, 1
      %p520 = por %p518, %p519
      %p521 = scmp.ne.s32.totalorder %s512, %s513
      %p522 = scmp.eq.s32.totalorder %s103, 0
      %p523 = por %p521, %p522
      %p524 = scmp.ne.s32.totalorder %s512, %s513
      %p525 = scmp.eq.s32.totalorder %s104, 1
      %p526 = por %p524, %p525
      %p528 = scmp.ne.s32.totalorder %s513, %s527
      %p529 = scmp.eq.s32.totalorder %s104, 0
      %p530 = por %p528, %p529
      %s532 = sadd.s32 %s531, 1
      %p535 = scmp.eq.s32.totalorder %s98, 1
      %p536 = scmp.ne.s32.totalorder %s531, %s533
      %p537 = scmp.eq.s32.totalorder %s98, 0
      %p538 = por %p536, %p537
      %p539 = scmp.ne.s32.totalorder %s531, %s533
      %p540 = scmp.eq.s32.totalorder %s103, 1
      %p541 = por %p539, %p540
      %p542 = scmp.ne.s32.totalorder %s533, %s534
      %p543 = scmp.eq.s32.totalorder %s103, 0
      %p544 = por %p542, %p543
      %p545 = scmp.ne.s32.totalorder %s533, %s534
      %p546 = scmp.eq.s32.totalorder %s104, 1
      %p547 = por %p545, %p546
      %p549 = scmp.ne.s32.totalorder %s534, %s548
      %p550 = scmp.eq.s32.totalorder %s104, 0
      %p551 = por %p549, %p550
      %s553 = sadd.s32 %s552, 1
      %p556 = scmp.eq.s32.totalorder %s98, 1
      %p557 = scmp.ne.s32.totalorder %s552, %s554
      %p558 = scmp.eq.s32.totalorder %s98, 0
      %p559 = por %p557, %p558
      %p560 = scmp.ne.s32.totalorder %s552, %s554
      %p561 = scmp.eq.s32.totalorder %s103, 1
      %p562 = por %p560, %p561
      %p563 = scmp.ne.s32.totalorder %s554, %s555
      %p564 = scmp.eq.s32.totalorder %s103, 0
      %p565 = por %p563, %p564
      %p566 = scmp.ne.s32.totalorder %s554, %s555
      %p567 = scmp.eq.s32.totalorder %s104, 1
      %p568 = por %p566, %p567
      %p570 = scmp.ne.s32.totalorder %s555, %s569
      %p571 = scmp.eq.s32.totalorder %s104, 0
      %p572 = por %p570, %p571
      %s574 = sadd.s32 %s573, 1
      %p577 = scmp.eq.s32.totalorder %s98, 1
      %p578 = scmp.ne.s32.totalorder %s573, %s575
      %p579 = scmp.eq.s32.totalorder %s98, 0
      %p580 = por %p578, %p579
      %p581 = scmp.ne.s32.totalorder %s573, %s575
      %p582 = scmp.eq.s32.totalorder %s103, 1
      %p583 = por %p581, %p582
      %p584 = scmp.ne.s32.totalorder %s575, %s576
      %p585 = scmp.eq.s32.totalorder %s103, 0
      %p586 = por %p584, %p585
      %p587 = scmp.ne.s32.totalorder %s575, %s576
      %p588 = scmp.eq.s32.totalorder %s104, 1
      %p589 = por %p587, %p588
      %p591 = scmp.ne.s32.totalorder %s576, %s590
      %p592 = scmp.eq.s32.totalorder %s104, 0
      %p593 = por %p591, %p592
      %s595 = sadd.s32 %s594, 1
      %p598 = scmp.eq.s32.totalorder %s98, 1
      %p599 = scmp.ne.s32.totalorder %s594, %s596
      %p600 = scmp.eq.s32.totalorder %s98, 0
      %p601 = por %p599, %p600
      %p602 = scmp.ne.s32.totalorder %s594, %s596
      %p603 = scmp.eq.s32.totalorder %s103, 1
      %p604 = por %p602, %p603
      %p605 = scmp.ne.s32.totalorder %s596, %s597
      %p606 = scmp.eq.s32.totalorder %s103, 0
      %p607 = por %p605, %p606
      %p608 = scmp.ne.s32.totalorder %s596, %s597
      %p609 = scmp.eq.s32.totalorder %s104, 1
      %p610 = por %p608, %p609
      %p612 = scmp.ne.s32.totalorder %s597, %s611
      %p613 = scmp.eq.s32.totalorder %s104, 0
      %p614 = por %p612, %p613
      %s616 = sadd.s32 %s615, 1
      %p619 = scmp.eq.s32.totalorder %s98, 1
      %p620 = scmp.ne.s32.totalorder %s615, %s617
      %p621 = scmp.eq.s32.totalorder %s98, 0
      %p622 = por %p620, %p621
      %p623 = scmp.ne.s32.totalorder %s615, %s617
      %p624 = scmp.eq.s32.totalorder %s103, 1
      %p625 = por %p623, %p624
      %p626 = scmp.ne.s32.totalorder %s617, %s618
      %p627 = scmp.eq.s32.totalorder %s103, 0
      %p628 = por %p626, %p627
      %p629 = scmp.ne.s32.totalorder %s617, %s618
      %p630 = scmp.eq.s32.totalorder %s104, 1
      %p631 = por %p629, %p630
      %p633 = scmp.ne.s32.totalorder %s618, %s632
      %p634 = scmp.eq.s32.totalorder %s104, 0
      %p635 = por %p633, %p634
      %s637 = sadd.s32 %s636, 1
      %p640 = scmp.eq.s32.totalorder %s98, 1
      %p641 = scmp.ne.s32.totalorder %s636, %s638
      %p642 = scmp.eq.s32.totalorder %s98, 0
      %p643 = por %p641, %p642
      %p644 = scmp.ne.s32.totalorder %s636, %s638
      %p645 = scmp.eq.s32.totalorder %s103, 1
      %p646 = por %p644, %p645
      %p647 = scmp.ne.s32.totalorder %s638, %s639
      %p648 = scmp.eq.s32.totalorder %s103, 0
      %p649 = por %p647, %p648
      %p650 = scmp.ne.s32.totalorder %s638, %s639
      %p651 = scmp.eq.s32.totalorder %s104, 1
      %p652 = por %p650, %p651
      %p654 = scmp.ne.s32.totalorder %s639, %s653
      %p655 = scmp.eq.s32.totalorder %s104, 0
      %p656 = por %p654, %p655
      %s658 = sadd.s32 %s657, 1
      %p661 = scmp.eq.s32.totalorder %s98, 1
      %p662 = scmp.ne.s32.totalorder %s657, %s659
      %p663 = scmp.eq.s32.totalorder %s98, 0
      %p664 = por %p662, %p663
      %p665 = scmp.ne.s32.totalorder %s657, %s659
      %p666 = scmp.eq.s32.totalorder %s103, 1
      %p667 = por %p665, %p666
      %p668 = scmp.ne.s32.totalorder %s659, %s660
      %p669 = scmp.eq.s32.totalorder %s103, 0
      %p670 = por %p668, %p669
      %p671 = scmp.ne.s32.totalorder %s659, %s660
      %p672 = scmp.eq.s32.totalorder %s104, 1
      %p673 = por %p671, %p672
      %p675 = scmp.ne.s32.totalorder %s660, %s674
      %p676 = scmp.eq.s32.totalorder %s104, 0
      %p677 = por %p675, %p676
      %s679 = sadd.s32 %s678, 1
      %p682 = scmp.eq.s32.totalorder %s98, 1
      %p683 = scmp.ne.s32.totalorder %s678, %s680
      %p684 = scmp.eq.s32.totalorder %s98, 0
      %p685 = por %p683, %p684
      %p686 = scmp.ne.s32.totalorder %s678, %s680
      %p687 = scmp.eq.s32.totalorder %s103, 1
      %p688 = por %p686, %p687
      %p689 = scmp.ne.s32.totalorder %s680, %s681
      %p690 = scmp.eq.s32.totalorder %s103, 0
      %p691 = por %p689, %p690
      %p692 = scmp.ne.s32.totalorder %s680, %s681
      %p693 = scmp.eq.s32.totalorder %s104, 1
      %p694 = por %p692, %p693
      %p696 = scmp.ne.s32.totalorder %s681, %s695
      %p697 = scmp.eq.s32.totalorder %s104, 0
      %p698 = por %p696, %p697
      %s700 = sadd.s32 %s699, 1
      %p703 = scmp.eq.s32.totalorder %s98, 1
      %p704 = scmp.ne.s32.totalorder %s699, %s701
      %p705 = scmp.eq.s32.totalorder %s98, 0
      %p706 = por %p704, %p705
      %p707 = scmp.ne.s32.totalorder %s699, %s701
      %p708 = scmp.eq.s32.totalorder %s103, 1
      %p709 = por %p707, %p708
      %p710 = scmp.ne.s32.totalorder %s701, %s702
      %p711 = scmp.eq.s32.totalorder %s103, 0
      %p712 = por %p710, %p711
      %p713 = scmp.ne.s32.totalorder %s701, %s702
      %p714 = scmp.eq.s32.totalorder %s104, 1
      %p715 = por %p713, %p714
      %p717 = scmp.ne.s32.totalorder %s702, %s716
      %p718 = scmp.eq.s32.totalorder %s104, 0
      %p719 = por %p717, %p718
      %s721 = sadd.s32 %s720, 1
      %p724 = scmp.eq.s32.totalorder %s98, 1
      %p725 = scmp.ne.s32.totalorder %s720, %s722
      %p726 = scmp.eq.s32.totalorder %s98, 0
      %p727 = por %p725, %p726
      %p728 = scmp.ne.s32.totalorder %s720, %s722
      %p729 = scmp.eq.s32.totalorder %s103, 1
      %p730 = por %p728, %p729
      %p731 = scmp.ne.s32.totalorder %s722, %s723
      %p732 = scmp.eq.s32.totalorder %s103, 0
      %p733 = por %p731, %p732
      %p734 = scmp.ne.s32.totalorder %s722, %s723
      %p735 = scmp.eq.s32.totalorder %s104, 1
      %p736 = por %p734, %p735
      %p738 = scmp.ne.s32.totalorder %s723, %s737
      %p739 = scmp.eq.s32.totalorder %s104, 0
      %p740 = por %p738, %p739
      %s742 = sadd.s32 %s741, 1
      %p745 = scmp.eq.s32.totalorder %s98, 1
      %p746 = scmp.ne.s32.totalorder %s741, %s743
      %p747 = scmp.eq.s32.totalorder %s98, 0
      %p748 = por %p746, %p747
      %p749 = scmp.ne.s32.totalorder %s741, %s743
      %p750 = scmp.eq.s32.totalorder %s103, 1
      %p751 = por %p749, %p750
      %p752 = scmp.ne.s32.totalorder %s743, %s744
      %p753 = scmp.eq.s32.totalorder %s103, 0
      %p754 = por %p752, %p753
      %p755 = scmp.ne.s32.totalorder %s743, %s744
      %p756 = scmp.eq.s32.totalorder %s104, 1
      %p757 = por %p755, %p756
      %p759 = scmp.ne.s32.totalorder %s744, %s758
      %p760 = scmp.eq.s32.totalorder %s104, 0
      %p761 = por %p759, %p760
      %s763 = sadd.s32 %s762, 1
      %p766 = scmp.eq.s32.totalorder %s98, 1
      %p767 = scmp.ne.s32.totalorder %s762, %s764
      %p768 = scmp.eq.s32.totalorder %s98, 0
      %p769 = por %p767, %p768
      %p770 = scmp.ne.s32.totalorder %s762, %s764
      %p771 = scmp.eq.s32.totalorder %s103, 1
      %p772 = por %p770, %p771
      %p773 = scmp.ne.s32.totalorder %s764, %s765
      %p774 = scmp.eq.s32.totalorder %s103, 0
      %p775 = por %p773, %p774
      %p776 = scmp.ne.s32.totalorder %s764, %s765
      %p777 = scmp.eq.s32.totalorder %s104, 1
      %p778 = por %p776, %p777
      %p780 = scmp.ne.s32.totalorder %s765, %s779
      %p781 = scmp.eq.s32.totalorder %s104, 0
      %p782 = por %p780, %p781
      %s784 = sadd.s32 %s783, 1
      %p787 = scmp.eq.s32.totalorder %s98, 1
      %p788 = scmp.ne.s32.totalorder %s783, %s785
      %p789 = scmp.eq.s32.totalorder %s98, 0
      %p790 = por %p788, %p789
      %p791 = scmp.ne.s32.totalorder %s783, %s785
      %p792 = scmp.eq.s32.totalorder %s103, 1
      %p793 = por %p791, %p792
      %p794 = scmp.ne.s32.totalorder %s785, %s786
      %p795 = scmp.eq.s32.totalorder %s103, 0
      %p796 = por %p794, %p795
      %p797 = scmp.ne.s32.totalorder %s785, %s786
      %p798 = scmp.eq.s32.totalorder %s104, 1
      %p799 = por %p797, %p798
      %p801 = scmp.ne.s32.totalorder %s786, %s800
      %p802 = scmp.eq.s32.totalorder %s104, 0
      %p803 = por %p801, %p802
      %s805 = sadd.s32 %s804, 1
      %p808 = scmp.eq.s32.totalorder %s98, 1
      %p809 = scmp.ne.s32.totalorder %s804, %s806
      %p810 = scmp.eq.s32.totalorder %s98, 0
      %p811 = por %p809, %p810
      %p812 = scmp.ne.s32.totalorder %s804, %s806
      %p813 = scmp.eq.s32.totalorder %s103, 1
      %p814 = por %p812, %p813
      %p815 = scmp.ne.s32.totalorder %s806, %s807
      %p816 = scmp.eq.s32.totalorder %s103, 0
      %p817 = por %p815, %p816
      %p818 = scmp.ne.s32.totalorder %s806, %s807
      %p819 = scmp.eq.s32.totalorder %s104, 1
      %p820 = por %p818, %p819
      %p822 = scmp.ne.s32.totalorder %s807, %s821
      %p823 = scmp.eq.s32.totalorder %s104, 0
      %p824 = por %p822, %p823
      %s826 = sadd.s32 %s825, 1
      %p829 = scmp.eq.s32.totalorder %s98, 1
      %p830 = scmp.ne.s32.totalorder %s825, %s827
      %p831 = scmp.eq.s32.totalorder %s98, 0
      %p832 = por %p830, %p831
      %p833 = scmp.ne.s32.totalorder %s825, %s827
      %p834 = scmp.eq.s32.totalorder %s103, 1
      %p835 = por %p833, %p834
      %p836 = scmp.ne.s32.totalorder %s827, %s828
      %p837 = scmp.eq.s32.totalorder %s103, 0
      %p838 = por %p836, %p837
      %p839 = scmp.ne.s32.totalorder %s827, %s828
      %p840 = scmp.eq.s32.totalorder %s104, 1
      %p841 = por %p839, %p840
      %p843 = scmp.ne.s32.totalorder %s828, %s842
      %p844 = scmp.eq.s32.totalorder %s104, 0
      %p845 = por %p843, %p844
      %s847 = sadd.s32 %s846, 1
      %p850 = scmp.eq.s32.totalorder %s98, 1
      %p851 = scmp.ne.s32.totalorder %s846, %s848
      %p852 = scmp.eq.s32.totalorder %s98, 0
      %p853 = por %p851, %p852
      %p854 = scmp.ne.s32.totalorder %s846, %s848
      %p855 = scmp.eq.s32.totalorder %s103, 1
      %p856 = por %p854, %p855
      %p857 = scmp.ne.s32.totalorder %s848, %s849
      %p858 = scmp.eq.s32.totalorder %s103, 0
      %p859 = por %p857, %p858
      %p860 = scmp.ne.s32.totalorder %s848, %s849
      %p861 = scmp.eq.s32.totalorder %s104, 1
      %p862 = por %p860, %p861
      %p864 = scmp.ne.s32.totalorder %s849, %s863
      %p865 = scmp.eq.s32.totalorder %s104, 0
      %p866 = por %p864, %p865
      %s868 = sadd.s32 %s867, 1
      %p871 = scmp.eq.s32.totalorder %s98, 1
      %p872 = scmp.ne.s32.totalorder %s867, %s869
      %p873 = scmp.eq.s32.totalorder %s98, 0
      %p874 = por %p872, %p873
      %p875 = scmp.ne.s32.totalorder %s867, %s869
      %p876 = scmp.eq.s32.totalorder %s103, 1
      %p877 = por %p875, %p876
      %p878 = scmp.ne.s32.totalorder %s869, %s870
      %p879 = scmp.eq.s32.totalorder %s103, 0
      %p880 = por %p878, %p879
      %p881 = scmp.ne.s32.totalorder %s869, %s870
      %p882 = scmp.eq.s32.totalorder %s104, 1
      %p883 = por %p881, %p882
      %p885 = scmp.ne.s32.totalorder %s870, %s884
      %p886 = scmp.eq.s32.totalorder %s104, 0
      %p887 = por %p885, %p886
      %s889 = sadd.s32 %s888, 1
      %p892 = scmp.eq.s32.totalorder %s98, 1
      %p893 = scmp.ne.s32.totalorder %s888, %s890
      %p894 = scmp.eq.s32.totalorder %s98, 0
      %p895 = por %p893, %p894
      %p896 = scmp.ne.s32.totalorder %s888, %s890
      %p897 = scmp.eq.s32.totalorder %s103, 1
      %p898 = por %p896, %p897
      %p899 = scmp.ne.s32.totalorder %s890, %s891
      %p900 = scmp.eq.s32.totalorder %s103, 0
      %p901 = por %p899, %p900
      %p902 = scmp.ne.s32.totalorder %s890, %s891
      %p903 = scmp.eq.s32.totalorder %s104, 1
      %p904 = por %p902, %p903
      %p906 = scmp.ne.s32.totalorder %s891, %s905
      %p907 = scmp.eq.s32.totalorder %s104, 0
      %p908 = por %p906, %p907
      %s910 = sadd.s32 %s909, 1
      %p913 = scmp.eq.s32.totalorder %s98, 1
      %p914 = scmp.ne.s32.totalorder %s909, %s911
      %p915 = scmp.eq.s32.totalorder %s98, 0
      %p916 = por %p914, %p915
      %p917 = scmp.ne.s32.totalorder %s909, %s911
      %p918 = scmp.eq.s32.totalorder %s103, 1
      %p919 = por %p917, %p918
      %p920 = scmp.ne.s32.totalorder %s911, %s912
      %p921 = scmp.eq.s32.totalorder %s103, 0
      %p922 = por %p920, %p921
      %p923 = scmp.ne.s32.totalorder %s911, %s912
      %p924 = scmp.eq.s32.totalorder %s104, 1
      %p925 = por %p923, %p924
      %p927 = scmp.ne.s32.totalorder %s912, %s926
      %p928 = scmp.eq.s32.totalorder %s104, 0
      %p929 = por %p927, %p928
      %s931 = sadd.s32 %s930, 1
      %p934 = scmp.eq.s32.totalorder %s98, 1
      %p935 = scmp.ne.s32.totalorder %s930, %s932
      %p936 = scmp.eq.s32.totalorder %s98, 0
      %p937 = por %p935, %p936
      %p938 = scmp.ne.s32.totalorder %s930, %s932
      %p939 = scmp.eq.s32.totalorder %s103, 1
      %p940 = por %p938, %p939
      %p941 = scmp.ne.s32.totalorder %s932, %s933
      %p942 = scmp.eq.s32.totalorder %s103, 0
      %p943 = por %p941, %p942
      %p944 = scmp.ne.s32.totalorder %s932, %s933
      %p945 = scmp.eq.s32.totalorder %s104, 1
      %p946 = por %p944, %p945
      %p948 = scmp.ne.s32.totalorder %s933, %s947
      %p949 = scmp.eq.s32.totalorder %s104, 0
      %p950 = por %p948, %p949
      %s952 = sadd.s32 %s951, 1
      %p955 = scmp.eq.s32.totalorder %s98, 1
      %p956 = scmp.ne.s32.totalorder %s951, %s953
      %p957 = scmp.eq.s32.totalorder %s98, 0
      %p958 = por %p956, %p957
      %p959 = scmp.ne.s32.totalorder %s951, %s953
      %p960 = scmp.eq.s32.totalorder %s103, 1
      %p961 = por %p959, %p960
      %p962 = scmp.ne.s32.totalorder %s953, %s954
      %p963 = scmp.eq.s32.totalorder %s103, 0
      %p964 = por %p962, %p963
      %p965 = scmp.ne.s32.totalorder %s953, %s954
      %p966 = scmp.eq.s32.totalorder %s104, 1
      %p967 = por %p965, %p966
      %p969 = scmp.ne.s32.totalorder %s954, %s968
      %p970 = scmp.eq.s32.totalorder %s104, 0
      %p971 = por %p969, %p970
      %s972 = ssub.s32 %s98, %s105
      %p973 = scmp.eq.s32.totalorder %s972, 0
      %s975 = sadd.s32 %s974, 1
      %s976 = scalar_select %p973, %s974, %s975
      %p979 = pneg %p973
      %p980 = scmp.eq.s32.totalorder %s98, 1
      %p981 = por %p979, %p980
      %p982 = scmp.ne.s32.totalorder %s974, %s977
      %p983 = scmp.eq.s32.totalorder %s98, 0
      %p984 = por %p982, %p983
      %p985 = scmp.ne.s32.totalorder %s974, %s977
      %p986 = scmp.eq.s32.totalorder %s103, 1
      %p987 = por %p985, %p986
      %p988 = scmp.ne.s32.totalorder %s977, %s978
      %p989 = scmp.eq.s32.totalorder %s103, 0
      %p990 = por %p988, %p989
      %p991 = scmp.ne.s32.totalorder %s977, %s978
      %p992 = scmp.eq.s32.totalorder %s104, 1
      %p993 = por %p991, %p992
      %p995 = scmp.ne.s32.totalorder %s978, %s994
      %p996 = scmp.eq.s32.totalorder %s104, 0
      %p997 = por %p995, %p996
      %p998 = scmp.le.s32.totalorder 1, %s98
      %p999 = scmp.lt.s32.totalorder %s98, 3
      %p1000 = pnand %p998, %p999
      %p1001 = pneg %p1000
      // Predicated region
      $region9: #{tpu_custom_call.1} parent=5 // pred_check
        _
      $region10: #{tpu_custom_call.1} parent=5 // pred_check_branch
        %1003 = sbr.rel (%p1000) target = $region12
      $region11: #{tpu_custom_call.1} parent=5 // pred_region
        %s1004 = ssub.s32 %s98, 1
        // Predicated region
        $region13: #{tpu_custom_call.1} parent=11 // pred_check
          %p1005 = pneg %p145
        $region14: #{tpu_custom_call.1} parent=11 // pred_check_branch
          %1007 = sbr.rel (%p1005) target = $region16
        $region15: #{tpu_custom_call.1} parent=11 // pred_region
          %s1009 = ssub.s32 128, 128
          %1010 = vsyncadd [#allocation3], %s1009
          %s1011 = sshll.u32 [#allocation2], 4
          %s1012 = int_to_ptr.vmem [resolvable:$true] %s1011
          %1017 = dma.hbm_to_vmem [thread:$0]  %s3, 128, %s1012, [#allocation3], 64, 64, 4
        $region16: #{tpu_custom_call.1} parent=11 // pred_fallthru
          _
        // Predicated region
        $region17: #{tpu_custom_call.1} parent=11 // pred_check
          %p1018 = pneg %p166
        $region18: #{tpu_custom_call.1} parent=11 // pred_check_branch
          %1020 = sbr.rel (%p1018) target = $region20
        $region19: #{tpu_custom_call.1} parent=11 // pred_region
          %s1022 = ssub.s32 16, 16
          %1023 = vsyncadd [#allocation6], %s1022
          %s1025 = sshll.u32 [#allocation5], 4
          %s1026 = int_to_ptr.vmem [resolvable:$true] %s1025
          %1028 = dma.hbm_to_vmem [thread:$0]  %s5, 16, %s1026, [#allocation6]
        $region20: #{tpu_custom_call.1} parent=11 // pred_fallthru
          _
        // Predicated region
        $region21: #{tpu_custom_call.1} parent=11 // pred_check
          %p1029 = pneg %p187
        $region22: #{tpu_custom_call.1} parent=11 // pred_check_branch
          %1031 = sbr.rel (%p1029) target = $region24
        $region23: #{tpu_custom_call.1} parent=11 // pred_region
          _
        $region24: #{tpu_custom_call.1} parent=11 // pred_fallthru
          _
        // Predicated region
        $region25: #{tpu_custom_call.1} parent=11 // pred_check
          %p1032 = pneg %p208
        $region26: #{tpu_custom_call.1} parent=11 // pred_check_branch
          %1034 = sbr.rel (%p1032) target = $region28
        $region27: #{tpu_custom_call.1} parent=11 // pred_region
          %s1036 = ssub.s32 16, 16
          %1037 = vsyncadd [#allocation6], %s1036
          %s1039 = sshll.u32 [#allocation7], 4
          %s1040 = int_to_ptr.vmem [resolvable:$true] %s1039
          %1042 = dma.hbm_to_vmem [thread:$0]  %s9, 16, %s1040, [#allocation6]
        $region28: #{tpu_custom_call.1} parent=11 // pred_fallthru
          _
        // Predicated region
        $region29: #{tpu_custom_call.1} parent=11 // pred_check
          %p1043 = pneg %p229
        $region30: #{tpu_custom_call.1} parent=11 // pred_check_branch
          %1045 = sbr.rel (%p1043) target = $region32
        $region31: #{tpu_custom_call.1} parent=11 // pred_region
          _
        $region32: #{tpu_custom_call.1} parent=11 // pred_fallthru
          _
        // Predicated region
        $region33: #{tpu_custom_call.1} parent=11 // pred_check
          %p1046 = pneg %p250
        $region34: #{tpu_custom_call.1} parent=11 // pred_check_branch
          %1048 = sbr.rel (%p1046) target = $region36
        $region35: #{tpu_custom_call.1} parent=11 // pred_region
          %s1050 = ssub.s32 16, 16
          %1051 = vsyncadd [#allocation9], %s1050
          %s1053 = sshll.u32 [#allocation8], 4
          %s1054 = int_to_ptr.vmem [resolvable:$true] %s1053
          %1056 = dma.hbm_to_vmem [thread:$0]  %s13, 16, %s1054, [#allocation9]
        $region36: #{tpu_custom_call.1} parent=11 // pred_fallthru
          _
        // Predicated region
        $region37: #{tpu_custom_call.1} parent=11 // pred_check
          %p1057 = pneg %p271
        $region38: #{tpu_custom_call.1} parent=11 // pred_check_branch
          %1059 = sbr.rel (%p1057) target = $region40
        $region39: #{tpu_custom_call.1} parent=11 // pred_region
          _
        $region40: #{tpu_custom_call.1} parent=11 // pred_fallthru
          _
        // Predicated region
        $region41: #{tpu_custom_call.1} parent=11 // pred_check
          %p1060 = pneg %p292
        $region42: #{tpu_custom_call.1} parent=11 // pred_check_branch
          %1062 = sbr.rel (%p1060) target = $region44
        $region43: #{tpu_custom_call.1} parent=11 // pred_region
          %s1064 = ssub.s32 16, 16
          %1065 = vsyncadd [#allocation9], %s1064
          %s1067 = sshll.u32 [#allocation10], 4
          %s1068 = int_to_ptr.vmem [resolvable:$true] %s1067
          %1070 = dma.hbm_to_vmem [thread:$0]  %s17, 16, %s1068, [#allocation9]
        $region44: #{tpu_custom_call.1} parent=11 // pred_fallthru
          _
        // Predicated region
        $region45: #{tpu_custom_call.1} parent=11 // pred_check
          %p1071 = pneg %p313
        $region46: #{tpu_custom_call.1} parent=11 // pred_check_branch
          %1073 = sbr.rel (%p1071) target = $region48
        $region47: #{tpu_custom_call.1} parent=11 // pred_region
          _
        $region48: #{tpu_custom_call.1} parent=11 // pred_fallthru
          _
        // Predicated region
        $region49: #{tpu_custom_call.1} parent=11 // pred_check
          %p1074 = pneg %p334
        $region50: #{tpu_custom_call.1} parent=11 // pred_check_branch
          %1076 = sbr.rel (%p1074) target = $region52
        $region51: #{tpu_custom_call.1} parent=11 // pred_region
          %s1078 = ssub.s32 16, 16
          %1079 = vsyncadd [#allocation12], %s1078
          %s1081 = sshll.u32 [#allocation11], 4
          %s1082 = int_to_ptr.vmem [resolvable:$true] %s1081
          %1084 = dma.hbm_to_vmem [thread:$0]  %s21, 16, %s1082, [#allocation12]
        $region52: #{tpu_custom_call.1} parent=11 // pred_fallthru
          _
        // Predicated region
        $region53: #{tpu_custom_call.1} parent=11 // pred_check
          %p1085 = pneg %p355
        $region54: #{tpu_custom_call.1} parent=11 // pred_check_branch
          %1087 = sbr.rel (%p1085) target = $region56
        $region55: #{tpu_custom_call.1} parent=11 // pred_region
          %s1089 = ssub.s32 16, 16
          %1090 = vsyncadd [#allocation12], %s1089
          %s1092 = sshll.u32 [#allocation13], 4
          %s1093 = int_to_ptr.vmem [resolvable:$true] %s1092
          %1095 = dma.hbm_to_vmem [thread:$0]  %s23, 16, %s1093, [#allocation12]
        $region56: #{tpu_custom_call.1} parent=11 // pred_fallthru
          _
        // Predicated region
        $region57: #{tpu_custom_call.1} parent=11 // pred_check
          %p1096 = pneg %p376
        $region58: #{tpu_custom_call.1} parent=11 // pred_check_branch
          %1098 = sbr.rel (%p1096) target = $region60
        $region59: #{tpu_custom_call.1} parent=11 // pred_region
          %s1100 = ssub.s32 16, 16
          %1101 = vsyncadd [#allocation15], %s1100
          %s1103 = sshll.u32 [#allocation14], 4
          %s1104 = int_to_ptr.vmem [resolvable:$true] %s1103
          %1106 = dma.hbm_to_vmem [thread:$0]  %s25, 16, %s1104, [#allocation15]
        $region60: #{tpu_custom_call.1} parent=11 // pred_fallthru
          _
        // Predicated region
        $region61: #{tpu_custom_call.1} parent=11 // pred_check
          %p1107 = pneg %p397
        $region62: #{tpu_custom_call.1} parent=11 // pred_check_branch
          %1109 = sbr.rel (%p1107) target = $region64
        $region63: #{tpu_custom_call.1} parent=11 // pred_region
          %s1111 = ssub.s32 16, 16
          %1112 = vsyncadd [#allocation15], %s1111
          %s1114 = sshll.u32 [#allocation16], 4
          %s1115 = int_to_ptr.vmem [resolvable:$true] %s1114
          %1117 = dma.hbm_to_vmem [thread:$0]  %s27, 16, %s1115, [#allocation15]
        $region64: #{tpu_custom_call.1} parent=11 // pred_fallthru
          _
        // Predicated region
        $region65: #{tpu_custom_call.1} parent=11 // pred_check
          %p1118 = pneg %p418
        $region66: #{tpu_custom_call.1} parent=11 // pred_check_branch
          %1120 = sbr.rel (%p1118) target = $region68
        $region67: #{tpu_custom_call.1} parent=11 // pred_region
          %s1122 = ssub.s32 16, 16
          %1123 = vsyncadd [#allocation18], %s1122
          %s1125 = sshll.u32 [#allocation17], 4
          %s1126 = int_to_ptr.vmem [resolvable:$true] %s1125
          %1128 = dma.hbm_to_vmem [thread:$0]  %s29, 16, %s1126, [#allocation18]
        $region68: #{tpu_custom_call.1} parent=11 // pred_fallthru
          _
        // Predicated region
        $region69: #{tpu_custom_call.1} parent=11 // pred_check
          %p1129 = pneg %p439
        $region70: #{tpu_custom_call.1} parent=11 // pred_check_branch
          %1131 = sbr.rel (%p1129) target = $region72
        $region71: #{tpu_custom_call.1} parent=11 // pred_region
          _
        $region72: #{tpu_custom_call.1} parent=11 // pred_fallthru
          _
        // Predicated region
        $region73: #{tpu_custom_call.1} parent=11 // pred_check
          %p1132 = pneg %p460
        $region74: #{tpu_custom_call.1} parent=11 // pred_check_branch
          %1134 = sbr.rel (%p1132) target = $region76
        $region75: #{tpu_custom_call.1} parent=11 // pred_region
          %s1136 = ssub.s32 16, 16
          %1137 = vsyncadd [#allocation18], %s1136
          %s1139 = sshll.u32 [#allocation19], 4
          %s1140 = int_to_ptr.vmem [resolvable:$true] %s1139
          %1142 = dma.hbm_to_vmem [thread:$0]  %s33, 16, %s1140, [#allocation18]
        $region76: #{tpu_custom_call.1} parent=11 // pred_fallthru
          _
        // Predicated region
        $region77: #{tpu_custom_call.1} parent=11 // pred_check
          %p1143 = pneg %p481
        $region78: #{tpu_custom_call.1} parent=11 // pred_check_branch
          %1145 = sbr.rel (%p1143) target = $region80
        $region79: #{tpu_custom_call.1} parent=11 // pred_region
          _
        $region80: #{tpu_custom_call.1} parent=11 // pred_fallthru
          _
        // Predicated region
        $region81: #{tpu_custom_call.1} parent=11 // pred_check
          %p1146 = pneg %p502
        $region82: #{tpu_custom_call.1} parent=11 // pred_check_branch
          %1148 = sbr.rel (%p1146) target = $region84
        $region83: #{tpu_custom_call.1} parent=11 // pred_region
          _
        $region84: #{tpu_custom_call.1} parent=11 // pred_fallthru
          _
        // Predicated region
        $region85: #{tpu_custom_call.1} parent=11 // pred_check
          %p1149 = pneg %p523
        $region86: #{tpu_custom_call.1} parent=11 // pred_check_branch
          %1151 = sbr.rel (%p1149) target = $region88
        $region87: #{tpu_custom_call.1} parent=11 // pred_region
          _
        $region88: #{tpu_custom_call.1} parent=11 // pred_fallthru
          _
        // Predicated region
        $region89: #{tpu_custom_call.1} parent=11 // pred_check
          %p1152 = pneg %p544
        $region90: #{tpu_custom_call.1} parent=11 // pred_check_branch
          %1154 = sbr.rel (%p1152) target = $region92
        $region91: #{tpu_custom_call.1} parent=11 // pred_region
          _
        $region92: #{tpu_custom_call.1} parent=11 // pred_fallthru
          _
        // Predicated region
        $region93: #{tpu_custom_call.1} parent=11 // pred_check
          %p1155 = pneg %p565
        $region94: #{tpu_custom_call.1} parent=11 // pred_check_branch
          %1157 = sbr.rel (%p1155) target = $region96
        $region95: #{tpu_custom_call.1} parent=11 // pred_region
          _
        $region96: #{tpu_custom_call.1} parent=11 // pred_fallthru
          _
        // Predicated region
        $region97: #{tpu_custom_call.1} parent=11 // pred_check
          %p1158 = pneg %p586
        $region98: #{tpu_custom_call.1} parent=11 // pred_check_branch
          %1160 = sbr.rel (%p1158) target = $region100
        $region99: #{tpu_custom_call.1} parent=11 // pred_region
          _
        $region100: #{tpu_custom_call.1} parent=11 // pred_fallthru
          _
        // Predicated region
        $region101: #{tpu_custom_call.1} parent=11 // pred_check
          %p1161 = pneg %p607
        $region102: #{tpu_custom_call.1} parent=11 // pred_check_branch
          %1163 = sbr.rel (%p1161) target = $region104
        $region103: #{tpu_custom_call.1} parent=11 // pred_region
          _
        $region104: #{tpu_custom_call.1} parent=11 // pred_fallthru
          _
        // Predicated region
        $region105: #{tpu_custom_call.1} parent=11 // pred_check
          %p1164 = pneg %p628
        $region106: #{tpu_custom_call.1} parent=11 // pred_check_branch
          %1166 = sbr.rel (%p1164) target = $region108
        $region107: #{tpu_custom_call.1} parent=11 // pred_region
          _
        $region108: #{tpu_custom_call.1} parent=11 // pred_fallthru
          _
        // Predicated region
        $region109: #{tpu_custom_call.1} parent=11 // pred_check
          %p1167 = pneg %p649
        $region110: #{tpu_custom_call.1} parent=11 // pred_check_branch
          %1169 = sbr.rel (%p1167) target = $region112
        $region111: #{tpu_custom_call.1} parent=11 // pred_region
          _
        $region112: #{tpu_custom_call.1} parent=11 // pred_fallthru
          _
        // Predicated region
        $region113: #{tpu_custom_call.1} parent=11 // pred_check
          %p1170 = pneg %p670
        $region114: #{tpu_custom_call.1} parent=11 // pred_check_branch
          %1172 = sbr.rel (%p1170) target = $region116
        $region115: #{tpu_custom_call.1} parent=11 // pred_region
          _
        $region116: #{tpu_custom_call.1} parent=11 // pred_fallthru
          _
        // Predicated region
        $region117: #{tpu_custom_call.1} parent=11 // pred_check
          %p1173 = pneg %p691
        $region118: #{tpu_custom_call.1} parent=11 // pred_check_branch
          %1175 = sbr.rel (%p1173) target = $region120
        $region119: #{tpu_custom_call.1} parent=11 // pred_region
          _
        $region120: #{tpu_custom_call.1} parent=11 // pred_fallthru
          _
        // Predicated region
        $region121: #{tpu_custom_call.1} parent=11 // pred_check
          %p1176 = pneg %p712
        $region122: #{tpu_custom_call.1} parent=11 // pred_check_branch
          %1178 = sbr.rel (%p1176) target = $region124
        $region123: #{tpu_custom_call.1} parent=11 // pred_region
          _
        $region124: #{tpu_custom_call.1} parent=11 // pred_fallthru
          _
        // Predicated region
        $region125: #{tpu_custom_call.1} parent=11 // pred_check
          %p1179 = pneg %p733
        $region126: #{tpu_custom_call.1} parent=11 // pred_check_branch
          %1181 = sbr.rel (%p1179) target = $region128
        $region127: #{tpu_custom_call.1} parent=11 // pred_region
          _
        $region128: #{tpu_custom_call.1} parent=11 // pred_fallthru
          _
        // Predicated region
        $region129: #{tpu_custom_call.1} parent=11 // pred_check
          %p1182 = pneg %p754
        $region130: #{tpu_custom_call.1} parent=11 // pred_check_branch
          %1184 = sbr.rel (%p1182) target = $region132
        $region131: #{tpu_custom_call.1} parent=11 // pred_region
          _
        $region132: #{tpu_custom_call.1} parent=11 // pred_fallthru
          _
        // Predicated region
        $region133: #{tpu_custom_call.1} parent=11 // pred_check
          %p1185 = pneg %p775
        $region134: #{tpu_custom_call.1} parent=11 // pred_check_branch
          %1187 = sbr.rel (%p1185) target = $region136
        $region135: #{tpu_custom_call.1} parent=11 // pred_region
          _
        $region136: #{tpu_custom_call.1} parent=11 // pred_fallthru
          _
        // Predicated region
        $region137: #{tpu_custom_call.1} parent=11 // pred_check
          %p1188 = pneg %p796
        $region138: #{tpu_custom_call.1} parent=11 // pred_check_branch
          %1190 = sbr.rel (%p1188) target = $region140
        $region139: #{tpu_custom_call.1} parent=11 // pred_region
          _
        $region140: #{tpu_custom_call.1} parent=11 // pred_fallthru
          _
        // Predicated region
        $region141: #{tpu_custom_call.1} parent=11 // pred_check
          %p1191 = pneg %p817
        $region142: #{tpu_custom_call.1} parent=11 // pred_check_branch
          %1193 = sbr.rel (%p1191) target = $region144
        $region143: #{tpu_custom_call.1} parent=11 // pred_region
          _
        $region144: #{tpu_custom_call.1} parent=11 // pred_fallthru
          _
        // Predicated region
        $region145: #{tpu_custom_call.1} parent=11 // pred_check
          %p1194 = pneg %p838
        $region146: #{tpu_custom_call.1} parent=11 // pred_check_branch
          %1196 = sbr.rel (%p1194) target = $region148
        $region147: #{tpu_custom_call.1} parent=11 // pred_region
          _
        $region148: #{tpu_custom_call.1} parent=11 // pred_fallthru
          _
        // Predicated region
        $region149: #{tpu_custom_call.1} parent=11 // pred_check
          %p1197 = pneg %p859
        $region150: #{tpu_custom_call.1} parent=11 // pred_check_branch
          %1199 = sbr.rel (%p1197) target = $region152
        $region151: #{tpu_custom_call.1} parent=11 // pred_region
          _
        $region152: #{tpu_custom_call.1} parent=11 // pred_fallthru
          _
        // Predicated region
        $region153: #{tpu_custom_call.1} parent=11 // pred_check
          %p1200 = pneg %p880
        $region154: #{tpu_custom_call.1} parent=11 // pred_check_branch
          %1202 = sbr.rel (%p1200) target = $region156
        $region155: #{tpu_custom_call.1} parent=11 // pred_region
          _
        $region156: #{tpu_custom_call.1} parent=11 // pred_fallthru
          _
        // Predicated region
        $region157: #{tpu_custom_call.1} parent=11 // pred_check
          %p1203 = pneg %p901
        $region158: #{tpu_custom_call.1} parent=11 // pred_check_branch
          %1205 = sbr.rel (%p1203) target = $region160
        $region159: #{tpu_custom_call.1} parent=11 // pred_region
          _
        $region160: #{tpu_custom_call.1} parent=11 // pred_fallthru
          _
        // Predicated region
        $region161: #{tpu_custom_call.1} parent=11 // pred_check
          %p1206 = pneg %p922
        $region162: #{tpu_custom_call.1} parent=11 // pred_check_branch
          %1208 = sbr.rel (%p1206) target = $region164
        $region163: #{tpu_custom_call.1} parent=11 // pred_region
          _
        $region164: #{tpu_custom_call.1} parent=11 // pred_fallthru
          _
        // Predicated region
        $region165: #{tpu_custom_call.1} parent=11 // pred_check
          %p1209 = pneg %p943
        $region166: #{tpu_custom_call.1} parent=11 // pred_check_branch
          %1211 = sbr.rel (%p1209) target = $region168
        $region167: #{tpu_custom_call.1} parent=11 // pred_region
          _
        $region168: #{tpu_custom_call.1} parent=11 // pred_fallthru
          _
        // Predicated region
        $region169: #{tpu_custom_call.1} parent=11 // pred_check
          %p1212 = pneg %p964
        $region170: #{tpu_custom_call.1} parent=11 // pred_check_branch
          %1214 = sbr.rel (%p1212) target = $region172
        $region171: #{tpu_custom_call.1} parent=11 // pred_region
          _
        $region172: #{tpu_custom_call.1} parent=11 // pred_fallthru
          _
      $region12: #{tpu_custom_call.1} parent=5 // pred_fallthru
        _
      %p1215 = scmp.lt.s32.totalorder %s98, 2
      // Predicated region
      $region173: #{tpu_custom_call.1} parent=5 // pred_check
        %p1216 = pneg %p1215
      $region174: #{tpu_custom_call.1} parent=5 // pred_check_branch
        %1218 = sbr.rel (%p1216) target = $region176
      $region175: #{tpu_custom_call.1} parent=5 // pred_region
        // Predicated region
        $region177: #{tpu_custom_call.1} parent=175 // pred_check
          %p1219 = pneg %p118
        $region178: #{tpu_custom_call.1} parent=175 // pred_check_branch
          %1221 = sbr.rel (%p1219) target = $region180
        $region179: #{tpu_custom_call.1} parent=175 // pred_region
          %p1222 = scmp.lt.s32.totalorder %s98, 1
          %s1223 = scalar_select %p1222, %s98, 1
          %s1224 = smul.addr %s1223, 8
          %s1225 = scalar_lea.vmem %s1, %s1224
        $region180: #{tpu_custom_call.1} parent=175 // pred_fallthru
          _
      $region176: #{tpu_custom_call.1} parent=5 // pred_fallthru
        _
      %p1226 = scmp.le.s32.totalorder 1, %s98
      %p1227 = scmp.lt.s32.totalorder %s98, 3
      %p1228 = pnand %p1226, %p1227
      %p1229 = pneg %p1228
      // Predicated region
      $region181: #{tpu_custom_call.1} parent=5 // pred_check
        _
      $region182: #{tpu_custom_call.1} parent=5 // pred_check_branch
        %1231 = sbr.rel (%p1228) target = $region184
      $region183: #{tpu_custom_call.1} parent=5 // pred_region
        %s1232 = ssub.s32 %s98, 1
        // Predicated region
        $region185: #{tpu_custom_call.1} parent=183 // pred_check
          %p1233 = pneg %p145
        $region186: #{tpu_custom_call.1} parent=183 // pred_check_branch
          %1235 = sbr.rel (%p1233) target = $region188
        $region187: #{tpu_custom_call.1} parent=183 // pred_region
          %1236 = dma.done [#allocation3], 128
        $region188: #{tpu_custom_call.1} parent=183 // pred_fallthru
          _
        // Predicated region
        $region189: #{tpu_custom_call.1} parent=183 // pred_check
          %p1237 = pneg %p166
        $region190: #{tpu_custom_call.1} parent=183 // pred_check_branch
          %1239 = sbr.rel (%p1237) target = $region192
        $region191: #{tpu_custom_call.1} parent=183 // pred_region
          %1240 = dma.done [#allocation6], 16
        $region192: #{tpu_custom_call.1} parent=183 // pred_fallthru
          _
        // Predicated region
        $region193: #{tpu_custom_call.1} parent=183 // pred_check
          %p1241 = pneg %p208
        $region194: #{tpu_custom_call.1} parent=183 // pred_check_branch
          %1243 = sbr.rel (%p1241) target = $region196
        $region195: #{tpu_custom_call.1} parent=183 // pred_region
          %1244 = dma.done [#allocation6], 16
        $region196: #{tpu_custom_call.1} parent=183 // pred_fallthru
          _
        // Predicated region
        $region197: #{tpu_custom_call.1} parent=183 // pred_check
          %p1245 = pneg %p250
        $region198: #{tpu_custom_call.1} parent=183 // pred_check_branch
          %1247 = sbr.rel (%p1245) target = $region200
        $region199: #{tpu_custom_call.1} parent=183 // pred_region
          %1248 = dma.done [#allocation9], 16
        $region200: #{tpu_custom_call.1} parent=183 // pred_fallthru
          _
        // Predicated region
        $region201: #{tpu_custom_call.1} parent=183 // pred_check
          %p1249 = pneg %p292
        $region202: #{tpu_custom_call.1} parent=183 // pred_check_branch
          %1251 = sbr.rel (%p1249) target = $region204
        $region203: #{tpu_custom_call.1} parent=183 // pred_region
          %1252 = dma.done [#allocation9], 16
        $region204: #{tpu_custom_call.1} parent=183 // pred_fallthru
          _
        // Predicated region
        $region205: #{tpu_custom_call.1} parent=183 // pred_check
          %p1253 = pneg %p334
        $region206: #{tpu_custom_call.1} parent=183 // pred_check_branch
          %1255 = sbr.rel (%p1253) target = $region208
        $region207: #{tpu_custom_call.1} parent=183 // pred_region
          %1256 = dma.done [#allocation12], 16
        $region208: #{tpu_custom_call.1} parent=183 // pred_fallthru
          _
        // Predicated region
        $region209: #{tpu_custom_call.1} parent=183 // pred_check
          %p1257 = pneg %p355
        $region210: #{tpu_custom_call.1} parent=183 // pred_check_branch
          %1259 = sbr.rel (%p1257) target = $region212
        $region211: #{tpu_custom_call.1} parent=183 // pred_region
          %1260 = dma.done [#allocation12], 16
        $region212: #{tpu_custom_call.1} parent=183 // pred_fallthru
          _
        // Predicated region
        $region213: #{tpu_custom_call.1} parent=183 // pred_check
          %p1261 = pneg %p376
        $region214: #{tpu_custom_call.1} parent=183 // pred_check_branch
          %1263 = sbr.rel (%p1261) target = $region216
        $region215: #{tpu_custom_call.1} parent=183 // pred_region
          %1264 = dma.done [#allocation15], 16
        $region216: #{tpu_custom_call.1} parent=183 // pred_fallthru
          _
        // Predicated region
        $region217: #{tpu_custom_call.1} parent=183 // pred_check
          %p1265 = pneg %p397
        $region218: #{tpu_custom_call.1} parent=183 // pred_check_branch
          %1267 = sbr.rel (%p1265) target = $region220
        $region219: #{tpu_custom_call.1} parent=183 // pred_region
          %1268 = dma.done [#allocation15], 16
        $region220: #{tpu_custom_call.1} parent=183 // pred_fallthru
          _
        // Predicated region
        $region221: #{tpu_custom_call.1} parent=183 // pred_check
          %p1269 = pneg %p418
        $region222: #{tpu_custom_call.1} parent=183 // pred_check_branch
          %1271 = sbr.rel (%p1269) target = $region224
        $region223: #{tpu_custom_call.1} parent=183 // pred_region
          %1272 = dma.done [#allocation18], 16
        $region224: #{tpu_custom_call.1} parent=183 // pred_fallthru
          _
        // Predicated region
        $region225: #{tpu_custom_call.1} parent=183 // pred_check
          %p1273 = pneg %p460
        $region226: #{tpu_custom_call.1} parent=183 // pred_check_branch
          %1275 = sbr.rel (%p1273) target = $region228
        $region227: #{tpu_custom_call.1} parent=183 // pred_region
          %1276 = dma.done [#allocation18], 16
        $region228: #{tpu_custom_call.1} parent=183 // pred_fallthru
          _
        %p1277 = scmp.lt.s32.totalorder %s103, 1
        %s1278 = scalar_select %p1277, %s103, 1
        %s1279 = smul.addr %s1278, 8
        %s1280 = scalar_lea.vmem %s1, %s1279
        %p1281 = pneg %p124
        %p1282 = pneg %p121
        %p1283 = pneg %p145
        %p1284 = pneg %p142
        %p1285 = pneg %p166
        %p1286 = pneg %p163
        %p1287 = pneg %p187
        %p1288 = pneg %p184
        %p1289 = pneg %p208
        %p1290 = pneg %p205
        %p1291 = pneg %p229
        %p1292 = pneg %p226
        %p1293 = pneg %p250
        %p1294 = pneg %p247
        %p1295 = pneg %p271
        %p1296 = pneg %p268
        %p1297 = pneg %p292
        %p1298 = pneg %p289
        %p1299 = pneg %p313
        %p1300 = pneg %p310
        %p1301 = pneg %p334
        %p1302 = pneg %p331
        %p1303 = pneg %p355
        %p1304 = pneg %p352
        %p1305 = pneg %p376
        %p1306 = pneg %p373
        %p1307 = pneg %p397
        %p1308 = pneg %p394
        %p1309 = pneg %p418
        %p1310 = pneg %p415
        %p1311 = pneg %p439
        %p1312 = pneg %p436
        %p1313 = pneg %p460
        %p1314 = pneg %p457
        %p1315 = pneg %p481
        %p1316 = pneg %p478
        %p1317 = pneg %p502
        %p1318 = pneg %p499
        %p1319 = pneg %p523
        %p1320 = pneg %p520
        %p1321 = pneg %p544
        %p1322 = pneg %p541
        %p1323 = pneg %p565
        %p1324 = pneg %p562
        %p1325 = pneg %p586
        %p1326 = pneg %p583
        %p1327 = pneg %p607
        %p1328 = pneg %p604
        %p1329 = pneg %p628
        %p1330 = pneg %p625
        %p1331 = pneg %p649
        %p1332 = pneg %p646
        %p1333 = pneg %p670
        %p1334 = pneg %p667
        %p1335 = pneg %p691
        %p1336 = pneg %p688
        %p1337 = pneg %p712
        %p1338 = pneg %p709
        %p1339 = pneg %p733
        %p1340 = pneg %p730
        %p1341 = pneg %p754
        %p1342 = pneg %p751
        %p1343 = pneg %p775
        %p1344 = pneg %p772
        %p1345 = pneg %p796
        %p1346 = pneg %p793
        %p1347 = pneg %p817
        %p1348 = pneg %p814
        %p1349 = pneg %p838
        %p1350 = pneg %p835
        %p1351 = pneg %p859
        %p1352 = pneg %p856
        %p1353 = pneg %p880
        %p1354 = pneg %p877
        %p1355 = pneg %p901
        %p1356 = pneg %p898
        %p1357 = pneg %p922
        %p1358 = pneg %p919
        %p1359 = pneg %p943
        %p1360 = pneg %p940
        %p1361 = pneg %p964
        %p1362 = pneg %p961
        %p1363 = pneg %p990
        %p1364 = pneg %p987
        %s1365 = sand.u32 %s977, 1
        %s1366 = scalar_lea.sflag [#allocation4], %s1365
        %s1367 = sand.u32 %s977, 1
        %s1368 = scalar_lea.vmem [#allocation20], %s1367
        %p1369 = scmp.lt.s32.totalorder %s103, 1
        %s1370 = scalar_select %p1369, %s103, 1
        %s1371 = smul.addr %s1370, 8
        %s1372 = scalar_lea.vmem %s1, %s1371
        %v1374 = vld [vmem:[#allocation2] sm:$0xf]
        %v1375 = vld [vmem:[#allocation2 + $0x4] sm:$0xf]
        %v1376 = vld [vmem:[#allocation5] sm:$0x1]
        %v1377 = vld [vmem:[%s1372] sm:$0xff]
        %v1378 = vpack.c.bf16 %v1377, %v1377
        %v1380 = vlaneseq
        %v1381 = vshrl.u32 %v1380, 7
        %v1382 = vsub.s32 0, %v1381
        %v1383 = vrot.slane %v1376, %v1382
        %v1387 = vunpack.c.l.b16 %v1374
        %v1388 = vunpack.c.l.b16 %v1375
        %v1389 = vpack.c.b16 %v1388, %v1387
        %vm1391 = vcmask 130048
        %v1393 = vsel %vm1391, %v1378, 0
        %1395 = vmatprep.subr.bf16.mxu0 0
        %1396 = vmatpush1.bf16.msra.mxu0 %v1389
        %1397 = vmatprep.subr.bf16.mxu0 0
        %1398 = vmatpush1.bf16.msra.mxu0 0
        %1399 = vmatprep.subr.bf16.mxu0 0
        %1400 = vmatpush1.bf16.msra.mxu0 0
        %1401 = vmatprep.subr.bf16.mxu0 0
        %1402 = vmatpush1.bf16.msra.mxu0 0
        %1403 = vmatprep.subr.bf16.mxu0 0
        %1404 = vmatpush1.bf16.msra.mxu0 0
        %1405 = vmatprep.subr.bf16.mxu0 0
        %1406 = vmatpush1.bf16.msra.mxu0 0
        %1407 = vmatprep.subr.bf16.mxu0 0
        %1408 = vmatpush1.bf16.msra.mxu0 0
        %1409 = vmatprep.subr.bf16.mxu0 0
        %1410 = vmatpush1.bf16.msra.mxu0 0
        %1411 = vmatprep.subr.bf16.mxu0 0
        %1412 = vmatpush1.bf16.msra.mxu0 0
        %1413 = vmatprep.subr.bf16.mxu0 0
        %1414 = vmatpush1.bf16.msra.mxu0 0
        %1415 = vmatprep.subr.bf16.mxu0 0
        %1416 = vmatpush1.bf16.msra.mxu0 0
        %1417 = vmatprep.subr.bf16.mxu0 0
        %1418 = vmatpush1.bf16.msra.mxu0 0
        %1419 = vmatprep.subr.bf16.mxu0 0
        %1420 = vmatpush1.bf16.msra.mxu0 0
        %1421 = vmatprep.subr.bf16.mxu0 0
        %1422 = vmatpush1.bf16.msra.mxu0 0
        %1423 = vmatprep.subr.bf16.mxu0 0
        %1424 = vmatpush1.bf16.msra.mxu0 0
        %1425 = vmatprep.subr.bf16.mxu0 0
        %1426 = vmatpush1.bf16.msra.mxu0 0
        %1427 = vmatprep.mubr.bf16.mxu0 0
        %1428 = vmatmul.mubr.bf16.gmra.mrb[0].mxu0 %v1393
        %v1429 = vpop.f32.mrb[0].mxu0
        %v1430 = vadd.f32 %v1383, %v1429
        %v1431 = vpop.f32.mrb[0].mxu0
        %v1432 = vpop.f32.mrb[0].mxu0
        %v1433 = vpop.f32.mrb[0].mxu0
        %1434 = vdwg.mxu0
        %v1435 = vxor.u32 %v1430, 2147483648
        %v1436 = vmul.f32 %v1435, 1.442695
        %v1437 = vpow.pop %v1436
        %v1438 = vadd.f32 %v1437, 1.0
        %v1439 = vrcp.pop %v1438
        %v1440 = vmul.f32 1.0, %v1439
        %v1441 = vld [vmem:[%s7] sm:$0xf]
        %v1442 = vld [vmem:[%s7 + $0x4] sm:$0xf]
        %v1443 = vld [vmem:[%s7 + $0x8] sm:$0xf]
        %v1444 = vld [vmem:[%s7 + $0xc] sm:$0xf]
        %v1445 = vld [vmem:[#allocation7] sm:$0x1]
        %v1446 = vld [vmem:[%s11] sm:$0xf]
        %v1447 = vld [vmem:[%s11 + $0x4] sm:$0xf]
        %v1448 = vld [vmem:[%s11 + $0x8] sm:$0xf]
        %v1449 = vld [vmem:[%s11 + $0xc] sm:$0xf]
        %v1450 = vld [vmem:[#allocation8] sm:$0x1]
        %v1451 = vld [vmem:[%s15] sm:$0xf]
        %v1452 = vld [vmem:[%s15 + $0x4] sm:$0xf]
        %v1453 = vld [vmem:[%s15 + $0x8] sm:$0xf]
        %v1454 = vld [vmem:[%s15 + $0xc] sm:$0xf]
        %v1455 = vld [vmem:[#allocation10] sm:$0x1]
        %v1456 = vld [vmem:[%s19] sm:$0xf]
        %v1457 = vld [vmem:[%s19 + $0x4] sm:$0xf]
        %v1458 = vld [vmem:[%s19 + $0x8] sm:$0xf]
        %v1459 = vld [vmem:[%s19 + $0xc] sm:$0xf]
        %v1460 = vld [vmem:[%s19 + $0x10] sm:$0xf]
        %v1461 = vld [vmem:[%s19 + $0x14] sm:$0xf]
        %v1462 = vld [vmem:[%s19 + $0x18] sm:$0xf]
        %v1463 = vld [vmem:[%s19 + $0x1c] sm:$0xf]
        %v1464 = vld [vmem:[#allocation11] sm:$0x1]
        %v1465 = vld [vmem:[#allocation13] sm:$0x1]
        %v1466 = vld [vmem:[#allocation14] sm:$0x1]
        %v1467 = vld [vmem:[#allocation16] sm:$0x1]
        %v1468 = vld [vmem:[#allocation17] sm:$0x1]
        %v1469 = vpack.c.bf16 %v1440, %v1440
        %v1471 = vlaneseq
        %v1472 = vshrl.u32 %v1471, 7
        %v1473 = vsub.s32 0, %v1472
        %v1474 = vrot.slane %v1445, %v1473
        %v1480 = vunpack.c.l.b16 %v1441
        %v1481 = vunpack.c.l.b16 %v1442
        %v1482 = vunpack.c.l.b16 %v1443
        %v1483 = vunpack.c.l.b16 %v1444
        %v1484 = vpack.c.b16 %v1481, %v1480
        %v1485 = vpack.c.b16 %v1483, %v1482
        %vm1488 = vcmask 261120
        %v1490 = vsel %vm1488, %v1469, 0
        %1492 = vmatprep.subr.bf16.mxu0 0
        %1493 = vmatpush1.bf16.msra.mxu0 %v1484
        %1494 = vmatprep.subr.bf16.mxu0 0
        %1495 = vmatpush1.bf16.msra.mxu0 %v1485
        %1496 = vmatprep.subr.bf16.mxu0 0
        %1497 = vmatpush1.bf16.msra.mxu0 0
        %1498 = vmatprep.subr.bf16.mxu0 0
        %1499 = vmatpush1.bf16.msra.mxu0 0
        %1500 = vmatprep.subr.bf16.mxu0 0
        %1501 = vmatpush1.bf16.msra.mxu0 0
        %1502 = vmatprep.subr.bf16.mxu0 0
        %1503 = vmatpush1.bf16.msra.mxu0 0
        %1504 = vmatprep.subr.bf16.mxu0 0
        %1505 = vmatpush1.bf16.msra.mxu0 0
        %1506 = vmatprep.subr.bf16.mxu0 0
        %1507 = vmatpush1.bf16.msra.mxu0 0
        %1508 = vmatprep.subr.bf16.mxu0 0
        %1509 = vmatpush1.bf16.msra.mxu0 0
        %1510 = vmatprep.subr.bf16.mxu0 0
        %1511 = vmatpush1.bf16.msra.mxu0 0
        %1512 = vmatprep.subr.bf16.mxu0 0
        %1513 = vmatpush1.bf16.msra.mxu0 0
        %1514 = vmatprep.subr.bf16.mxu0 0
        %1515 = vmatpush1.bf16.msra.mxu0 0
        %1516 = vmatprep.subr.bf16.mxu0 0
        %1517 = vmatpush1.bf16.msra.mxu0 0
        %1518 = vmatprep.subr.bf16.mxu0 0
        %1519 = vmatpush1.bf16.msra.mxu0 0
        %1520 = vmatprep.subr.bf16.mxu0 0
        %1521 = vmatpush1.bf16.msra.mxu0 0
        %1522 = vmatprep.subr.bf16.mxu0 0
        %1523 = vmatpush1.bf16.msra.mxu0 0
        %1524 = vmatprep.mubr.bf16.mxu0 0
        %1525 = vmatmul.mubr.bf16.gmra.mrb[0].mxu0 %v1490
        %v1526 = vpop.f32.mrb[0].mxu0
        %v1527 = vadd.f32 %v1474, %v1526
        %v1528 = vpop.f32.mrb[0].mxu0
        %v1529 = vpop.f32.mrb[0].mxu0
        %v1530 = vpop.f32.mrb[0].mxu0
        %1531 = vdwg.mxu0
        %v1532 = vpack.c.bf16 %v1527, %v1527
        %1534 = vrot.lane.b32.xlu0 %v1532, 96
        %v1535 = vpop.permute.xlu0 %1534
        %vm1536 = vcmask 64512
        %v1538 = vsel %vm1536, %v1532, 0
        %v1541 = vsel %vm1536, %v1535, 0
        %1543 = vmatprep.subr.bf16.mxu0 0
        %1544 = vmatpush1.bf16.xpose.msra.mxu0 %v1541
        %1545 = vmatprep.subr.bf16.mxu0 0
        %1546 = vmatpush1.bf16.xpose.msra.mxu0 0
        %1547 = vmatprep.subr.bf16.mxu0 0
        %1548 = vmatpush1.bf16.xpose.msra.mxu0 0
        %1549 = vmatprep.subr.bf16.mxu0 0
        %1550 = vmatpush1.bf16.xpose.msra.mxu0 0
        %1551 = vmatprep.subr.bf16.mxu0 0
        %1552 = vmatpush1.bf16.xpose.msra.mxu0 0
        %1553 = vmatprep.subr.bf16.mxu0 0
        %1554 = vmatpush1.bf16.xpose.msra.mxu0 0
        %1555 = vmatprep.subr.bf16.mxu0 0
        %1556 = vmatpush1.bf16.xpose.msra.mxu0 0
        %1557 = vmatprep.subr.bf16.mxu0 0
        %1558 = vmatpush1.bf16.xpose.msra.mxu0 0
        %1559 = vmatprep.subr.bf16.mxu0 0
        %1560 = vmatpush1.bf16.xpose.msra.mxu0 0
        %1561 = vmatprep.subr.bf16.mxu0 0
        %1562 = vmatpush1.bf16.xpose.msra.mxu0 0
        %1563 = vmatprep.subr.bf16.mxu0 0
        %1564 = vmatpush1.bf16.xpose.msra.mxu0 0
        %1565 = vmatprep.subr.bf16.mxu0 0
        %1566 = vmatpush1.bf16.xpose.msra.mxu0 0
        %1567 = vmatprep.subr.bf16.mxu0 0
        %1568 = vmatpush1.bf16.xpose.msra.mxu0 0
        %1569 = vmatprep.subr.bf16.mxu0 0
        %1570 = vmatpush1.bf16.xpose.msra.mxu0 0
        %1571 = vmatprep.subr.bf16.mxu0 0
        %1572 = vmatpush1.bf16.xpose.msra.mxu0 0
        %1573 = vmatprep.subr.bf16.mxu0 0
        %1574 = vmatpush1.bf16.xpose.msra.mxu0 0
        %1575 = vmatprep.mubr.bf16.mxu0 0
        %1576 = vmatmul.mubr.bf16.gmra.mrb[0].mxu0 %v1538
        %v1577 = vpop.f32.mrb[0].mxu0
        %v1578 = vadd.f32 0.0, %v1577
        %v1579 = vpop.f32.mrb[0].mxu0
        %v1580 = vpop.f32.mrb[0].mxu0
        %v1581 = vpop.f32.mrb[0].mxu0
        %1582 = vdwg.mxu0
        %v1583 = vsel %vm1536, %v1578, -inf
        %1584 = vmax.xlane.f32.xlu0 %v1583
        %v1585 = vpop.xlane.xlu0 %1584
        %v1586 = vsub.f32 %v1578, %v1585
        %v1587 = vmul.f32 %v1586, 1.442695
        %v1588 = vpow.pop %v1587
        %v1589 = vsel %vm1536, %v1588, 0.0
        %1590 = vadd.xlane.f32.xlu0 %v1589
        %v1591 = vpop.xlane.xlu0 %1590
        %v1592 = vrcp.pop %v1591
        %v1593 = vmul.f32 %v1588, %v1592
        %v1594 = vpack.c.bf16 %v1593, %v1593
        %1595 = vrot.lane.b32.xlu0 %v1532, 64
        %v1596 = vpop.permute.xlu0 %1595
        %v1598 = vsel %vm1536, %v1594, 0
        %vm1600 = vcmask 1043456
        %v1602 = vsel %vm1600, %v1596, 0
        %1604 = vmatprep.subr.bf16.mxu0 0
        %1605 = vmatpush1.bf16.msra.mxu0 %v1602
        %1606 = vmatprep.subr.bf16.mxu0 0
        %1607 = vmatpush1.bf16.msra.mxu0 0
        %1608 = vmatprep.subr.bf16.mxu0 0
        %1609 = vmatpush1.bf16.msra.mxu0 0
        %1610 = vmatprep.subr.bf16.mxu0 0
        %1611 = vmatpush1.bf16.msra.mxu0 0
        %1612 = vmatprep.subr.bf16.mxu0 0
        %1613 = vmatpush1.bf16.msra.mxu0 0
        %1614 = vmatprep.subr.bf16.mxu0 0
        %1615 = vmatpush1.bf16.msra.mxu0 0
        %1616 = vmatprep.subr.bf16.mxu0 0
        %1617 = vmatpush1.bf16.msra.mxu0 0
        %1618 = vmatprep.subr.bf16.mxu0 0
        %1619 = vmatpush1.bf16.msra.mxu0 0
        %1620 = vmatprep.subr.bf16.mxu0 0
        %1621 = vmatpush1.bf16.msra.mxu0 0
        %1622 = vmatprep.subr.bf16.mxu0 0
        %1623 = vmatpush1.bf16.msra.mxu0 0
        %1624 = vmatprep.subr.bf16.mxu0 0
        %1625 = vmatpush1.bf16.msra.mxu0 0
        %1626 = vmatprep.subr.bf16.mxu0 0
        %1627 = vmatpush1.bf16.msra.mxu0 0
        %1628 = vmatprep.subr.bf16.mxu0 0
        %1629 = vmatpush1.bf16.msra.mxu0 0
        %1630 = vmatprep.subr.bf16.mxu0 0
        %1631 = vmatpush1.bf16.msra.mxu0 0
        %1632 = vmatprep.subr.bf16.mxu0 0
        %1633 = vmatpush1.bf16.msra.mxu0 0
        %1634 = vmatprep.subr.bf16.mxu0 0
        %1635 = vmatpush1.bf16.msra.mxu0 0
        %1636 = vmatprep.mubr.bf16.mxu0 0
        %1637 = vmatmul.mubr.bf16.gmra.mrb[0].mxu0 %v1598
        %v1638 = vpop.f32.mrb[0].mxu0
        %v1639 = vadd.f32 0.0, %v1638
        %v1640 = vpop.f32.mrb[0].mxu0
        %v1641 = vpop.f32.mrb[0].mxu0
        %v1642 = vpop.f32.mrb[0].mxu0
        %1643 = vdwg.mxu0
        %v1644 = vpack.c.bf16 %v1639, %v1639
        %1645 = vrot.lane.b32.xlu0 %v1532, 120
        %v1646 = vpop.permute.xlu0 %1645
        %1647 = vrot.lane.b32.xlu0 %v1532, 88
        %v1648 = vpop.permute.xlu0 %1647
        %v1650 = vsel %vm1536, %v1646, 0
        %v1653 = vsel %vm1536, %v1648, 0
        %1655 = vmatprep.subr.bf16.mxu0 0
        %1656 = vmatpush1.bf16.xpose.msra.mxu0 %v1653
        %1657 = vmatprep.subr.bf16.mxu0 0
        %1658 = vmatpush1.bf16.xpose.msra.mxu0 0
        %1659 = vmatprep.subr.bf16.mxu0 0
        %1660 = vmatpush1.bf16.xpose.msra.mxu0 0
        %1661 = vmatprep.subr.bf16.mxu0 0
        %1662 = vmatpush1.bf16.xpose.msra.mxu0 0
        %1663 = vmatprep.subr.bf16.mxu0 0
        %1664 = vmatpush1.bf16.xpose.msra.mxu0 0
        %1665 = vmatprep.subr.bf16.mxu0 0
        %1666 = vmatpush1.bf16.xpose.msra.mxu0 0
        %1667 = vmatprep.subr.bf16.mxu0 0
        %1668 = vmatpush1.bf16.xpose.msra.mxu0 0
        %1669 = vmatprep.subr.bf16.mxu0 0
        %1670 = vmatpush1.bf16.xpose.msra.mxu0 0
        %1671 = vmatprep.subr.bf16.mxu0 0
        %1672 = vmatpush1.bf16.xpose.msra.mxu0 0
        %1673 = vmatprep.subr.bf16.mxu0 0
        %1674 = vmatpush1.bf16.xpose.msra.mxu0 0
        %1675 = vmatprep.subr.bf16.mxu0 0
        %1676 = vmatpush1.bf16.xpose.msra.mxu0 0
        %1677 = vmatprep.subr.bf16.mxu0 0
        %1678 = vmatpush1.bf16.xpose.msra.mxu0 0
        %1679 = vmatprep.subr.bf16.mxu0 0
        %1680 = vmatpush1.bf16.xpose.msra.mxu0 0
        %1681 = vmatprep.subr.bf16.mxu0 0
        %1682 = vmatpush1.bf16.xpose.msra.mxu0 0
        %1683 = vmatprep.subr.bf16.mxu0 0
        %1684 = vmatpush1.bf16.xpose.msra.mxu0 0
        %1685 = vmatprep.subr.bf16.mxu0 0
        %1686 = vmatpush1.bf16.xpose.msra.mxu0 0
        %1687 = vmatprep.mubr.bf16.mxu0 0
        %1688 = vmatmul.mubr.bf16.gmra.mrb[0].mxu0 %v1650
        %v1689 = vpop.f32.mrb[0].mxu0
        %v1690 = vadd.f32 0.0, %v1689
        %v1691 = vpop.f32.mrb[0].mxu0
        %v1692 = vpop.f32.mrb[0].mxu0
        %v1693 = vpop.f32.mrb[0].mxu0
        %1694 = vdwg.mxu0
        %v1695 = vsel %vm1536, %v1690, -inf
        %1696 = vmax.xlane.f32.xlu0 %v1695
        %v1697 = vpop.xlane.xlu0 %1696
        %v1698 = vsub.f32 %v1690, %v1697
        %v1699 = vmul.f32 %v1698, 1.442695
        %v1700 = vpow.pop %v1699
        %v1701 = vsel %vm1536, %v1700, 0.0
        %1702 = vadd.xlane.f32.xlu0 %v1701
        %v1703 = vpop.xlane.xlu0 %1702
        %v1704 = vrcp.pop %v1703
        %v1705 = vmul.f32 %v1700, %v1704
        %v1706 = vpack.c.bf16 %v1705, %v1705
        %1707 = vrot.lane.b32.xlu0 %v1532, 56
        %v1708 = vpop.permute.xlu0 %1707
        %v1710 = vsel %vm1536, %v1706, 0
        %v1713 = vsel %vm1600, %v1708, 0
        %1715 = vmatprep.subr.bf16.mxu0 0
        %1716 = vmatpush1.bf16.msra.mxu0 %v1713
        %1717 = vmatprep.subr.bf16.mxu0 0
        %1718 = vmatpush1.bf16.msra.mxu0 0
        %1719 = vmatprep.subr.bf16.mxu0 0
        %1720 = vmatpush1.bf16.msra.mxu0 0
        %1721 = vmatprep.subr.bf16.mxu0 0
        %1722 = vmatpush1.bf16.msra.mxu0 0
        %1723 = vmatprep.subr.bf16.mxu0 0
        %1724 = vmatpush1.bf16.msra.mxu0 0
        %1725 = vmatprep.subr.bf16.mxu0 0
        %1726 = vmatpush1.bf16.msra.mxu0 0
        %1727 = vmatprep.subr.bf16.mxu0 0
        %1728 = vmatpush1.bf16.msra.mxu0 0
        %1729 = vmatprep.subr.bf16.mxu0 0
        %1730 = vmatpush1.bf16.msra.mxu0 0
        %1731 = vmatprep.subr.bf16.mxu0 0
        %1732 = vmatpush1.bf16.msra.mxu0 0
        %1733 = vmatprep.subr.bf16.mxu0 0
        %1734 = vmatpush1.bf16.msra.mxu0 0
        %1735 = vmatprep.subr.bf16.mxu0 0
        %1736 = vmatpush1.bf16.msra.mxu0 0
        %1737 = vmatprep.subr.bf16.mxu0 0
        %1738 = vmatpush1.bf16.msra.mxu0 0
        %1739 = vmatprep.subr.bf16.mxu0 0
        %1740 = vmatpush1.bf16.msra.mxu0 0
        %1741 = vmatprep.subr.bf16.mxu0 0
        %1742 = vmatpush1.bf16.msra.mxu0 0
        %1743 = vmatprep.subr.bf16.mxu0 0
        %1744 = vmatpush1.bf16.msra.mxu0 0
        %1745 = vmatprep.subr.bf16.mxu0 0
        %1746 = vmatpush1.bf16.msra.mxu0 0
        %1747 = vmatprep.mubr.bf16.mxu0 0
        %1748 = vmatmul.mubr.bf16.gmra.mrb[0].mxu0 %v1710
        %v1749 = vpop.f32.mrb[0].mxu0
        %v1750 = vadd.f32 0.0, %v1749
        %v1751 = vpop.f32.mrb[0].mxu0
        %v1752 = vpop.f32.mrb[0].mxu0
        %v1753 = vpop.f32.mrb[0].mxu0
        %1754 = vdwg.mxu0
        %v1755 = vpack.c.bf16 %v1750, %v1750
        %v1757 = vsel %vm1536, %v1755, 0
        %v1760 = vsel %vm1600, %v1447, 0
        %1762 = vmatprep.subr.bf16.mxu0 0
        %1763 = vmatpush1.bf16.msra.mxu0 %v1760
        %1764 = vmatprep.subr.bf16.mxu0 0
        %1765 = vmatpush1.bf16.msra.mxu0 0
        %1766 = vmatprep.subr.bf16.mxu0 0
        %1767 = vmatpush1.bf16.msra.mxu0 0
        %1768 = vmatprep.subr.bf16.mxu0 0
        %1769 = vmatpush1.bf16.msra.mxu0 0
        %1770 = vmatprep.subr.bf16.mxu0 0
        %1771 = vmatpush1.bf16.msra.mxu0 0
        %1772 = vmatprep.subr.bf16.mxu0 0
        %1773 = vmatpush1.bf16.msra.mxu0 0
        %1774 = vmatprep.subr.bf16.mxu0 0
        %1775 = vmatpush1.bf16.msra.mxu0 0
        %1776 = vmatprep.subr.bf16.mxu0 0
        %1777 = vmatpush1.bf16.msra.mxu0 0
        %1778 = vmatprep.subr.bf16.mxu0 0
        %1779 = vmatpush1.bf16.msra.mxu0 0
        %1780 = vmatprep.subr.bf16.mxu0 0
        %1781 = vmatpush1.bf16.msra.mxu0 0
        %1782 = vmatprep.subr.bf16.mxu0 0
        %1783 = vmatpush1.bf16.msra.mxu0 0
        %1784 = vmatprep.subr.bf16.mxu0 0
        %1785 = vmatpush1.bf16.msra.mxu0 0
        %1786 = vmatprep.subr.bf16.mxu0 0
        %1787 = vmatpush1.bf16.msra.mxu0 0
        %1788 = vmatprep.subr.bf16.mxu0 0
        %1789 = vmatpush1.bf16.msra.mxu0 0
        %1790 = vmatprep.subr.bf16.mxu0 0
        %1791 = vmatpush1.bf16.msra.mxu0 0
        %1792 = vmatprep.subr.bf16.mxu0 0
        %1793 = vmatpush1.bf16.msra.mxu0 0
        %1794 = vmatprep.mubr.bf16.mxu0 0
        %1795 = vmatmul.mubr.bf16.gmra.mrb[0].mxu0 %v1757
        %v1796 = vpop.f32.mrb[0].mxu0
        %v1797 = vadd.f32 0.0, %v1796
        %v1798 = vpop.f32.mrb[0].mxu0
        %v1799 = vpop.f32.mrb[0].mxu0
        %v1800 = vpop.f32.mrb[0].mxu0
        %1801 = vdwg.mxu0
        %v1803 = vsel %vm1536, %v1644, 0
        %v1806 = vsel %vm1600, %v1446, 0
        %1808 = vmatprep.subr.bf16.mxu0 0
        %1809 = vmatpush1.bf16.msra.mxu0 %v1806
        %1810 = vmatprep.subr.bf16.mxu0 0
        %1811 = vmatpush1.bf16.msra.mxu0 0
        %1812 = vmatprep.subr.bf16.mxu0 0
        %1813 = vmatpush1.bf16.msra.mxu0 0
        %1814 = vmatprep.subr.bf16.mxu0 0
        %1815 = vmatpush1.bf16.msra.mxu0 0
        %1816 = vmatprep.subr.bf16.mxu0 0
        %1817 = vmatpush1.bf16.msra.mxu0 0
        %1818 = vmatprep.subr.bf16.mxu0 0
        %1819 = vmatpush1.bf16.msra.mxu0 0
        %1820 = vmatprep.subr.bf16.mxu0 0
        %1821 = vmatpush1.bf16.msra.mxu0 0
        %1822 = vmatprep.subr.bf16.mxu0 0
        %1823 = vmatpush1.bf16.msra.mxu0 0
        %1824 = vmatprep.subr.bf16.mxu0 0
        %1825 = vmatpush1.bf16.msra.mxu0 0
        %1826 = vmatprep.subr.bf16.mxu0 0
        %1827 = vmatpush1.bf16.msra.mxu0 0
        %1828 = vmatprep.subr.bf16.mxu0 0
        %1829 = vmatpush1.bf16.msra.mxu0 0
        %1830 = vmatprep.subr.bf16.mxu0 0
        %1831 = vmatpush1.bf16.msra.mxu0 0
        %1832 = vmatprep.subr.bf16.mxu0 0
        %1833 = vmatpush1.bf16.msra.mxu0 0
        %1834 = vmatprep.subr.bf16.mxu0 0
        %1835 = vmatpush1.bf16.msra.mxu0 0
        %1836 = vmatprep.subr.bf16.mxu0 0
        %1837 = vmatpush1.bf16.msra.mxu0 0
        %1838 = vmatprep.subr.bf16.mxu0 0
        %1839 = vmatpush1.bf16.msra.mxu0 0
        %1840 = vmatprep.mubr.bf16.mxu0 0
        %1841 = vmatmul.mubr.bf16.gmra.mrb[0].mxu0 %v1803
        %v1842 = vpop.f32.mrb[0].mxu0
        %v1843 = vadd.f32 %v1797, %v1842
        %v1844 = vpop.f32.mrb[0].mxu0
        %v1845 = vpop.f32.mrb[0].mxu0
        %v1846 = vpop.f32.mrb[0].mxu0
        %1847 = vdwg.mxu0
        %1848 = vrot.lane.b32.xlu0 %v1532, 112
        %v1849 = vpop.permute.xlu0 %1848
        %1850 = vrot.lane.b32.xlu0 %v1532, 80
        %v1851 = vpop.permute.xlu0 %1850
        %v1853 = vsel %vm1536, %v1849, 0
        %v1856 = vsel %vm1536, %v1851, 0
        %1858 = vmatprep.subr.bf16.mxu0 0
        %1859 = vmatpush1.bf16.xpose.msra.mxu0 %v1856
        %1860 = vmatprep.subr.bf16.mxu0 0
        %1861 = vmatpush1.bf16.xpose.msra.mxu0 0
        %1862 = vmatprep.subr.bf16.mxu0 0
        %1863 = vmatpush1.bf16.xpose.msra.mxu0 0
        %1864 = vmatprep.subr.bf16.mxu0 0
        %1865 = vmatpush1.bf16.xpose.msra.mxu0 0
        %1866 = vmatprep.subr.bf16.mxu0 0
        %1867 = vmatpush1.bf16.xpose.msra.mxu0 0
        %1868 = vmatprep.subr.bf16.mxu0 0
        %1869 = vmatpush1.bf16.xpose.msra.mxu0 0
        %1870 = vmatprep.subr.bf16.mxu0 0
        %1871 = vmatpush1.bf16.xpose.msra.mxu0 0
        %1872 = vmatprep.subr.bf16.mxu0 0
        %1873 = vmatpush1.bf16.xpose.msra.mxu0 0
        %1874 = vmatprep.subr.bf16.mxu0 0
        %1875 = vmatpush1.bf16.xpose.msra.mxu0 0
        %1876 = vmatprep.subr.bf16.mxu0 0
        %1877 = vmatpush1.bf16.xpose.msra.mxu0 0
        %1878 = vmatprep.subr.bf16.mxu0 0
        %1879 = vmatpush1.bf16.xpose.msra.mxu0 0
        %1880 = vmatprep.subr.bf16.mxu0 0
        %1881 = vmatpush1.bf16.xpose.msra.mxu0 0
        %1882 = vmatprep.subr.bf16.mxu0 0
        %1883 = vmatpush1.bf16.xpose.msra.mxu0 0
        %1884 = vmatprep.subr.bf16.mxu0 0
        %1885 = vmatpush1.bf16.xpose.msra.mxu0 0
        %1886 = vmatprep.subr.bf16.mxu0 0
        %1887 = vmatpush1.bf16.xpose.msra.mxu0 0
        %1888 = vmatprep.subr.bf16.mxu0 0
        %1889 = vmatpush1.bf16.xpose.msra.mxu0 0
        %1890 = vmatprep.mubr.bf16.mxu0 0
        %1891 = vmatmul.mubr.bf16.gmra.mrb[0].mxu0 %v1853
        %v1892 = vpop.f32.mrb[0].mxu0
        %v1893 = vadd.f32 0.0, %v1892
        %v1894 = vpop.f32.mrb[0].mxu0
        %v1895 = vpop.f32.mrb[0].mxu0
        %v1896 = vpop.f32.mrb[0].mxu0
        %1897 = vdwg.mxu0
        %v1898 = vsel %vm1536, %v1893, -inf
        %1899 = vmax.xlane.f32.xlu0 %v1898
        %v1900 = vpop.xlane.xlu0 %1899
        %v1901 = vsub.f32 %v1893, %v1900
        %v1902 = vmul.f32 %v1901, 1.442695
        %v1903 = vpow.pop %v1902
        %v1904 = vsel %vm1536, %v1903, 0.0
        %1905 = vadd.xlane.f32.xlu0 %v1904
        %v1906 = vpop.xlane.xlu0 %1905
        %v1907 = vrcp.pop %v1906
        %v1908 = vmul.f32 %v1903, %v1907
        %v1909 = vpack.c.bf16 %v1908, %v1908
        %1910 = vrot.lane.b32.xlu0 %v1532, 48
        %v1911 = vpop.permute.xlu0 %1910
        %v1913 = vsel %vm1536, %v1909, 0
        %v1916 = vsel %vm1600, %v1911, 0
        %1918 = vmatprep.subr.bf16.mxu0 0
        %1919 = vmatpush1.bf16.msra.mxu0 %v1916
        %1920 = vmatprep.subr.bf16.mxu0 0
        %1921 = vmatpush1.bf16.msra.mxu0 0
        %1922 = vmatprep.subr.bf16.mxu0 0
        %1923 = vmatpush1.bf16.msra.mxu0 0
        %1924 = vmatprep.subr.bf16.mxu0 0
        %1925 = vmatpush1.bf16.msra.mxu0 0
        %1926 = vmatprep.subr.bf16.mxu0 0
        %1927 = vmatpush1.bf16.msra.mxu0 0
        %1928 = vmatprep.subr.bf16.mxu0 0
        %1929 = vmatpush1.bf16.msra.mxu0 0
        %1930 = vmatprep.subr.bf16.mxu0 0
        %1931 = vmatpush1.bf16.msra.mxu0 0
        %1932 = vmatprep.subr.bf16.mxu0 0
        %1933 = vmatpush1.bf16.msra.mxu0 0
        %1934 = vmatprep.subr.bf16.mxu0 0
        %1935 = vmatpush1.bf16.msra.mxu0 0
        %1936 = vmatprep.subr.bf16.mxu0 0
        %1937 = vmatpush1.bf16.msra.mxu0 0
        %1938 = vmatprep.subr.bf16.mxu0 0
        %1939 = vmatpush1.bf16.msra.mxu0 0
        %1940 = vmatprep.subr.bf16.mxu0 0
        %1941 = vmatpush1.bf16.msra.mxu0 0
        %1942 = vmatprep.subr.bf16.mxu0 0
        %1943 = vmatpush1.bf16.msra.mxu0 0
        %1944 = vmatprep.subr.bf16.mxu0 0
        %1945 = vmatpush1.bf16.msra.mxu0 0
        %1946 = vmatprep.subr.bf16.mxu0 0
        %1947 = vmatpush1.bf16.msra.mxu0 0
        %1948 = vmatprep.subr.bf16.mxu0 0
        %1949 = vmatpush1.bf16.msra.mxu0 0
        %1950 = vmatprep.mubr.bf16.mxu0 0
        %1951 = vmatmul.mubr.bf16.gmra.mrb[0].mxu0 %v1913
        %v1952 = vpop.f32.mrb[0].mxu0
        %v1953 = vadd.f32 0.0, %v1952
        %v1954 = vpop.f32.mrb[0].mxu0
        %v1955 = vpop.f32.mrb[0].mxu0
        %v1956 = vpop.f32.mrb[0].mxu0
        %1957 = vdwg.mxu0
        %v1958 = vpack.c.bf16 %v1953, %v1953
        %v1960 = vsel %vm1536, %v1958, 0
        %v1963 = vsel %vm1600, %v1448, 0
        %1965 = vmatprep.subr.bf16.mxu0 0
        %1966 = vmatpush1.bf16.msra.mxu0 %v1963
        %1967 = vmatprep.subr.bf16.mxu0 0
        %1968 = vmatpush1.bf16.msra.mxu0 0
        %1969 = vmatprep.subr.bf16.mxu0 0
        %1970 = vmatpush1.bf16.msra.mxu0 0
        %1971 = vmatprep.subr.bf16.mxu0 0
        %1972 = vmatpush1.bf16.msra.mxu0 0
        %1973 = vmatprep.subr.bf16.mxu0 0
        %1974 = vmatpush1.bf16.msra.mxu0 0
        %1975 = vmatprep.subr.bf16.mxu0 0
        %1976 = vmatpush1.bf16.msra.mxu0 0
        %1977 = vmatprep.subr.bf16.mxu0 0
        %1978 = vmatpush1.bf16.msra.mxu0 0
        %1979 = vmatprep.subr.bf16.mxu0 0
        %1980 = vmatpush1.bf16.msra.mxu0 0
        %1981 = vmatprep.subr.bf16.mxu0 0
        %1982 = vmatpush1.bf16.msra.mxu0 0
        %1983 = vmatprep.subr.bf16.mxu0 0
        %1984 = vmatpush1.bf16.msra.mxu0 0
        %1985 = vmatprep.subr.bf16.mxu0 0
        %1986 = vmatpush1.bf16.msra.mxu0 0
        %1987 = vmatprep.subr.bf16.mxu0 0
        %1988 = vmatpush1.bf16.msra.mxu0 0
        %1989 = vmatprep.subr.bf16.mxu0 0
        %1990 = vmatpush1.bf16.msra.mxu0 0
        %1991 = vmatprep.subr.bf16.mxu0 0
        %1992 = vmatpush1.bf16.msra.mxu0 0
        %1993 = vmatprep.subr.bf16.mxu0 0
        %1994 = vmatpush1.bf16.msra.mxu0 0
        %1995 = vmatprep.subr.bf16.mxu0 0
        %1996 = vmatpush1.bf16.msra.mxu0 0
        %1997 = vmatprep.mubr.bf16.mxu0 0
        %1998 = vmatmul.mubr.bf16.gmra.mrb[0].mxu0 %v1960
        %v1999 = vpop.f32.mrb[0].mxu0
        %v2000 = vadd.f32 0.0, %v1999
        %v2001 = vpop.f32.mrb[0].mxu0
        %v2002 = vpop.f32.mrb[0].mxu0
        %v2003 = vpop.f32.mrb[0].mxu0
        %2004 = vdwg.mxu0
        %v2005 = vadd.f32 %v1843, %v2000
        %2006 = vrot.lane.b32.xlu0 %v1532, 104
        %v2007 = vpop.permute.xlu0 %2006
        %2008 = vrot.lane.b32.xlu0 %v1532, 72
        %v2009 = vpop.permute.xlu0 %2008
        %v2011 = vsel %vm1536, %v2007, 0
        %v2014 = vsel %vm1536, %v2009, 0
        %2016 = vmatprep.subr.bf16.mxu0 0
        %2017 = vmatpush1.bf16.xpose.msra.mxu0 %v2014
        %2018 = vmatprep.subr.bf16.mxu0 0
        %2019 = vmatpush1.bf16.xpose.msra.mxu0 0
        %2020 = vmatprep.subr.bf16.mxu0 0
        %2021 = vmatpush1.bf16.xpose.msra.mxu0 0
        %2022 = vmatprep.subr.bf16.mxu0 0
        %2023 = vmatpush1.bf16.xpose.msra.mxu0 0
        %2024 = vmatprep.subr.bf16.mxu0 0
        %2025 = vmatpush1.bf16.xpose.msra.mxu0 0
        %2026 = vmatprep.subr.bf16.mxu0 0
        %2027 = vmatpush1.bf16.xpose.msra.mxu0 0
        %2028 = vmatprep.subr.bf16.mxu0 0
        %2029 = vmatpush1.bf16.xpose.msra.mxu0 0
        %2030 = vmatprep.subr.bf16.mxu0 0
        %2031 = vmatpush1.bf16.xpose.msra.mxu0 0
        %2032 = vmatprep.subr.bf16.mxu0 0
        %2033 = vmatpush1.bf16.xpose.msra.mxu0 0
        %2034 = vmatprep.subr.bf16.mxu0 0
        %2035 = vmatpush1.bf16.xpose.msra.mxu0 0
        %2036 = vmatprep.subr.bf16.mxu0 0
        %2037 = vmatpush1.bf16.xpose.msra.mxu0 0
        %2038 = vmatprep.subr.bf16.mxu0 0
        %2039 = vmatpush1.bf16.xpose.msra.mxu0 0
        %2040 = vmatprep.subr.bf16.mxu0 0
        %2041 = vmatpush1.bf16.xpose.msra.mxu0 0
        %2042 = vmatprep.subr.bf16.mxu0 0
        %2043 = vmatpush1.bf16.xpose.msra.mxu0 0
        %2044 = vmatprep.subr.bf16.mxu0 0
        %2045 = vmatpush1.bf16.xpose.msra.mxu0 0
        %2046 = vmatprep.subr.bf16.mxu0 0
        %2047 = vmatpush1.bf16.xpose.msra.mxu0 0
        %2048 = vmatprep.mubr.bf16.mxu0 0
        %2049 = vmatmul.mubr.bf16.gmra.mrb[0].mxu0 %v2011
        %v2050 = vpop.f32.mrb[0].mxu0
        %v2051 = vadd.f32 0.0, %v2050
        %v2052 = vpop.f32.mrb[0].mxu0
        %v2053 = vpop.f32.mrb[0].mxu0
        %v2054 = vpop.f32.mrb[0].mxu0
        %2055 = vdwg.mxu0
        %v2056 = vsel %vm1536, %v2051, -inf
        %2057 = vmax.xlane.f32.xlu0 %v2056
        %v2058 = vpop.xlane.xlu0 %2057
        %v2059 = vsub.f32 %v2051, %v2058
        %v2060 = vmul.f32 %v2059, 1.442695
        %v2061 = vpow.pop %v2060
        %v2062 = vsel %vm1536, %v2061, 0.0
        %2063 = vadd.xlane.f32.xlu0 %v2062
        %v2064 = vpop.xlane.xlu0 %2063
        %v2065 = vrcp.pop %v2064
        %v2066 = vmul.f32 %v2061, %v2065
        %v2067 = vpack.c.bf16 %v2066, %v2066
        %2068 = vrot.lane.b32.xlu0 %v1532, 40
        %v2069 = vpop.permute.xlu0 %2068
        %v2071 = vsel %vm1536, %v2067, 0
        %v2074 = vsel %vm1600, %v2069, 0
        %2076 = vmatprep.subr.bf16.mxu0 0
        %2077 = vmatpush1.bf16.msra.mxu0 %v2074
        %2078 = vmatprep.subr.bf16.mxu0 0
        %2079 = vmatpush1.bf16.msra.mxu0 0
        %2080 = vmatprep.subr.bf16.mxu0 0
        %2081 = vmatpush1.bf16.msra.mxu0 0
        %2082 = vmatprep.subr.bf16.mxu0 0
        %2083 = vmatpush1.bf16.msra.mxu0 0
        %2084 = vmatprep.subr.bf16.mxu0 0
        %2085 = vmatpush1.bf16.msra.mxu0 0
        %2086 = vmatprep.subr.bf16.mxu0 0
        %2087 = vmatpush1.bf16.msra.mxu0 0
        %2088 = vmatprep.subr.bf16.mxu0 0
        %2089 = vmatpush1.bf16.msra.mxu0 0
        %2090 = vmatprep.subr.bf16.mxu0 0
        %2091 = vmatpush1.bf16.msra.mxu0 0
        %2092 = vmatprep.subr.bf16.mxu0 0
        %2093 = vmatpush1.bf16.msra.mxu0 0
        %2094 = vmatprep.subr.bf16.mxu0 0
        %2095 = vmatpush1.bf16.msra.mxu0 0
        %2096 = vmatprep.subr.bf16.mxu0 0
        %2097 = vmatpush1.bf16.msra.mxu0 0
        %2098 = vmatprep.subr.bf16.mxu0 0
        %2099 = vmatpush1.bf16.msra.mxu0 0
        %2100 = vmatprep.subr.bf16.mxu0 0
        %2101 = vmatpush1.bf16.msra.mxu0 0
        %2102 = vmatprep.subr.bf16.mxu0 0
        %2103 = vmatpush1.bf16.msra.mxu0 0
        %2104 = vmatprep.subr.bf16.mxu0 0
        %2105 = vmatpush1.bf16.msra.mxu0 0
        %2106 = vmatprep.subr.bf16.mxu0 0
        %2107 = vmatpush1.bf16.msra.mxu0 0
        %2108 = vmatprep.mubr.bf16.mxu0 0
        %2109 = vmatmul.mubr.bf16.gmra.mrb[0].mxu0 %v2071
        %v2110 = vpop.f32.mrb[0].mxu0
        %v2111 = vadd.f32 0.0, %v2110
        %v2112 = vpop.f32.mrb[0].mxu0
        %v2113 = vpop.f32.mrb[0].mxu0
        %v2114 = vpop.f32.mrb[0].mxu0
        %2115 = vdwg.mxu0
        %v2116 = vpack.c.bf16 %v2111, %v2111
        %v2118 = vsel %vm1536, %v2116, 0
        %v2121 = vsel %vm1600, %v1449, 0
        %2123 = vmatprep.subr.bf16.mxu0 0
        %2124 = vmatpush1.bf16.msra.mxu0 %v2121
        %2125 = vmatprep.subr.bf16.mxu0 0
        %2126 = vmatpush1.bf16.msra.mxu0 0
        %2127 = vmatprep.subr.bf16.mxu0 0
        %2128 = vmatpush1.bf16.msra.mxu0 0
        %2129 = vmatprep.subr.bf16.mxu0 0
        %2130 = vmatpush1.bf16.msra.mxu0 0
        %2131 = vmatprep.subr.bf16.mxu0 0
        %2132 = vmatpush1.bf16.msra.mxu0 0
        %2133 = vmatprep.subr.bf16.mxu0 0
        %2134 = vmatpush1.bf16.msra.mxu0 0
        %2135 = vmatprep.subr.bf16.mxu0 0
        %2136 = vmatpush1.bf16.msra.mxu0 0
        %2137 = vmatprep.subr.bf16.mxu0 0
        %2138 = vmatpush1.bf16.msra.mxu0 0
        %2139 = vmatprep.subr.bf16.mxu0 0
        %2140 = vmatpush1.bf16.msra.mxu0 0
        %2141 = vmatprep.subr.bf16.mxu0 0
        %2142 = vmatpush1.bf16.msra.mxu0 0
        %2143 = vmatprep.subr.bf16.mxu0 0
        %2144 = vmatpush1.bf16.msra.mxu0 0
        %2145 = vmatprep.subr.bf16.mxu0 0
        %2146 = vmatpush1.bf16.msra.mxu0 0
        %2147 = vmatprep.subr.bf16.mxu0 0
        %2148 = vmatpush1.bf16.msra.mxu0 0
        %2149 = vmatprep.subr.bf16.mxu0 0
        %2150 = vmatpush1.bf16.msra.mxu0 0
        %2151 = vmatprep.subr.bf16.mxu0 0
        %2152 = vmatpush1.bf16.msra.mxu0 0
        %2153 = vmatprep.subr.bf16.mxu0 0
        %2154 = vmatpush1.bf16.msra.mxu0 0
        %2155 = vmatprep.mubr.bf16.mxu0 0
        %2156 = vmatmul.mubr.bf16.gmra.mrb[0].mxu0 %v2118
        %v2157 = vpop.f32.mrb[0].mxu0
        %v2158 = vadd.f32 0.0, %v2157
        %v2159 = vpop.f32.mrb[0].mxu0
        %v2160 = vpop.f32.mrb[0].mxu0
        %v2161 = vpop.f32.mrb[0].mxu0
        %2162 = vdwg.mxu0
        %v2163 = vadd.f32 %v2005, %v2158
        %v2165 = vlaneseq
        %v2166 = vshrl.u32 %v2165, 7
        %v2167 = vsub.s32 0, %v2166
        %v2168 = vrot.slane %v1450, %v2167
        %v2170 = vadd.f32 %v2163, %v2168
        %v2171 = vadd.f32 %v1440, %v2170
        %v2172 = vsel %vm1488, %v2171, 0.0
        %2173 = vadd.xlane.f32.xlu0 %v2172
        %v2174 = vpop.xlane.xlu0 %2173
        %v2175 = vrcp.pop 32.0
        %v2176 = vmul.f32 %v2174, %v2175
        %v2177 = vsub.f32 %v2171, %v2176
        %v2178 = vmul.f32 %v2177, %v2177
        %v2179 = vsel %vm1488, %v2178, 0.0
        %2180 = vadd.xlane.f32.xlu0 %v2179
        %v2181 = vpop.xlane.xlu0 %2180
        %v2182 = vmul.f32 %v2181, %v2175
        %v2183 = vadd.f32 %v2182, 1e-05
        %v2184 = vrsqrt.pop %v2183
        %v2185 = vmul.f32 %v2177, %v2184
        %v2187 = vlaneseq
        %v2188 = vshrl.u32 %v2187, 7
        %v2189 = vsub.s32 0, %v2188
        %v2190 = vrot.slane %v1465, %v2189
        %v2192 = vmul.f32 %v2185, %v2190
        %v2194 = vlaneseq
        %v2195 = vshrl.u32 %v2194, 7
        %v2196 = vsub.s32 0, %v2195
        %v2197 = vrot.slane %v1466, %v2196
        %v2199 = vadd.f32 %v2192, %v2197
        %v2200 = vpack.c.bf16 %v2199, %v2199
        %v2202 = vlaneseq
        %v2203 = vshrl.u32 %v2202, 7
        %v2204 = vsub.s32 0, %v2203
        %v2205 = vrot.slane %v1455, %v2204
        %v2211 = vunpack.c.l.b16 %v1451
        %v2212 = vunpack.c.l.b16 %v1452
        %v2213 = vunpack.c.l.b16 %v1453
        %v2214 = vunpack.c.l.b16 %v1454
        %v2215 = vpack.c.b16 %v2212, %v2211
        %v2216 = vpack.c.b16 %v2214, %v2213
        %v2220 = vsel %vm1488, %v2200, 0
        %2222 = vmatprep.subr.bf16.mxu0 0
        %2223 = vmatpush1.bf16.msra.mxu0 %v2215
        %2224 = vmatprep.subr.bf16.mxu0 0
        %2225 = vmatpush1.bf16.msra.mxu0 %v2216
        %2226 = vmatprep.subr.bf16.mxu0 0
        %2227 = vmatpush1.bf16.msra.mxu0 0
        %2228 = vmatprep.subr.bf16.mxu0 0
        %2229 = vmatpush1.bf16.msra.mxu0 0
        %2230 = vmatprep.subr.bf16.mxu0 0
        %2231 = vmatpush1.bf16.msra.mxu0 0
        %2232 = vmatprep.subr.bf16.mxu0 0
        %2233 = vmatpush1.bf16.msra.mxu0 0
        %2234 = vmatprep.subr.bf16.mxu0 0
        %2235 = vmatpush1.bf16.msra.mxu0 0
        %2236 = vmatprep.subr.bf16.mxu0 0
        %2237 = vmatpush1.bf16.msra.mxu0 0
        %2238 = vmatprep.subr.bf16.mxu0 0
        %2239 = vmatpush1.bf16.msra.mxu0 0
        %2240 = vmatprep.subr.bf16.mxu0 0
        %2241 = vmatpush1.bf16.msra.mxu0 0
        %2242 = vmatprep.subr.bf16.mxu0 0
        %2243 = vmatpush1.bf16.msra.mxu0 0
        %2244 = vmatprep.subr.bf16.mxu0 0
        %2245 = vmatpush1.bf16.msra.mxu0 0
        %2246 = vmatprep.subr.bf16.mxu0 0
        %2247 = vmatpush1.bf16.msra.mxu0 0
        %2248 = vmatprep.subr.bf16.mxu0 0
        %2249 = vmatpush1.bf16.msra.mxu0 0
        %2250 = vmatprep.subr.bf16.mxu0 0
        %2251 = vmatpush1.bf16.msra.mxu0 0
        %2252 = vmatprep.subr.bf16.mxu0 0
        %2253 = vmatpush1.bf16.msra.mxu0 0
        %2254 = vmatprep.mubr.bf16.mxu0 0
        %2255 = vmatmul.mubr.bf16.gmra.mrb[0].mxu0 %v2220
        %v2256 = vpop.f32.mrb[0].mxu0
        %v2257 = vadd.f32 %v2205, %v2256
        %v2258 = vpop.f32.mrb[0].mxu0
        %v2259 = vpop.f32.mrb[0].mxu0
        %v2260 = vpop.f32.mrb[0].mxu0
        %2261 = vdwg.mxu0
        %v2262 = vmax.f32 %v2257, 0.0
        %v2263 = vpack.c.bf16 %v2262, %v2262
        %v2265 = vlaneseq
        %v2266 = vshrl.u32 %v2265, 7
        %v2267 = vsub.s32 0, %v2266
        %v2268 = vrot.slane %v1464, %v2267
        %v2278 = vunpack.c.l.b16 %v1456
        %v2279 = vunpack.c.l.b16 %v1457
        %v2280 = vunpack.c.l.b16 %v1458
        %v2281 = vunpack.c.l.b16 %v1459
        %v2282 = vunpack.c.l.b16 %v1460
        %v2283 = vunpack.c.l.b16 %v1461
        %v2284 = vunpack.c.l.b16 %v1462
        %v2285 = vunpack.c.l.b16 %v1463
        %v2286 = vpack.c.b16 %v2279, %v2278
        %v2287 = vpack.c.b16 %v2281, %v2280
        %v2288 = vpack.c.b16 %v2283, %v2282
        %v2289 = vpack.c.b16 %v2285, %v2284
        %vm2294 = vcmask 523264
        %v2296 = vsel %vm2294, %v2263, 0
        %2298 = vmatprep.subr.bf16.mxu0 0
        %2299 = vmatpush1.bf16.msra.mxu0 %v2286
        %2300 = vmatprep.subr.bf16.mxu0 0
        %2301 = vmatpush1.bf16.msra.mxu0 %v2287
        %2302 = vmatprep.subr.bf16.mxu0 0
        %2303 = vmatpush1.bf16.msra.mxu0 %v2288
        %2304 = vmatprep.subr.bf16.mxu0 0
        %2305 = vmatpush1.bf16.msra.mxu0 %v2289
        %2306 = vmatprep.subr.bf16.mxu0 0
        %2307 = vmatpush1.bf16.msra.mxu0 0
        %2308 = vmatprep.subr.bf16.mxu0 0
        %2309 = vmatpush1.bf16.msra.mxu0 0
        %2310 = vmatprep.subr.bf16.mxu0 0
        %2311 = vmatpush1.bf16.msra.mxu0 0
        %2312 = vmatprep.subr.bf16.mxu0 0
        %2313 = vmatpush1.bf16.msra.mxu0 0
        %2314 = vmatprep.subr.bf16.mxu0 0
        %2315 = vmatpush1.bf16.msra.mxu0 0
        %2316 = vmatprep.subr.bf16.mxu0 0
        %2317 = vmatpush1.bf16.msra.mxu0 0
        %2318 = vmatprep.subr.bf16.mxu0 0
        %2319 = vmatpush1.bf16.msra.mxu0 0
        %2320 = vmatprep.subr.bf16.mxu0 0
        %2321 = vmatpush1.bf16.msra.mxu0 0
        %2322 = vmatprep.subr.bf16.mxu0 0
        %2323 = vmatpush1.bf16.msra.mxu0 0
        %2324 = vmatprep.subr.bf16.mxu0 0
        %2325 = vmatpush1.bf16.msra.mxu0 0
        %2326 = vmatprep.subr.bf16.mxu0 0
        %2327 = vmatpush1.bf16.msra.mxu0 0
        %2328 = vmatprep.subr.bf16.mxu0 0
        %2329 = vmatpush1.bf16.msra.mxu0 0
        %2330 = vmatprep.mubr.bf16.mxu0 0
        %2331 = vmatmul.mubr.bf16.gmra.mrb[0].mxu0 %v2296
        %v2332 = vpop.f32.mrb[0].mxu0
        %v2333 = vadd.f32 %v2268, %v2332
        %v2334 = vpop.f32.mrb[0].mxu0
        %v2335 = vpop.f32.mrb[0].mxu0
        %v2336 = vpop.f32.mrb[0].mxu0
        %2337 = vdwg.mxu0
        %v2338 = vadd.f32 %v2199, %v2333
        %v2339 = vsel %vm1488, %v2338, 0.0
        %2340 = vadd.xlane.f32.xlu0 %v2339
        %v2341 = vpop.xlane.xlu0 %2340
        %v2342 = vmul.f32 %v2341, %v2175
        %v2343 = vsub.f32 %v2338, %v2342
        %v2344 = vmul.f32 %v2343, %v2343
        %v2345 = vsel %vm1488, %v2344, 0.0
        %2346 = vadd.xlane.f32.xlu0 %v2345
        %v2347 = vpop.xlane.xlu0 %2346
        %v2348 = vmul.f32 %v2347, %v2175
        %v2349 = vadd.f32 %v2348, 1e-05
        %v2350 = vrsqrt.pop %v2349
        %v2351 = vmul.f32 %v2343, %v2350
        %v2353 = vlaneseq
        %v2354 = vshrl.u32 %v2353, 7
        %v2355 = vsub.s32 0, %v2354
        %v2356 = vrot.slane %v1467, %v2355
        %v2358 = vmul.f32 %v2351, %v2356
        %v2360 = vlaneseq
        %v2361 = vshrl.u32 %v2360, 7
        %v2362 = vsub.s32 0, %v2361
        %v2363 = vrot.slane %v1468, %v2362
        %v2365 = vadd.f32 %v2358, %v2363
        %v2366 = vld [vmem:[%s31] sm:$0xf]
        %v2367 = vld [vmem:[%s31 + $0x4] sm:$0xf]
        %v2368 = vld [vmem:[%s31 + $0x8] sm:$0xf]
        %v2369 = vld [vmem:[%s31 + $0xc] sm:$0xf]
        %v2370 = vld [vmem:[#allocation19] sm:$0x1]
        %v2371 = vld [vmem:[%s35] sm:$0xf]
        %v2372 = vld [vmem:[%s35 + $0x4] sm:$0xf]
        %v2373 = vld [vmem:[%s35 + $0x8] sm:$0xf]
        %v2374 = vld [vmem:[%s35 + $0xc] sm:$0xf]
        %v2375 = vld [vmem:[%s37] sm:$0x1]
        %v2376 = vld [vmem:[%s39] sm:$0xf]
        %v2377 = vld [vmem:[%s39 + $0x4] sm:$0xf]
        %v2378 = vld [vmem:[%s39 + $0x8] sm:$0xf]
        %v2379 = vld [vmem:[%s39 + $0xc] sm:$0xf]
        %v2380 = vld [vmem:[%s41] sm:$0x1]
        %v2381 = vld [vmem:[%s43] sm:$0xf]
        %v2382 = vld [vmem:[%s43 + $0x4] sm:$0xf]
        %v2383 = vld [vmem:[%s43 + $0x8] sm:$0xf]
        %v2384 = vld [vmem:[%s43 + $0xc] sm:$0xf]
        %v2385 = vld [vmem:[%s43 + $0x10] sm:$0xf]
        %v2386 = vld [vmem:[%s43 + $0x14] sm:$0xf]
        %v2387 = vld [vmem:[%s43 + $0x18] sm:$0xf]
        %v2388 = vld [vmem:[%s43 + $0x1c] sm:$0xf]
        %v2389 = vld [vmem:[%s45] sm:$0x1]
        %v2390 = vld [vmem:[%s47] sm:$0x1]
        %v2391 = vld [vmem:[%s49] sm:$0x1]
        %v2392 = vld [vmem:[%s51] sm:$0x1]
        %v2393 = vld [vmem:[%s53] sm:$0x1]
        %v2394 = vpack.c.bf16 %v2365, %v2365
        %v2396 = vlaneseq
        %v2397 = vshrl.u32 %v2396, 7
        %v2398 = vsub.s32 0, %v2397
        %v2399 = vrot.slane %v2370, %v2398
        %v2405 = vunpack.c.l.b16 %v2366
        %v2406 = vunpack.c.l.b16 %v2367
        %v2407 = vunpack.c.l.b16 %v2368
        %v2408 = vunpack.c.l.b16 %v2369
        %v2409 = vpack.c.b16 %v2406, %v2405
        %v2410 = vpack.c.b16 %v2408, %v2407
        %v2414 = vsel %vm1488, %v2394, 0
        %2416 = vmatprep.subr.bf16.mxu0 0
        %2417 = vmatpush1.bf16.msra.mxu0 %v2409
        %2418 = vmatprep.subr.bf16.mxu0 0
        %2419 = vmatpush1.bf16.msra.mxu0 %v2410
        %2420 = vmatprep.subr.bf16.mxu0 0
        %2421 = vmatpush1.bf16.msra.mxu0 0
        %2422 = vmatprep.subr.bf16.mxu0 0
        %2423 = vmatpush1.bf16.msra.mxu0 0
        %2424 = vmatprep.subr.bf16.mxu0 0
        %2425 = vmatpush1.bf16.msra.mxu0 0
        %2426 = vmatprep.subr.bf16.mxu0 0
        %2427 = vmatpush1.bf16.msra.mxu0 0
        %2428 = vmatprep.subr.bf16.mxu0 0
        %2429 = vmatpush1.bf16.msra.mxu0 0
        %2430 = vmatprep.subr.bf16.mxu0 0
        %2431 = vmatpush1.bf16.msra.mxu0 0
        %2432 = vmatprep.subr.bf16.mxu0 0
        %2433 = vmatpush1.bf16.msra.mxu0 0
        %2434 = vmatprep.subr.bf16.mxu0 0
        %2435 = vmatpush1.bf16.msra.mxu0 0
        %2436 = vmatprep.subr.bf16.mxu0 0
        %2437 = vmatpush1.bf16.msra.mxu0 0
        %2438 = vmatprep.subr.bf16.mxu0 0
        %2439 = vmatpush1.bf16.msra.mxu0 0
        %2440 = vmatprep.subr.bf16.mxu0 0
        %2441 = vmatpush1.bf16.msra.mxu0 0
        %2442 = vmatprep.subr.bf16.mxu0 0
        %2443 = vmatpush1.bf16.msra.mxu0 0
        %2444 = vmatprep.subr.bf16.mxu0 0
        %2445 = vmatpush1.bf16.msra.mxu0 0
        %2446 = vmatprep.subr.bf16.mxu0 0
        %2447 = vmatpush1.bf16.msra.mxu0 0
        %2448 = vmatprep.mubr.bf16.mxu0 0
        %2449 = vmatmul.mubr.bf16.gmra.mrb[0].mxu0 %v2414
        %v2450 = vpop.f32.mrb[0].mxu0
        %v2451 = vadd.f32 %v2399, %v2450
        %v2452 = vpop.f32.mrb[0].mxu0
        %v2453 = vpop.f32.mrb[0].mxu0
        %v2454 = vpop.f32.mrb[0].mxu0
        %2455 = vdwg.mxu0
        %v2456 = vpack.c.bf16 %v2451, %v2451
        %2458 = vrot.lane.b32.xlu0 %v2456, 96
        %v2459 = vpop.permute.xlu0 %2458
        %v2461 = vsel %vm1536, %v2456, 0
        %v2464 = vsel %vm1536, %v2459, 0
        %2466 = vmatprep.subr.bf16.mxu0 0
        %2467 = vmatpush1.bf16.xpose.msra.mxu0 %v2464
        %2468 = vmatprep.subr.bf16.mxu0 0
        %2469 = vmatpush1.bf16.xpose.msra.mxu0 0
        %2470 = vmatprep.subr.bf16.mxu0 0
        %2471 = vmatpush1.bf16.xpose.msra.mxu0 0
        %2472 = vmatprep.subr.bf16.mxu0 0
        %2473 = vmatpush1.bf16.xpose.msra.mxu0 0
        %2474 = vmatprep.subr.bf16.mxu0 0
        %2475 = vmatpush1.bf16.xpose.msra.mxu0 0
        %2476 = vmatprep.subr.bf16.mxu0 0
        %2477 = vmatpush1.bf16.xpose.msra.mxu0 0
        %2478 = vmatprep.subr.bf16.mxu0 0
        %2479 = vmatpush1.bf16.xpose.msra.mxu0 0
        %2480 = vmatprep.subr.bf16.mxu0 0
        %2481 = vmatpush1.bf16.xpose.msra.mxu0 0
        %2482 = vmatprep.subr.bf16.mxu0 0
        %2483 = vmatpush1.bf16.xpose.msra.mxu0 0
        %2484 = vmatprep.subr.bf16.mxu0 0
        %2485 = vmatpush1.bf16.xpose.msra.mxu0 0
        %2486 = vmatprep.subr.bf16.mxu0 0
        %2487 = vmatpush1.bf16.xpose.msra.mxu0 0
        %2488 = vmatprep.subr.bf16.mxu0 0
        %2489 = vmatpush1.bf16.xpose.msra.mxu0 0
        %2490 = vmatprep.subr.bf16.mxu0 0
        %2491 = vmatpush1.bf16.xpose.msra.mxu0 0
        %2492 = vmatprep.subr.bf16.mxu0 0
        %2493 = vmatpush1.bf16.xpose.msra.mxu0 0
        %2494 = vmatprep.subr.bf16.mxu0 0
        %2495 = vmatpush1.bf16.xpose.msra.mxu0 0
        %2496 = vmatprep.subr.bf16.mxu0 0
        %2497 = vmatpush1.bf16.xpose.msra.mxu0 0
        %2498 = vmatprep.mubr.bf16.mxu0 0
        %2499 = vmatmul.mubr.bf16.gmra.mrb[0].mxu0 %v2461
        %v2500 = vpop.f32.mrb[0].mxu0
        %v2501 = vadd.f32 0.0, %v2500
        %v2502 = vpop.f32.mrb[0].mxu0
        %v2503 = vpop.f32.mrb[0].mxu0
        %v2504 = vpop.f32.mrb[0].mxu0
        %2505 = vdwg.mxu0
        %v2506 = vsel %vm1536, %v2501, -inf
        %2507 = vmax.xlane.f32.xlu0 %v2506
        %v2508 = vpop.xlane.xlu0 %2507
        %v2509 = vsub.f32 %v2501, %v2508
        %v2510 = vmul.f32 %v2509, 1.442695
        %v2511 = vpow.pop %v2510
        %v2512 = vsel %vm1536, %v2511, 0.0
        %2513 = vadd.xlane.f32.xlu0 %v2512
        %v2514 = vpop.xlane.xlu0 %2513
        %v2515 = vrcp.pop %v2514
        %v2516 = vmul.f32 %v2511, %v2515
        %v2517 = vpack.c.bf16 %v2516, %v2516
        %2518 = vrot.lane.b32.xlu0 %v2456, 64
        %v2519 = vpop.permute.xlu0 %2518
        %v2521 = vsel %vm1536, %v2517, 0
        %v2524 = vsel %vm1600, %v2519, 0
        %2526 = vmatprep.subr.bf16.mxu0 0
        %2527 = vmatpush1.bf16.msra.mxu0 %v2524
        %2528 = vmatprep.subr.bf16.mxu0 0
        %2529 = vmatpush1.bf16.msra.mxu0 0
        %2530 = vmatprep.subr.bf16.mxu0 0
        %2531 = vmatpush1.bf16.msra.mxu0 0
        %2532 = vmatprep.subr.bf16.mxu0 0
        %2533 = vmatpush1.bf16.msra.mxu0 0
        %2534 = vmatprep.subr.bf16.mxu0 0
        %2535 = vmatpush1.bf16.msra.mxu0 0
        %2536 = vmatprep.subr.bf16.mxu0 0
        %2537 = vmatpush1.bf16.msra.mxu0 0
        %2538 = vmatprep.subr.bf16.mxu0 0
        %2539 = vmatpush1.bf16.msra.mxu0 0
        %2540 = vmatprep.subr.bf16.mxu0 0
        %2541 = vmatpush1.bf16.msra.mxu0 0
        %2542 = vmatprep.subr.bf16.mxu0 0
        %2543 = vmatpush1.bf16.msra.mxu0 0
        %2544 = vmatprep.subr.bf16.mxu0 0
        %2545 = vmatpush1.bf16.msra.mxu0 0
        %2546 = vmatprep.subr.bf16.mxu0 0
        %2547 = vmatpush1.bf16.msra.mxu0 0
        %2548 = vmatprep.subr.bf16.mxu0 0
        %2549 = vmatpush1.bf16.msra.mxu0 0
        %2550 = vmatprep.subr.bf16.mxu0 0
        %2551 = vmatpush1.bf16.msra.mxu0 0
        %2552 = vmatprep.subr.bf16.mxu0 0
        %2553 = vmatpush1.bf16.msra.mxu0 0
        %2554 = vmatprep.subr.bf16.mxu0 0
        %2555 = vmatpush1.bf16.msra.mxu0 0
        %2556 = vmatprep.subr.bf16.mxu0 0
        %2557 = vmatpush1.bf16.msra.mxu0 0
        %2558 = vmatprep.mubr.bf16.mxu0 0
        %2559 = vmatmul.mubr.bf16.gmra.mrb[0].mxu0 %v2521
        %v2560 = vpop.f32.mrb[0].mxu0
        %v2561 = vadd.f32 0.0, %v2560
        %v2562 = vpop.f32.mrb[0].mxu0
        %v2563 = vpop.f32.mrb[0].mxu0
        %v2564 = vpop.f32.mrb[0].mxu0
        %2565 = vdwg.mxu0
        %v2566 = vpack.c.bf16 %v2561, %v2561
        %2567 = vrot.lane.b32.xlu0 %v2456, 120
        %v2568 = vpop.permute.xlu0 %2567
        %2569 = vrot.lane.b32.xlu0 %v2456, 88
        %v2570 = vpop.permute.xlu0 %2569
        %v2572 = vsel %vm1536, %v2568, 0
        %v2575 = vsel %vm1536, %v2570, 0
        %2577 = vmatprep.subr.bf16.mxu0 0
        %2578 = vmatpush1.bf16.xpose.msra.mxu0 %v2575
        %2579 = vmatprep.subr.bf16.mxu0 0
        %2580 = vmatpush1.bf16.xpose.msra.mxu0 0
        %2581 = vmatprep.subr.bf16.mxu0 0
        %2582 = vmatpush1.bf16.xpose.msra.mxu0 0
        %2583 = vmatprep.subr.bf16.mxu0 0
        %2584 = vmatpush1.bf16.xpose.msra.mxu0 0
        %2585 = vmatprep.subr.bf16.mxu0 0
        %2586 = vmatpush1.bf16.xpose.msra.mxu0 0
        %2587 = vmatprep.subr.bf16.mxu0 0
        %2588 = vmatpush1.bf16.xpose.msra.mxu0 0
        %2589 = vmatprep.subr.bf16.mxu0 0
        %2590 = vmatpush1.bf16.xpose.msra.mxu0 0
        %2591 = vmatprep.subr.bf16.mxu0 0
        %2592 = vmatpush1.bf16.xpose.msra.mxu0 0
        %2593 = vmatprep.subr.bf16.mxu0 0
        %2594 = vmatpush1.bf16.xpose.msra.mxu0 0
        %2595 = vmatprep.subr.bf16.mxu0 0
        %2596 = vmatpush1.bf16.xpose.msra.mxu0 0
        %2597 = vmatprep.subr.bf16.mxu0 0
        %2598 = vmatpush1.bf16.xpose.msra.mxu0 0
        %2599 = vmatprep.subr.bf16.mxu0 0
        %2600 = vmatpush1.bf16.xpose.msra.mxu0 0
        %2601 = vmatprep.subr.bf16.mxu0 0
        %2602 = vmatpush1.bf16.xpose.msra.mxu0 0
        %2603 = vmatprep.subr.bf16.mxu0 0
        %2604 = vmatpush1.bf16.xpose.msra.mxu0 0
        %2605 = vmatprep.subr.bf16.mxu0 0
        %2606 = vmatpush1.bf16.xpose.msra.mxu0 0
        %2607 = vmatprep.subr.bf16.mxu0 0
        %2608 = vmatpush1.bf16.xpose.msra.mxu0 0
        %2609 = vmatprep.mubr.bf16.mxu0 0
        %2610 = vmatmul.mubr.bf16.gmra.mrb[0].mxu0 %v2572
        %v2611 = vpop.f32.mrb[0].mxu0
        %v2612 = vadd.f32 0.0, %v2611
        %v2613 = vpop.f32.mrb[0].mxu0
        %v2614 = vpop.f32.mrb[0].mxu0
        %v2615 = vpop.f32.mrb[0].mxu0
        %2616 = vdwg.mxu0
        %v2617 = vsel %vm1536, %v2612, -inf
        %2618 = vmax.xlane.f32.xlu0 %v2617
        %v2619 = vpop.xlane.xlu0 %2618
        %v2620 = vsub.f32 %v2612, %v2619
        %v2621 = vmul.f32 %v2620, 1.442695
        %v2622 = vpow.pop %v2621
        %v2623 = vsel %vm1536, %v2622, 0.0
        %2624 = vadd.xlane.f32.xlu0 %v2623
        %v2625 = vpop.xlane.xlu0 %2624
        %v2626 = vrcp.pop %v2625
        %v2627 = vmul.f32 %v2622, %v2626
        %v2628 = vpack.c.bf16 %v2627, %v2627
        %2629 = vrot.lane.b32.xlu0 %v2456, 56
        %v2630 = vpop.permute.xlu0 %2629
        %v2632 = vsel %vm1536, %v2628, 0
        %v2635 = vsel %vm1600, %v2630, 0
        %2637 = vmatprep.subr.bf16.mxu0 0
        %2638 = vmatpush1.bf16.msra.mxu0 %v2635
        %2639 = vmatprep.subr.bf16.mxu0 0
        %2640 = vmatpush1.bf16.msra.mxu0 0
        %2641 = vmatprep.subr.bf16.mxu0 0
        %2642 = vmatpush1.bf16.msra.mxu0 0
        %2643 = vmatprep.subr.bf16.mxu0 0
        %2644 = vmatpush1.bf16.msra.mxu0 0
        %2645 = vmatprep.subr.bf16.mxu0 0
        %2646 = vmatpush1.bf16.msra.mxu0 0
        %2647 = vmatprep.subr.bf16.mxu0 0
        %2648 = vmatpush1.bf16.msra.mxu0 0
        %2649 = vmatprep.subr.bf16.mxu0 0
        %2650 = vmatpush1.bf16.msra.mxu0 0
        %2651 = vmatprep.subr.bf16.mxu0 0
        %2652 = vmatpush1.bf16.msra.mxu0 0
        %2653 = vmatprep.subr.bf16.mxu0 0
        %2654 = vmatpush1.bf16.msra.mxu0 0
        %2655 = vmatprep.subr.bf16.mxu0 0
        %2656 = vmatpush1.bf16.msra.mxu0 0
        %2657 = vmatprep.subr.bf16.mxu0 0
        %2658 = vmatpush1.bf16.msra.mxu0 0
        %2659 = vmatprep.subr.bf16.mxu0 0
        %2660 = vmatpush1.bf16.msra.mxu0 0
        %2661 = vmatprep.subr.bf16.mxu0 0
        %2662 = vmatpush1.bf16.msra.mxu0 0
        %2663 = vmatprep.subr.bf16.mxu0 0
        %2664 = vmatpush1.bf16.msra.mxu0 0
        %2665 = vmatprep.subr.bf16.mxu0 0
        %2666 = vmatpush1.bf16.msra.mxu0 0
        %2667 = vmatprep.subr.bf16.mxu0 0
        %2668 = vmatpush1.bf16.msra.mxu0 0
        %2669 = vmatprep.mubr.bf16.mxu0 0
        %2670 = vmatmul.mubr.bf16.gmra.mrb[0].mxu0 %v2632
        %v2671 = vpop.f32.mrb[0].mxu0
        %v2672 = vadd.f32 0.0, %v2671
        %v2673 = vpop.f32.mrb[0].mxu0
        %v2674 = vpop.f32.mrb[0].mxu0
        %v2675 = vpop.f32.mrb[0].mxu0
        %2676 = vdwg.mxu0
        %v2677 = vpack.c.bf16 %v2672, %v2672
        %v2679 = vsel %vm1536, %v2677, 0
        %v2682 = vsel %vm1600, %v2372, 0
        %2684 = vmatprep.subr.bf16.mxu0 0
        %2685 = vmatpush1.bf16.msra.mxu0 %v2682
        %2686 = vmatprep.subr.bf16.mxu0 0
        %2687 = vmatpush1.bf16.msra.mxu0 0
        %2688 = vmatprep.subr.bf16.mxu0 0
        %2689 = vmatpush1.bf16.msra.mxu0 0
        %2690 = vmatprep.subr.bf16.mxu0 0
        %2691 = vmatpush1.bf16.msra.mxu0 0
        %2692 = vmatprep.subr.bf16.mxu0 0
        %2693 = vmatpush1.bf16.msra.mxu0 0
        %2694 = vmatprep.subr.bf16.mxu0 0
        %2695 = vmatpush1.bf16.msra.mxu0 0
        %2696 = vmatprep.subr.bf16.mxu0 0
        %2697 = vmatpush1.bf16.msra.mxu0 0
        %2698 = vmatprep.subr.bf16.mxu0 0
        %2699 = vmatpush1.bf16.msra.mxu0 0
        %2700 = vmatprep.subr.bf16.mxu0 0
        %2701 = vmatpush1.bf16.msra.mxu0 0
        %2702 = vmatprep.subr.bf16.mxu0 0
        %2703 = vmatpush1.bf16.msra.mxu0 0
        %2704 = vmatprep.subr.bf16.mxu0 0
        %2705 = vmatpush1.bf16.msra.mxu0 0
        %2706 = vmatprep.subr.bf16.mxu0 0
        %2707 = vmatpush1.bf16.msra.mxu0 0
        %2708 = vmatprep.subr.bf16.mxu0 0
        %2709 = vmatpush1.bf16.msra.mxu0 0
        %2710 = vmatprep.subr.bf16.mxu0 0
        %2711 = vmatpush1.bf16.msra.mxu0 0
        %2712 = vmatprep.subr.bf16.mxu0 0
        %2713 = vmatpush1.bf16.msra.mxu0 0
        %2714 = vmatprep.subr.bf16.mxu0 0
        %2715 = vmatpush1.bf16.msra.mxu0 0
        %2716 = vmatprep.mubr.bf16.mxu0 0
        %2717 = vmatmul.mubr.bf16.gmra.mrb[0].mxu0 %v2679
        %v2718 = vpop.f32.mrb[0].mxu0
        %v2719 = vadd.f32 0.0, %v2718
        %v2720 = vpop.f32.mrb[0].mxu0
        %v2721 = vpop.f32.mrb[0].mxu0
        %v2722 = vpop.f32.mrb[0].mxu0
        %2723 = vdwg.mxu0
        %v2725 = vsel %vm1536, %v2566, 0
        %v2728 = vsel %vm1600, %v2371, 0
        %2730 = vmatprep.subr.bf16.mxu0 0
        %2731 = vmatpush1.bf16.msra.mxu0 %v2728
        %2732 = vmatprep.subr.bf16.mxu0 0
        %2733 = vmatpush1.bf16.msra.mxu0 0
        %2734 = vmatprep.subr.bf16.mxu0 0
        %2735 = vmatpush1.bf16.msra.mxu0 0
        %2736 = vmatprep.subr.bf16.mxu0 0
        %2737 = vmatpush1.bf16.msra.mxu0 0
        %2738 = vmatprep.subr.bf16.mxu0 0
        %2739 = vmatpush1.bf16.msra.mxu0 0
        %2740 = vmatprep.subr.bf16.mxu0 0
        %2741 = vmatpush1.bf16.msra.mxu0 0
        %2742 = vmatprep.subr.bf16.mxu0 0
        %2743 = vmatpush1.bf16.msra.mxu0 0
        %2744 = vmatprep.subr.bf16.mxu0 0
        %2745 = vmatpush1.bf16.msra.mxu0 0
        %2746 = vmatprep.subr.bf16.mxu0 0
        %2747 = vmatpush1.bf16.msra.mxu0 0
        %2748 = vmatprep.subr.bf16.mxu0 0
        %2749 = vmatpush1.bf16.msra.mxu0 0
        %2750 = vmatprep.subr.bf16.mxu0 0
        %2751 = vmatpush1.bf16.msra.mxu0 0
        %2752 = vmatprep.subr.bf16.mxu0 0
        %2753 = vmatpush1.bf16.msra.mxu0 0
        %2754 = vmatprep.subr.bf16.mxu0 0
        %2755 = vmatpush1.bf16.msra.mxu0 0
        %2756 = vmatprep.subr.bf16.mxu0 0
        %2757 = vmatpush1.bf16.msra.mxu0 0
        %2758 = vmatprep.subr.bf16.mxu0 0
        %2759 = vmatpush1.bf16.msra.mxu0 0
        %2760 = vmatprep.subr.bf16.mxu0 0
        %2761 = vmatpush1.bf16.msra.mxu0 0
        %2762 = vmatprep.mubr.bf16.mxu0 0
        %2763 = vmatmul.mubr.bf16.gmra.mrb[0].mxu0 %v2725
        %v2764 = vpop.f32.mrb[0].mxu0
        %v2765 = vadd.f32 %v2719, %v2764
        %v2766 = vpop.f32.mrb[0].mxu0
        %v2767 = vpop.f32.mrb[0].mxu0
        %v2768 = vpop.f32.mrb[0].mxu0
        %2769 = vdwg.mxu0
        %2770 = vrot.lane.b32.xlu0 %v2456, 112
        %v2771 = vpop.permute.xlu0 %2770
        %2772 = vrot.lane.b32.xlu0 %v2456, 80
        %v2773 = vpop.permute.xlu0 %2772
        %v2775 = vsel %vm1536, %v2771, 0
        %v2778 = vsel %vm1536, %v2773, 0
        %2780 = vmatprep.subr.bf16.mxu0 0
        %2781 = vmatpush1.bf16.xpose.msra.mxu0 %v2778
        %2782 = vmatprep.subr.bf16.mxu0 0
        %2783 = vmatpush1.bf16.xpose.msra.mxu0 0
        %2784 = vmatprep.subr.bf16.mxu0 0
        %2785 = vmatpush1.bf16.xpose.msra.mxu0 0
        %2786 = vmatprep.subr.bf16.mxu0 0
        %2787 = vmatpush1.bf16.xpose.msra.mxu0 0
        %2788 = vmatprep.subr.bf16.mxu0 0
        %2789 = vmatpush1.bf16.xpose.msra.mxu0 0
        %2790 = vmatprep.subr.bf16.mxu0 0
        %2791 = vmatpush1.bf16.xpose.msra.mxu0 0
        %2792 = vmatprep.subr.bf16.mxu0 0
        %2793 = vmatpush1.bf16.xpose.msra.mxu0 0
        %2794 = vmatprep.subr.bf16.mxu0 0
        %2795 = vmatpush1.bf16.xpose.msra.mxu0 0
        %2796 = vmatprep.subr.bf16.mxu0 0
        %2797 = vmatpush1.bf16.xpose.msra.mxu0 0
        %2798 = vmatprep.subr.bf16.mxu0 0
        %2799 = vmatpush1.bf16.xpose.msra.mxu0 0
        %2800 = vmatprep.subr.bf16.mxu0 0
        %2801 = vmatpush1.bf16.xpose.msra.mxu0 0
        %2802 = vmatprep.subr.bf16.mxu0 0
        %2803 = vmatpush1.bf16.xpose.msra.mxu0 0
        %2804 = vmatprep.subr.bf16.mxu0 0
        %2805 = vmatpush1.bf16.xpose.msra.mxu0 0
        %2806 = vmatprep.subr.bf16.mxu0 0
        %2807 = vmatpush1.bf16.xpose.msra.mxu0 0
        %2808 = vmatprep.subr.bf16.mxu0 0
        %2809 = vmatpush1.bf16.xpose.msra.mxu0 0
        %2810 = vmatprep.subr.bf16.mxu0 0
        %2811 = vmatpush1.bf16.xpose.msra.mxu0 0
        %2812 = vmatprep.mubr.bf16.mxu0 0
        %2813 = vmatmul.mubr.bf16.gmra.mrb[0].mxu0 %v2775
        %v2814 = vpop.f32.mrb[0].mxu0
        %v2815 = vadd.f32 0.0, %v2814
        %v2816 = vpop.f32.mrb[0].mxu0
        %v2817 = vpop.f32.mrb[0].mxu0
        %v2818 = vpop.f32.mrb[0].mxu0
        %2819 = vdwg.mxu0
        %v2820 = vsel %vm1536, %v2815, -inf
        %2821 = vmax.xlane.f32.xlu0 %v2820
        %v2822 = vpop.xlane.xlu0 %2821
        %v2823 = vsub.f32 %v2815, %v2822
        %v2824 = vmul.f32 %v2823, 1.442695
        %v2825 = vpow.pop %v2824
        %v2826 = vsel %vm1536, %v2825, 0.0
        %2827 = vadd.xlane.f32.xlu0 %v2826
        %v2828 = vpop.xlane.xlu0 %2827
        %v2829 = vrcp.pop %v2828
        %v2830 = vmul.f32 %v2825, %v2829
        %v2831 = vpack.c.bf16 %v2830, %v2830
        %2832 = vrot.lane.b32.xlu0 %v2456, 48
        %v2833 = vpop.permute.xlu0 %2832
        %v2835 = vsel %vm1536, %v2831, 0
        %v2838 = vsel %vm1600, %v2833, 0
        %2840 = vmatprep.subr.bf16.mxu0 0
        %2841 = vmatpush1.bf16.msra.mxu0 %v2838
        %2842 = vmatprep.subr.bf16.mxu0 0
        %2843 = vmatpush1.bf16.msra.mxu0 0
        %2844 = vmatprep.subr.bf16.mxu0 0
        %2845 = vmatpush1.bf16.msra.mxu0 0
        %2846 = vmatprep.subr.bf16.mxu0 0
        %2847 = vmatpush1.bf16.msra.mxu0 0
        %2848 = vmatprep.subr.bf16.mxu0 0
        %2849 = vmatpush1.bf16.msra.mxu0 0
        %2850 = vmatprep.subr.bf16.mxu0 0
        %2851 = vmatpush1.bf16.msra.mxu0 0
        %2852 = vmatprep.subr.bf16.mxu0 0
        %2853 = vmatpush1.bf16.msra.mxu0 0
        %2854 = vmatprep.subr.bf16.mxu0 0
        %2855 = vmatpush1.bf16.msra.mxu0 0
        %2856 = vmatprep.subr.bf16.mxu0 0
        %2857 = vmatpush1.bf16.msra.mxu0 0
        %2858 = vmatprep.subr.bf16.mxu0 0
        %2859 = vmatpush1.bf16.msra.mxu0 0
        %2860 = vmatprep.subr.bf16.mxu0 0
        %2861 = vmatpush1.bf16.msra.mxu0 0
        %2862 = vmatprep.subr.bf16.mxu0 0
        %2863 = vmatpush1.bf16.msra.mxu0 0
        %2864 = vmatprep.subr.bf16.mxu0 0
        %2865 = vmatpush1.bf16.msra.mxu0 0
        %2866 = vmatprep.subr.bf16.mxu0 0
        %2867 = vmatpush1.bf16.msra.mxu0 0
        %2868 = vmatprep.subr.bf16.mxu0 0
        %2869 = vmatpush1.bf16.msra.mxu0 0
        %2870 = vmatprep.subr.bf16.mxu0 0
        %2871 = vmatpush1.bf16.msra.mxu0 0
        %2872 = vmatprep.mubr.bf16.mxu0 0
        %2873 = vmatmul.mubr.bf16.gmra.mrb[0].mxu0 %v2835
        %v2874 = vpop.f32.mrb[0].mxu0
        %v2875 = vadd.f32 0.0, %v2874
        %v2876 = vpop.f32.mrb[0].mxu0
        %v2877 = vpop.f32.mrb[0].mxu0
        %v2878 = vpop.f32.mrb[0].mxu0
        %2879 = vdwg.mxu0
        %v2880 = vpack.c.bf16 %v2875, %v2875
        %v2882 = vsel %vm1536, %v2880, 0
        %v2885 = vsel %vm1600, %v2373, 0
        %2887 = vmatprep.subr.bf16.mxu0 0
        %2888 = vmatpush1.bf16.msra.mxu0 %v2885
        %2889 = vmatprep.subr.bf16.mxu0 0
        %2890 = vmatpush1.bf16.msra.mxu0 0
        %2891 = vmatprep.subr.bf16.mxu0 0
        %2892 = vmatpush1.bf16.msra.mxu0 0
        %2893 = vmatprep.subr.bf16.mxu0 0
        %2894 = vmatpush1.bf16.msra.mxu0 0
        %2895 = vmatprep.subr.bf16.mxu0 0
        %2896 = vmatpush1.bf16.msra.mxu0 0
        %2897 = vmatprep.subr.bf16.mxu0 0
        %2898 = vmatpush1.bf16.msra.mxu0 0
        %2899 = vmatprep.subr.bf16.mxu0 0
        %2900 = vmatpush1.bf16.msra.mxu0 0
        %2901 = vmatprep.subr.bf16.mxu0 0
        %2902 = vmatpush1.bf16.msra.mxu0 0
        %2903 = vmatprep.subr.bf16.mxu0 0
        %2904 = vmatpush1.bf16.msra.mxu0 0
        %2905 = vmatprep.subr.bf16.mxu0 0
        %2906 = vmatpush1.bf16.msra.mxu0 0
        %2907 = vmatprep.subr.bf16.mxu0 0
        %2908 = vmatpush1.bf16.msra.mxu0 0
        %2909 = vmatprep.subr.bf16.mxu0 0
        %2910 = vmatpush1.bf16.msra.mxu0 0
        %2911 = vmatprep.subr.bf16.mxu0 0
        %2912 = vmatpush1.bf16.msra.mxu0 0
        %2913 = vmatprep.subr.bf16.mxu0 0
        %2914 = vmatpush1.bf16.msra.mxu0 0
        %2915 = vmatprep.subr.bf16.mxu0 0
        %2916 = vmatpush1.bf16.msra.mxu0 0
        %2917 = vmatprep.subr.bf16.mxu0 0
        %2918 = vmatpush1.bf16.msra.mxu0 0
        %2919 = vmatprep.mubr.bf16.mxu0 0
        %2920 = vmatmul.mubr.bf16.gmra.mrb[0].mxu0 %v2882
        %v2921 = vpop.f32.mrb[0].mxu0
        %v2922 = vadd.f32 0.0, %v2921
        %v2923 = vpop.f32.mrb[0].mxu0
        %v2924 = vpop.f32.mrb[0].mxu0
        %v2925 = vpop.f32.mrb[0].mxu0
        %2926 = vdwg.mxu0
        %v2927 = vadd.f32 %v2765, %v2922
        %2928 = vrot.lane.b32.xlu0 %v2456, 104
        %v2929 = vpop.permute.xlu0 %2928
        %2930 = vrot.lane.b32.xlu0 %v2456, 72
        %v2931 = vpop.permute.xlu0 %2930
        %v2933 = vsel %vm1536, %v2929, 0
        %v2936 = vsel %vm1536, %v2931, 0
        %2938 = vmatprep.subr.bf16.mxu0 0
        %2939 = vmatpush1.bf16.xpose.msra.mxu0 %v2936
        %2940 = vmatprep.subr.bf16.mxu0 0
        %2941 = vmatpush1.bf16.xpose.msra.mxu0 0
        %2942 = vmatprep.subr.bf16.mxu0 0
        %2943 = vmatpush1.bf16.xpose.msra.mxu0 0
        %2944 = vmatprep.subr.bf16.mxu0 0
        %2945 = vmatpush1.bf16.xpose.msra.mxu0 0
        %2946 = vmatprep.subr.bf16.mxu0 0
        %2947 = vmatpush1.bf16.xpose.msra.mxu0 0
        %2948 = vmatprep.subr.bf16.mxu0 0
        %2949 = vmatpush1.bf16.xpose.msra.mxu0 0
        %2950 = vmatprep.subr.bf16.mxu0 0
        %2951 = vmatpush1.bf16.xpose.msra.mxu0 0
        %2952 = vmatprep.subr.bf16.mxu0 0
        %2953 = vmatpush1.bf16.xpose.msra.mxu0 0
        %2954 = vmatprep.subr.bf16.mxu0 0
        %2955 = vmatpush1.bf16.xpose.msra.mxu0 0
        %2956 = vmatprep.subr.bf16.mxu0 0
        %2957 = vmatpush1.bf16.xpose.msra.mxu0 0
        %2958 = vmatprep.subr.bf16.mxu0 0
        %2959 = vmatpush1.bf16.xpose.msra.mxu0 0
        %2960 = vmatprep.subr.bf16.mxu0 0
        %2961 = vmatpush1.bf16.xpose.msra.mxu0 0
        %2962 = vmatprep.subr.bf16.mxu0 0
        %2963 = vmatpush1.bf16.xpose.msra.mxu0 0
        %2964 = vmatprep.subr.bf16.mxu0 0
        %2965 = vmatpush1.bf16.xpose.msra.mxu0 0
        %2966 = vmatprep.subr.bf16.mxu0 0
        %2967 = vmatpush1.bf16.xpose.msra.mxu0 0
        %2968 = vmatprep.subr.bf16.mxu0 0
        %2969 = vmatpush1.bf16.xpose.msra.mxu0 0
        %2970 = vmatprep.mubr.bf16.mxu0 0
        %2971 = vmatmul.mubr.bf16.gmra.mrb[0].mxu0 %v2933
        %v2972 = vpop.f32.mrb[0].mxu0
        %v2973 = vadd.f32 0.0, %v2972
        %v2974 = vpop.f32.mrb[0].mxu0
        %v2975 = vpop.f32.mrb[0].mxu0
        %v2976 = vpop.f32.mrb[0].mxu0
        %2977 = vdwg.mxu0
        %v2978 = vsel %vm1536, %v2973, -inf
        %2979 = vmax.xlane.f32.xlu0 %v2978
        %v2980 = vpop.xlane.xlu0 %2979
        %v2981 = vsub.f32 %v2973, %v2980
        %v2982 = vmul.f32 %v2981, 1.442695
        %v2983 = vpow.pop %v2982
        %v2984 = vsel %vm1536, %v2983, 0.0
        %2985 = vadd.xlane.f32.xlu0 %v2984
        %v2986 = vpop.xlane.xlu0 %2985
        %v2987 = vrcp.pop %v2986
        %v2988 = vmul.f32 %v2983, %v2987
        %v2989 = vpack.c.bf16 %v2988, %v2988
        %2990 = vrot.lane.b32.xlu0 %v2456, 40
        %v2991 = vpop.permute.xlu0 %2990
        %v2993 = vsel %vm1536, %v2989, 0
        %v2996 = vsel %vm1600, %v2991, 0
        %2998 = vmatprep.subr.bf16.mxu0 0
        %2999 = vmatpush1.bf16.msra.mxu0 %v2996
        %3000 = vmatprep.subr.bf16.mxu0 0
        %3001 = vmatpush1.bf16.msra.mxu0 0
        %3002 = vmatprep.subr.bf16.mxu0 0
        %3003 = vmatpush1.bf16.msra.mxu0 0
        %3004 = vmatprep.subr.bf16.mxu0 0
        %3005 = vmatpush1.bf16.msra.mxu0 0
        %3006 = vmatprep.subr.bf16.mxu0 0
        %3007 = vmatpush1.bf16.msra.mxu0 0
        %3008 = vmatprep.subr.bf16.mxu0 0
        %3009 = vmatpush1.bf16.msra.mxu0 0
        %3010 = vmatprep.subr.bf16.mxu0 0
        %3011 = vmatpush1.bf16.msra.mxu0 0
        %3012 = vmatprep.subr.bf16.mxu0 0
        %3013 = vmatpush1.bf16.msra.mxu0 0
        %3014 = vmatprep.subr.bf16.mxu0 0
        %3015 = vmatpush1.bf16.msra.mxu0 0
        %3016 = vmatprep.subr.bf16.mxu0 0
        %3017 = vmatpush1.bf16.msra.mxu0 0
        %3018 = vmatprep.subr.bf16.mxu0 0
        %3019 = vmatpush1.bf16.msra.mxu0 0
        %3020 = vmatprep.subr.bf16.mxu0 0
        %3021 = vmatpush1.bf16.msra.mxu0 0
        %3022 = vmatprep.subr.bf16.mxu0 0
        %3023 = vmatpush1.bf16.msra.mxu0 0
        %3024 = vmatprep.subr.bf16.mxu0 0
        %3025 = vmatpush1.bf16.msra.mxu0 0
        %3026 = vmatprep.subr.bf16.mxu0 0
        %3027 = vmatpush1.bf16.msra.mxu0 0
        %3028 = vmatprep.subr.bf16.mxu0 0
        %3029 = vmatpush1.bf16.msra.mxu0 0
        %3030 = vmatprep.mubr.bf16.mxu0 0
        %3031 = vmatmul.mubr.bf16.gmra.mrb[0].mxu0 %v2993
        %v3032 = vpop.f32.mrb[0].mxu0
        %v3033 = vadd.f32 0.0, %v3032
        %v3034 = vpop.f32.mrb[0].mxu0
        %v3035 = vpop.f32.mrb[0].mxu0
        %v3036 = vpop.f32.mrb[0].mxu0
        %3037 = vdwg.mxu0
        %v3038 = vpack.c.bf16 %v3033, %v3033
        %v3040 = vsel %vm1536, %v3038, 0
        %v3043 = vsel %vm1600, %v2374, 0
        %3045 = vmatprep.subr.bf16.mxu0 0
        %3046 = vmatpush1.bf16.msra.mxu0 %v3043
        %3047 = vmatprep.subr.bf16.mxu0 0
        %3048 = vmatpush1.bf16.msra.mxu0 0
        %3049 = vmatprep.subr.bf16.mxu0 0
        %3050 = vmatpush1.bf16.msra.mxu0 0
        %3051 = vmatprep.subr.bf16.mxu0 0
        %3052 = vmatpush1.bf16.msra.mxu0 0
        %3053 = vmatprep.subr.bf16.mxu0 0
        %3054 = vmatpush1.bf16.msra.mxu0 0
        %3055 = vmatprep.subr.bf16.mxu0 0
        %3056 = vmatpush1.bf16.msra.mxu0 0
        %3057 = vmatprep.subr.bf16.mxu0 0
        %3058 = vmatpush1.bf16.msra.mxu0 0
        %3059 = vmatprep.subr.bf16.mxu0 0
        %3060 = vmatpush1.bf16.msra.mxu0 0
        %3061 = vmatprep.subr.bf16.mxu0 0
        %3062 = vmatpush1.bf16.msra.mxu0 0
        %3063 = vmatprep.subr.bf16.mxu0 0
        %3064 = vmatpush1.bf16.msra.mxu0 0
        %3065 = vmatprep.subr.bf16.mxu0 0
        %3066 = vmatpush1.bf16.msra.mxu0 0
        %3067 = vmatprep.subr.bf16.mxu0 0
        %3068 = vmatpush1.bf16.msra.mxu0 0
        %3069 = vmatprep.subr.bf16.mxu0 0
        %3070 = vmatpush1.bf16.msra.mxu0 0
        %3071 = vmatprep.subr.bf16.mxu0 0
        %3072 = vmatpush1.bf16.msra.mxu0 0
        %3073 = vmatprep.subr.bf16.mxu0 0
        %3074 = vmatpush1.bf16.msra.mxu0 0
        %3075 = vmatprep.subr.bf16.mxu0 0
        %3076 = vmatpush1.bf16.msra.mxu0 0
        %3077 = vmatprep.mubr.bf16.mxu0 0
        %3078 = vmatmul.mubr.bf16.gmra.mrb[0].mxu0 %v3040
        %v3079 = vpop.f32.mrb[0].mxu0
        %v3080 = vadd.f32 0.0, %v3079
        %v3081 = vpop.f32.mrb[0].mxu0
        %v3082 = vpop.f32.mrb[0].mxu0
        %v3083 = vpop.f32.mrb[0].mxu0
        %3084 = vdwg.mxu0
        %v3085 = vadd.f32 %v2927, %v3080
        %v3087 = vlaneseq
        %v3088 = vshrl.u32 %v3087, 7
        %v3089 = vsub.s32 0, %v3088
        %v3090 = vrot.slane %v2375, %v3089
        %v3092 = vadd.f32 %v3085, %v3090
        %v3093 = vadd.f32 %v2365, %v3092
        %v3094 = vsel %vm1488, %v3093, 0.0
        %3095 = vadd.xlane.f32.xlu0 %v3094
        %v3096 = vpop.xlane.xlu0 %3095
        %v3097 = vmul.f32 %v3096, %v2175
        %v3098 = vsub.f32 %v3093, %v3097
        %v3099 = vmul.f32 %v3098, %v3098
        %v3100 = vsel %vm1488, %v3099, 0.0
        %3101 = vadd.xlane.f32.xlu0 %v3100
        %v3102 = vpop.xlane.xlu0 %3101
        %v3103 = vmul.f32 %v3102, %v2175
        %v3104 = vadd.f32 %v3103, 1e-05
        %v3105 = vrsqrt.pop %v3104
        %v3106 = vmul.f32 %v3098, %v3105
        %v3108 = vlaneseq
        %v3109 = vshrl.u32 %v3108, 7
        %v3110 = vsub.s32 0, %v3109
        %v3111 = vrot.slane %v2390, %v3110
        %v3113 = vmul.f32 %v3106, %v3111
        %v3115 = vlaneseq
        %v3116 = vshrl.u32 %v3115, 7
        %v3117 = vsub.s32 0, %v3116
        %v3118 = vrot.slane %v2391, %v3117
        %v3120 = vadd.f32 %v3113, %v3118
        %v3121 = vpack.c.bf16 %v3120, %v3120
        %v3123 = vlaneseq
        %v3124 = vshrl.u32 %v3123, 7
        %v3125 = vsub.s32 0, %v3124
        %v3126 = vrot.slane %v2380, %v3125
        %v3132 = vunpack.c.l.b16 %v2376
        %v3133 = vunpack.c.l.b16 %v2377
        %v3134 = vunpack.c.l.b16 %v2378
        %v3135 = vunpack.c.l.b16 %v2379
        %v3136 = vpack.c.b16 %v3133, %v3132
        %v3137 = vpack.c.b16 %v3135, %v3134
        %v3141 = vsel %vm1488, %v3121, 0
        %3143 = vmatprep.subr.bf16.mxu0 0
        %3144 = vmatpush1.bf16.msra.mxu0 %v3136
        %3145 = vmatprep.subr.bf16.mxu0 0
        %3146 = vmatpush1.bf16.msra.mxu0 %v3137
        %3147 = vmatprep.subr.bf16.mxu0 0
        %3148 = vmatpush1.bf16.msra.mxu0 0
        %3149 = vmatprep.subr.bf16.mxu0 0
        %3150 = vmatpush1.bf16.msra.mxu0 0
        %3151 = vmatprep.subr.bf16.mxu0 0
        %3152 = vmatpush1.bf16.msra.mxu0 0
        %3153 = vmatprep.subr.bf16.mxu0 0
        %3154 = vmatpush1.bf16.msra.mxu0 0
        %3155 = vmatprep.subr.bf16.mxu0 0
        %3156 = vmatpush1.bf16.msra.mxu0 0
        %3157 = vmatprep.subr.bf16.mxu0 0
        %3158 = vmatpush1.bf16.msra.mxu0 0
        %3159 = vmatprep.subr.bf16.mxu0 0
        %3160 = vmatpush1.bf16.msra.mxu0 0
        %3161 = vmatprep.subr.bf16.mxu0 0
        %3162 = vmatpush1.bf16.msra.mxu0 0
        %3163 = vmatprep.subr.bf16.mxu0 0
        %3164 = vmatpush1.bf16.msra.mxu0 0
        %3165 = vmatprep.subr.bf16.mxu0 0
        %3166 = vmatpush1.bf16.msra.mxu0 0
        %3167 = vmatprep.subr.bf16.mxu0 0
        %3168 = vmatpush1.bf16.msra.mxu0 0
        %3169 = vmatprep.subr.bf16.mxu0 0
        %3170 = vmatpush1.bf16.msra.mxu0 0
        %3171 = vmatprep.subr.bf16.mxu0 0
        %3172 = vmatpush1.bf16.msra.mxu0 0
        %3173 = vmatprep.subr.bf16.mxu0 0
        %3174 = vmatpush1.bf16.msra.mxu0 0
        %3175 = vmatprep.mubr.bf16.mxu0 0
        %3176 = vmatmul.mubr.bf16.gmra.mrb[0].mxu0 %v3141
        %v3177 = vpop.f32.mrb[0].mxu0
        %v3178 = vadd.f32 %v3126, %v3177
        %v3179 = vpop.f32.mrb[0].mxu0
        %v3180 = vpop.f32.mrb[0].mxu0
        %v3181 = vpop.f32.mrb[0].mxu0
        %3182 = vdwg.mxu0
        %v3183 = vmax.f32 %v3178, 0.0
        %v3184 = vpack.c.bf16 %v3183, %v3183
        %v3186 = vlaneseq
        %v3187 = vshrl.u32 %v3186, 7
        %v3188 = vsub.s32 0, %v3187
        %v3189 = vrot.slane %v2389, %v3188
        %v3199 = vunpack.c.l.b16 %v2381
        %v3200 = vunpack.c.l.b16 %v2382
        %v3201 = vunpack.c.l.b16 %v2383
        %v3202 = vunpack.c.l.b16 %v2384
        %v3203 = vunpack.c.l.b16 %v2385
        %v3204 = vunpack.c.l.b16 %v2386
        %v3205 = vunpack.c.l.b16 %v2387
        %v3206 = vunpack.c.l.b16 %v2388
        %v3207 = vpack.c.b16 %v3200, %v3199
        %v3208 = vpack.c.b16 %v3202, %v3201
        %v3209 = vpack.c.b16 %v3204, %v3203
        %v3210 = vpack.c.b16 %v3206, %v3205
        %v3216 = vsel %vm2294, %v3184, 0
        %3218 = vmatprep.subr.bf16.mxu0 0
        %3219 = vmatpush1.bf16.msra.mxu0 %v3207
        %3220 = vmatprep.subr.bf16.mxu0 0
        %3221 = vmatpush1.bf16.msra.mxu0 %v3208
        %3222 = vmatprep.subr.bf16.mxu0 0
        %3223 = vmatpush1.bf16.msra.mxu0 %v3209
        %3224 = vmatprep.subr.bf16.mxu0 0
        %3225 = vmatpush1.bf16.msra.mxu0 %v3210
        %3226 = vmatprep.subr.bf16.mxu0 0
        %3227 = vmatpush1.bf16.msra.mxu0 0
        %3228 = vmatprep.subr.bf16.mxu0 0
        %3229 = vmatpush1.bf16.msra.mxu0 0
        %3230 = vmatprep.subr.bf16.mxu0 0
        %3231 = vmatpush1.bf16.msra.mxu0 0
        %3232 = vmatprep.subr.bf16.mxu0 0
        %3233 = vmatpush1.bf16.msra.mxu0 0
        %3234 = vmatprep.subr.bf16.mxu0 0
        %3235 = vmatpush1.bf16.msra.mxu0 0
        %3236 = vmatprep.subr.bf16.mxu0 0
        %3237 = vmatpush1.bf16.msra.mxu0 0
        %3238 = vmatprep.subr.bf16.mxu0 0
        %3239 = vmatpush1.bf16.msra.mxu0 0
        %3240 = vmatprep.subr.bf16.mxu0 0
        %3241 = vmatpush1.bf16.msra.mxu0 0
        %3242 = vmatprep.subr.bf16.mxu0 0
        %3243 = vmatpush1.bf16.msra.mxu0 0
        %3244 = vmatprep.subr.bf16.mxu0 0
        %3245 = vmatpush1.bf16.msra.mxu0 0
        %3246 = vmatprep.subr.bf16.mxu0 0
        %3247 = vmatpush1.bf16.msra.mxu0 0
        %3248 = vmatprep.subr.bf16.mxu0 0
        %3249 = vmatpush1.bf16.msra.mxu0 0
        %3250 = vmatprep.mubr.bf16.mxu0 0
        %3251 = vmatmul.mubr.bf16.gmra.mrb[0].mxu0 %v3216
        %v3252 = vpop.f32.mrb[0].mxu0
        %v3253 = vadd.f32 %v3189, %v3252
        %v3254 = vpop.f32.mrb[0].mxu0
        %v3255 = vpop.f32.mrb[0].mxu0
        %v3256 = vpop.f32.mrb[0].mxu0
        %3257 = vdwg.mxu0
        %v3258 = vadd.f32 %v3120, %v3253
        %v3259 = vsel %vm1488, %v3258, 0.0
        %3260 = vadd.xlane.f32.xlu0 %v3259
        %v3261 = vpop.xlane.xlu0 %3260
        %v3262 = vmul.f32 %v3261, %v2175
        %v3263 = vsub.f32 %v3258, %v3262
        %v3264 = vmul.f32 %v3263, %v3263
        %v3265 = vsel %vm1488, %v3264, 0.0
        %3266 = vadd.xlane.f32.xlu0 %v3265
        %v3267 = vpop.xlane.xlu0 %3266
        %v3268 = vmul.f32 %v3267, %v2175
        %v3269 = vadd.f32 %v3268, 1e-05
        %v3270 = vrsqrt.pop %v3269
        %v3271 = vmul.f32 %v3263, %v3270
        %v3273 = vlaneseq
        %v3274 = vshrl.u32 %v3273, 7
        %v3275 = vsub.s32 0, %v3274
        %v3276 = vrot.slane %v2392, %v3275
        %v3278 = vmul.f32 %v3271, %v3276
        %v3280 = vlaneseq
        %v3281 = vshrl.u32 %v3280, 7
        %v3282 = vsub.s32 0, %v3281
        %v3283 = vrot.slane %v2393, %v3282
        %v3285 = vadd.f32 %v3278, %v3283
        %v3286 = vld [vmem:[%s55] sm:$0x1]
        %v3287 = vld [vmem:[%s57] sm:$0x1]
        %v3288 = vld [vmem:[%s59] sm:$0xf]
        %v3289 = vld [vmem:[%s59 + $0x4] sm:$0xf]
        %v3290 = vld [vmem:[%s59 + $0x8] sm:$0xf]
        %v3291 = vld [vmem:[%s59 + $0xc] sm:$0xf]
        %v3292 = vld [vmem:[%s61] sm:$0x1]
        %v3293 = vld [vmem:[%s63] sm:$0xf]
        %v3294 = vld [vmem:[%s63 + $0x4] sm:$0xf]
        %v3295 = vld [vmem:[%s63 + $0x8] sm:$0xf]
        %v3296 = vld [vmem:[%s63 + $0xc] sm:$0xf]
        %v3297 = vld [vmem:[%s65] sm:$0x1]
        %v3298 = vld [vmem:[%s67] sm:$0xf]
        %v3299 = vld [vmem:[%s67 + $0x4] sm:$0xf]
        %v3300 = vld [vmem:[%s67 + $0x8] sm:$0xf]
        %v3301 = vld [vmem:[%s67 + $0xc] sm:$0xf]
        %v3302 = vld [vmem:[%s69] sm:$0x1]
        %v3303 = vld [vmem:[%s71] sm:$0xf]
        %v3304 = vld [vmem:[%s71 + $0x4] sm:$0xf]
        %v3305 = vld [vmem:[%s71 + $0x8] sm:$0xf]
        %v3306 = vld [vmem:[%s71 + $0xc] sm:$0xf]
        %v3307 = vld [vmem:[%s71 + $0x10] sm:$0xf]
        %v3308 = vld [vmem:[%s71 + $0x14] sm:$0xf]
        %v3309 = vld [vmem:[%s71 + $0x18] sm:$0xf]
        %v3310 = vld [vmem:[%s71 + $0x1c] sm:$0xf]
        %v3311 = vld [vmem:[%s73] sm:$0x1]
        %v3312 = vld [vmem:[%s75] sm:$0x1]
        %v3313 = vld [vmem:[%s77] sm:$0x1]
        %v3314 = vld [vmem:[%s79] sm:$0x1]
        %v3315 = vld [vmem:[%s81] sm:$0x1]
        %v3316 = vpack.c.bf16 %v3285, %v3285
        %v3318 = vlaneseq
        %v3319 = vshrl.u32 %v3318, 7
        %v3320 = vsub.s32 0, %v3319
        %v3321 = vrot.slane %v3292, %v3320
        %v3327 = vunpack.c.l.b16 %v3288
        %v3328 = vunpack.c.l.b16 %v3289
        %v3329 = vunpack.c.l.b16 %v3290
        %v3330 = vunpack.c.l.b16 %v3291
        %v3331 = vpack.c.b16 %v3328, %v3327
        %v3332 = vpack.c.b16 %v3330, %v3329
        %v3336 = vsel %vm1488, %v3316, 0
        %3338 = vmatprep.subr.bf16.mxu0 0
        %3339 = vmatpush1.bf16.msra.mxu0 %v3331
        %3340 = vmatprep.subr.bf16.mxu0 0
        %3341 = vmatpush1.bf16.msra.mxu0 %v3332
        %3342 = vmatprep.subr.bf16.mxu0 0
        %3343 = vmatpush1.bf16.msra.mxu0 0
        %3344 = vmatprep.subr.bf16.mxu0 0
        %3345 = vmatpush1.bf16.msra.mxu0 0
        %3346 = vmatprep.subr.bf16.mxu0 0
        %3347 = vmatpush1.bf16.msra.mxu0 0
        %3348 = vmatprep.subr.bf16.mxu0 0
        %3349 = vmatpush1.bf16.msra.mxu0 0
        %3350 = vmatprep.subr.bf16.mxu0 0
        %3351 = vmatpush1.bf16.msra.mxu0 0
        %3352 = vmatprep.subr.bf16.mxu0 0
        %3353 = vmatpush1.bf16.msra.mxu0 0
        %3354 = vmatprep.subr.bf16.mxu0 0
        %3355 = vmatpush1.bf16.msra.mxu0 0
        %3356 = vmatprep.subr.bf16.mxu0 0
        %3357 = vmatpush1.bf16.msra.mxu0 0
        %3358 = vmatprep.subr.bf16.mxu0 0
        %3359 = vmatpush1.bf16.msra.mxu0 0
        %3360 = vmatprep.subr.bf16.mxu0 0
        %3361 = vmatpush1.bf16.msra.mxu0 0
        %3362 = vmatprep.subr.bf16.mxu0 0
        %3363 = vmatpush1.bf16.msra.mxu0 0
        %3364 = vmatprep.subr.bf16.mxu0 0
        %3365 = vmatpush1.bf16.msra.mxu0 0
        %3366 = vmatprep.subr.bf16.mxu0 0
        %3367 = vmatpush1.bf16.msra.mxu0 0
        %3368 = vmatprep.subr.bf16.mxu0 0
        %3369 = vmatpush1.bf16.msra.mxu0 0
        %3370 = vmatprep.mubr.bf16.mxu0 0
        %3371 = vmatmul.mubr.bf16.gmra.mrb[0].mxu0 %v3336
        %v3372 = vpop.f32.mrb[0].mxu0
        %v3373 = vadd.f32 %v3321, %v3372
        %v3374 = vpop.f32.mrb[0].mxu0
        %v3375 = vpop.f32.mrb[0].mxu0
        %v3376 = vpop.f32.mrb[0].mxu0
        %3377 = vdwg.mxu0
        %v3378 = vpack.c.bf16 %v3287, %v3287
        %v3379 = vpack.c.bf16 %v3373, %v3373
        %v3381 = vsel %vm1536, %v3378, 0
        %v3384 = vsel %vm1536, %v3379, 0
        %3386 = vmatprep.subr.bf16.mxu0 0
        %3387 = vmatpush1.bf16.xpose.msra.mxu0 %v3384
        %3388 = vmatprep.subr.bf16.mxu0 0
        %3389 = vmatpush1.bf16.xpose.msra.mxu0 0
        %3390 = vmatprep.subr.bf16.mxu0 0
        %3391 = vmatpush1.bf16.xpose.msra.mxu0 0
        %3392 = vmatprep.subr.bf16.mxu0 0
        %3393 = vmatpush1.bf16.xpose.msra.mxu0 0
        %3394 = vmatprep.subr.bf16.mxu0 0
        %3395 = vmatpush1.bf16.xpose.msra.mxu0 0
        %3396 = vmatprep.subr.bf16.mxu0 0
        %3397 = vmatpush1.bf16.xpose.msra.mxu0 0
        %3398 = vmatprep.subr.bf16.mxu0 0
        %3399 = vmatpush1.bf16.xpose.msra.mxu0 0
        %3400 = vmatprep.subr.bf16.mxu0 0
        %3401 = vmatpush1.bf16.xpose.msra.mxu0 0
        %3402 = vmatprep.subr.bf16.mxu0 0
        %3403 = vmatpush1.bf16.xpose.msra.mxu0 0
        %3404 = vmatprep.subr.bf16.mxu0 0
        %3405 = vmatpush1.bf16.xpose.msra.mxu0 0
        %3406 = vmatprep.subr.bf16.mxu0 0
        %3407 = vmatpush1.bf16.xpose.msra.mxu0 0
        %3408 = vmatprep.subr.bf16.mxu0 0
        %3409 = vmatpush1.bf16.xpose.msra.mxu0 0
        %3410 = vmatprep.subr.bf16.mxu0 0
        %3411 = vmatpush1.bf16.xpose.msra.mxu0 0
        %3412 = vmatprep.subr.bf16.mxu0 0
        %3413 = vmatpush1.bf16.xpose.msra.mxu0 0
        %3414 = vmatprep.subr.bf16.mxu0 0
        %3415 = vmatpush1.bf16.xpose.msra.mxu0 0
        %3416 = vmatprep.subr.bf16.mxu0 0
        %3417 = vmatpush1.bf16.xpose.msra.mxu0 0
        %3418 = vmatprep.mubr.bf16.mxu0 0
        %3419 = vmatmul.mubr.bf16.gmra.mrb[0].mxu0 %v3381
        %v3420 = vpop.f32.mrb[0].mxu0
        %v3421 = vadd.f32 0.0, %v3420
        %v3422 = vpop.f32.mrb[0].mxu0
        %v3423 = vpop.f32.mrb[0].mxu0
        %v3424 = vpop.f32.mrb[0].mxu0
        %3425 = vdwg.mxu0
        %vm3426 = vcmask 57344
        %v3427 = vsel %vm3426, %v3421, -inf
        %3428 = vmax.xlane.f32.xlu0 %v3427
        %v3429 = vpop.xlane.xlu0 %3428
        %v3430 = vsub.f32 %v3421, %v3429
        %v3431 = vmul.f32 %v3430, 1.442695
        %v3432 = vpow.pop %v3431
        %v3433 = vsel %vm3426, %v3432, 0.0
        %3434 = vadd.xlane.f32.xlu0 %v3433
        %v3435 = vpop.xlane.xlu0 %3434
        %v3436 = vrcp.pop %v3435
        %v3437 = vmul.f32 %v3432, %v3436
        %v3438 = vpack.c.bf16 %v3437, %v3437
        %3440 = vrot.lane.b32.xlu0 %v3379, 96
        %v3441 = vpop.permute.xlu0 %3440
        %v3443 = vsel %vm1536, %v3438, 0
        %v3446 = vsel %vm1600, %v3441, 0
        %3448 = vmatprep.subr.bf16.mxu0 0
        %3449 = vmatpush1.bf16.msra.mxu0 %v3446
        %3450 = vmatprep.subr.bf16.mxu0 0
        %3451 = vmatpush1.bf16.msra.mxu0 0
        %3452 = vmatprep.subr.bf16.mxu0 0
        %3453 = vmatpush1.bf16.msra.mxu0 0
        %3454 = vmatprep.subr.bf16.mxu0 0
        %3455 = vmatpush1.bf16.msra.mxu0 0
        %3456 = vmatprep.subr.bf16.mxu0 0
        %3457 = vmatpush1.bf16.msra.mxu0 0
        %3458 = vmatprep.subr.bf16.mxu0 0
        %3459 = vmatpush1.bf16.msra.mxu0 0
        %3460 = vmatprep.subr.bf16.mxu0 0
        %3461 = vmatpush1.bf16.msra.mxu0 0
        %3462 = vmatprep.subr.bf16.mxu0 0
        %3463 = vmatpush1.bf16.msra.mxu0 0
        %3464 = vmatprep.subr.bf16.mxu0 0
        %3465 = vmatpush1.bf16.msra.mxu0 0
        %3466 = vmatprep.subr.bf16.mxu0 0
        %3467 = vmatpush1.bf16.msra.mxu0 0
        %3468 = vmatprep.subr.bf16.mxu0 0
        %3469 = vmatpush1.bf16.msra.mxu0 0
        %3470 = vmatprep.subr.bf16.mxu0 0
        %3471 = vmatpush1.bf16.msra.mxu0 0
        %3472 = vmatprep.subr.bf16.mxu0 0
        %3473 = vmatpush1.bf16.msra.mxu0 0
        %3474 = vmatprep.subr.bf16.mxu0 0
        %3475 = vmatpush1.bf16.msra.mxu0 0
        %3476 = vmatprep.subr.bf16.mxu0 0
        %3477 = vmatpush1.bf16.msra.mxu0 0
        %3478 = vmatprep.subr.bf16.mxu0 0
        %3479 = vmatpush1.bf16.msra.mxu0 0
        %3480 = vmatprep.mubr.bf16.mxu0 0
        %3481 = vmatmul.mubr.bf16.gmra.mrb[0].mxu0 %v3443
        %v3482 = vpop.f32.mrb[0].mxu0
        %v3483 = vadd.f32 0.0, %v3482
        %v3484 = vpop.f32.mrb[0].mxu0
        %v3485 = vpop.f32.mrb[0].mxu0
        %v3486 = vpop.f32.mrb[0].mxu0
        %3487 = vdwg.mxu0
        %v3488 = vpack.c.bf16 %v3483, %v3483
        %3490 = vrot.lane.b32.xlu0 %v3378, 120
        %v3491 = vpop.permute.xlu0 %3490
        %3492 = vrot.lane.b32.xlu0 %v3379, 120
        %v3493 = vpop.permute.xlu0 %3492
        %v3495 = vsel %vm1536, %v3491, 0
        %v3498 = vsel %vm1536, %v3493, 0
        %3500 = vmatprep.subr.bf16.mxu0 0
        %3501 = vmatpush1.bf16.xpose.msra.mxu0 %v3498
        %3502 = vmatprep.subr.bf16.mxu0 0
        %3503 = vmatpush1.bf16.xpose.msra.mxu0 0
        %3504 = vmatprep.subr.bf16.mxu0 0
        %3505 = vmatpush1.bf16.xpose.msra.mxu0 0
        %3506 = vmatprep.subr.bf16.mxu0 0
        %3507 = vmatpush1.bf16.xpose.msra.mxu0 0
        %3508 = vmatprep.subr.bf16.mxu0 0
        %3509 = vmatpush1.bf16.xpose.msra.mxu0 0
        %3510 = vmatprep.subr.bf16.mxu0 0
        %3511 = vmatpush1.bf16.xpose.msra.mxu0 0
        %3512 = vmatprep.subr.bf16.mxu0 0
        %3513 = vmatpush1.bf16.xpose.msra.mxu0 0
        %3514 = vmatprep.subr.bf16.mxu0 0
        %3515 = vmatpush1.bf16.xpose.msra.mxu0 0
        %3516 = vmatprep.subr.bf16.mxu0 0
        %3517 = vmatpush1.bf16.xpose.msra.mxu0 0
        %3518 = vmatprep.subr.bf16.mxu0 0
        %3519 = vmatpush1.bf16.xpose.msra.mxu0 0
        %3520 = vmatprep.subr.bf16.mxu0 0
        %3521 = vmatpush1.bf16.xpose.msra.mxu0 0
        %3522 = vmatprep.subr.bf16.mxu0 0
        %3523 = vmatpush1.bf16.xpose.msra.mxu0 0
        %3524 = vmatprep.subr.bf16.mxu0 0
        %3525 = vmatpush1.bf16.xpose.msra.mxu0 0
        %3526 = vmatprep.subr.bf16.mxu0 0
        %3527 = vmatpush1.bf16.xpose.msra.mxu0 0
        %3528 = vmatprep.subr.bf16.mxu0 0
        %3529 = vmatpush1.bf16.xpose.msra.mxu0 0
        %3530 = vmatprep.subr.bf16.mxu0 0
        %3531 = vmatpush1.bf16.xpose.msra.mxu0 0
        %3532 = vmatprep.mubr.bf16.mxu0 0
        %3533 = vmatmul.mubr.bf16.gmra.mrb[0].mxu0 %v3495
        %v3534 = vpop.f32.mrb[0].mxu0
        %v3535 = vadd.f32 0.0, %v3534
        %v3536 = vpop.f32.mrb[0].mxu0
        %v3537 = vpop.f32.mrb[0].mxu0
        %v3538 = vpop.f32.mrb[0].mxu0
        %3539 = vdwg.mxu0
        %v3540 = vsel %vm3426, %v3535, -inf
        %3541 = vmax.xlane.f32.xlu0 %v3540
        %v3542 = vpop.xlane.xlu0 %3541
        %v3543 = vsub.f32 %v3535, %v3542
        %v3544 = vmul.f32 %v3543, 1.442695
        %v3545 = vpow.pop %v3544
        %v3546 = vsel %vm3426, %v3545, 0.0
        %3547 = vadd.xlane.f32.xlu0 %v3546
        %v3548 = vpop.xlane.xlu0 %3547
        %v3549 = vrcp.pop %v3548
        %v3550 = vmul.f32 %v3545, %v3549
        %v3551 = vpack.c.bf16 %v3550, %v3550
        %3552 = vrot.lane.b32.xlu0 %v3379, 88
        %v3553 = vpop.permute.xlu0 %3552
        %v3555 = vsel %vm1536, %v3551, 0
        %v3558 = vsel %vm1600, %v3553, 0
        %3560 = vmatprep.subr.bf16.mxu0 0
        %3561 = vmatpush1.bf16.msra.mxu0 %v3558
        %3562 = vmatprep.subr.bf16.mxu0 0
        %3563 = vmatpush1.bf16.msra.mxu0 0
        %3564 = vmatprep.subr.bf16.mxu0 0
        %3565 = vmatpush1.bf16.msra.mxu0 0
        %3566 = vmatprep.subr.bf16.mxu0 0
        %3567 = vmatpush1.bf16.msra.mxu0 0
        %3568 = vmatprep.subr.bf16.mxu0 0
        %3569 = vmatpush1.bf16.msra.mxu0 0
        %3570 = vmatprep.subr.bf16.mxu0 0
        %3571 = vmatpush1.bf16.msra.mxu0 0
        %3572 = vmatprep.subr.bf16.mxu0 0
        %3573 = vmatpush1.bf16.msra.mxu0 0
        %3574 = vmatprep.subr.bf16.mxu0 0
        %3575 = vmatpush1.bf16.msra.mxu0 0
        %3576 = vmatprep.subr.bf16.mxu0 0
        %3577 = vmatpush1.bf16.msra.mxu0 0
        %3578 = vmatprep.subr.bf16.mxu0 0
        %3579 = vmatpush1.bf16.msra.mxu0 0
        %3580 = vmatprep.subr.bf16.mxu0 0
        %3581 = vmatpush1.bf16.msra.mxu0 0
        %3582 = vmatprep.subr.bf16.mxu0 0
        %3583 = vmatpush1.bf16.msra.mxu0 0
        %3584 = vmatprep.subr.bf16.mxu0 0
        %3585 = vmatpush1.bf16.msra.mxu0 0
        %3586 = vmatprep.subr.bf16.mxu0 0
        %3587 = vmatpush1.bf16.msra.mxu0 0
        %3588 = vmatprep.subr.bf16.mxu0 0
        %3589 = vmatpush1.bf16.msra.mxu0 0
        %3590 = vmatprep.subr.bf16.mxu0 0
        %3591 = vmatpush1.bf16.msra.mxu0 0
        %3592 = vmatprep.mubr.bf16.mxu0 0
        %3593 = vmatmul.mubr.bf16.gmra.mrb[0].mxu0 %v3555
        %v3594 = vpop.f32.mrb[0].mxu0
        %v3595 = vadd.f32 0.0, %v3594
        %v3596 = vpop.f32.mrb[0].mxu0
        %v3597 = vpop.f32.mrb[0].mxu0
        %v3598 = vpop.f32.mrb[0].mxu0
        %3599 = vdwg.mxu0
        %v3600 = vpack.c.bf16 %v3595, %v3595
        %v3602 = vsel %vm1536, %v3600, 0
        %v3605 = vsel %vm1600, %v3294, 0
        %3607 = vmatprep.subr.bf16.mxu0 0
        %3608 = vmatpush1.bf16.msra.mxu0 %v3605
        %3609 = vmatprep.subr.bf16.mxu0 0
        %3610 = vmatpush1.bf16.msra.mxu0 0
        %3611 = vmatprep.subr.bf16.mxu0 0
        %3612 = vmatpush1.bf16.msra.mxu0 0
        %3613 = vmatprep.subr.bf16.mxu0 0
        %3614 = vmatpush1.bf16.msra.mxu0 0
        %3615 = vmatprep.subr.bf16.mxu0 0
        %3616 = vmatpush1.bf16.msra.mxu0 0
        %3617 = vmatprep.subr.bf16.mxu0 0
        %3618 = vmatpush1.bf16.msra.mxu0 0
        %3619 = vmatprep.subr.bf16.mxu0 0
        %3620 = vmatpush1.bf16.msra.mxu0 0
        %3621 = vmatprep.subr.bf16.mxu0 0
        %3622 = vmatpush1.bf16.msra.mxu0 0
        %3623 = vmatprep.subr.bf16.mxu0 0
        %3624 = vmatpush1.bf16.msra.mxu0 0
        %3625 = vmatprep.subr.bf16.mxu0 0
        %3626 = vmatpush1.bf16.msra.mxu0 0
        %3627 = vmatprep.subr.bf16.mxu0 0
        %3628 = vmatpush1.bf16.msra.mxu0 0
        %3629 = vmatprep.subr.bf16.mxu0 0
        %3630 = vmatpush1.bf16.msra.mxu0 0
        %3631 = vmatprep.subr.bf16.mxu0 0
        %3632 = vmatpush1.bf16.msra.mxu0 0
        %3633 = vmatprep.subr.bf16.mxu0 0
        %3634 = vmatpush1.bf16.msra.mxu0 0
        %3635 = vmatprep.subr.bf16.mxu0 0
        %3636 = vmatpush1.bf16.msra.mxu0 0
        %3637 = vmatprep.subr.bf16.mxu0 0
        %3638 = vmatpush1.bf16.msra.mxu0 0
        %3639 = vmatprep.mubr.bf16.mxu0 0
        %3640 = vmatmul.mubr.bf16.gmra.mrb[0].mxu0 %v3602
        %v3641 = vpop.f32.mrb[0].mxu0
        %v3642 = vadd.f32 0.0, %v3641
        %v3643 = vpop.f32.mrb[0].mxu0
        %v3644 = vpop.f32.mrb[0].mxu0
        %v3645 = vpop.f32.mrb[0].mxu0
        %3646 = vdwg.mxu0
        %v3648 = vsel %vm1536, %v3488, 0
        %v3651 = vsel %vm1600, %v3293, 0
        %3653 = vmatprep.subr.bf16.mxu0 0
        %3654 = vmatpush1.bf16.msra.mxu0 %v3651
        %3655 = vmatprep.subr.bf16.mxu0 0
        %3656 = vmatpush1.bf16.msra.mxu0 0
        %3657 = vmatprep.subr.bf16.mxu0 0
        %3658 = vmatpush1.bf16.msra.mxu0 0
        %3659 = vmatprep.subr.bf16.mxu0 0
        %3660 = vmatpush1.bf16.msra.mxu0 0
        %3661 = vmatprep.subr.bf16.mxu0 0
        %3662 = vmatpush1.bf16.msra.mxu0 0
        %3663 = vmatprep.subr.bf16.mxu0 0
        %3664 = vmatpush1.bf16.msra.mxu0 0
        %3665 = vmatprep.subr.bf16.mxu0 0
        %3666 = vmatpush1.bf16.msra.mxu0 0
        %3667 = vmatprep.subr.bf16.mxu0 0
        %3668 = vmatpush1.bf16.msra.mxu0 0
        %3669 = vmatprep.subr.bf16.mxu0 0
        %3670 = vmatpush1.bf16.msra.mxu0 0
        %3671 = vmatprep.subr.bf16.mxu0 0
        %3672 = vmatpush1.bf16.msra.mxu0 0
        %3673 = vmatprep.subr.bf16.mxu0 0
        %3674 = vmatpush1.bf16.msra.mxu0 0
        %3675 = vmatprep.subr.bf16.mxu0 0
        %3676 = vmatpush1.bf16.msra.mxu0 0
        %3677 = vmatprep.subr.bf16.mxu0 0
        %3678 = vmatpush1.bf16.msra.mxu0 0
        %3679 = vmatprep.subr.bf16.mxu0 0
        %3680 = vmatpush1.bf16.msra.mxu0 0
        %3681 = vmatprep.subr.bf16.mxu0 0
        %3682 = vmatpush1.bf16.msra.mxu0 0
        %3683 = vmatprep.subr.bf16.mxu0 0
        %3684 = vmatpush1.bf16.msra.mxu0 0
        %3685 = vmatprep.mubr.bf16.mxu0 0
        %3686 = vmatmul.mubr.bf16.gmra.mrb[0].mxu0 %v3648
        %v3687 = vpop.f32.mrb[0].mxu0
        %v3688 = vadd.f32 %v3642, %v3687
        %v3689 = vpop.f32.mrb[0].mxu0
        %v3690 = vpop.f32.mrb[0].mxu0
        %v3691 = vpop.f32.mrb[0].mxu0
        %3692 = vdwg.mxu0
        %3693 = vrot.lane.b32.xlu0 %v3378, 112
        %v3694 = vpop.permute.xlu0 %3693
        %3695 = vrot.lane.b32.xlu0 %v3379, 112
        %v3696 = vpop.permute.xlu0 %3695
        %v3698 = vsel %vm1536, %v3694, 0
        %v3701 = vsel %vm1536, %v3696, 0
        %3703 = vmatprep.subr.bf16.mxu0 0
        %3704 = vmatpush1.bf16.xpose.msra.mxu0 %v3701
        %3705 = vmatprep.subr.bf16.mxu0 0
        %3706 = vmatpush1.bf16.xpose.msra.mxu0 0
        %3707 = vmatprep.subr.bf16.mxu0 0
        %3708 = vmatpush1.bf16.xpose.msra.mxu0 0
        %3709 = vmatprep.subr.bf16.mxu0 0
        %3710 = vmatpush1.bf16.xpose.msra.mxu0 0
        %3711 = vmatprep.subr.bf16.mxu0 0
        %3712 = vmatpush1.bf16.xpose.msra.mxu0 0
        %3713 = vmatprep.subr.bf16.mxu0 0
        %3714 = vmatpush1.bf16.xpose.msra.mxu0 0
        %3715 = vmatprep.subr.bf16.mxu0 0
        %3716 = vmatpush1.bf16.xpose.msra.mxu0 0
        %3717 = vmatprep.subr.bf16.mxu0 0
        %3718 = vmatpush1.bf16.xpose.msra.mxu0 0
        %3719 = vmatprep.subr.bf16.mxu0 0
        %3720 = vmatpush1.bf16.xpose.msra.mxu0 0
        %3721 = vmatprep.subr.bf16.mxu0 0
        %3722 = vmatpush1.bf16.xpose.msra.mxu0 0
        %3723 = vmatprep.subr.bf16.mxu0 0
        %3724 = vmatpush1.bf16.xpose.msra.mxu0 0
        %3725 = vmatprep.subr.bf16.mxu0 0
        %3726 = vmatpush1.bf16.xpose.msra.mxu0 0
        %3727 = vmatprep.subr.bf16.mxu0 0
        %3728 = vmatpush1.bf16.xpose.msra.mxu0 0
        %3729 = vmatprep.subr.bf16.mxu0 0
        %3730 = vmatpush1.bf16.xpose.msra.mxu0 0
        %3731 = vmatprep.subr.bf16.mxu0 0
        %3732 = vmatpush1.bf16.xpose.msra.mxu0 0
        %3733 = vmatprep.subr.bf16.mxu0 0
        %3734 = vmatpush1.bf16.xpose.msra.mxu0 0
        %3735 = vmatprep.mubr.bf16.mxu0 0
        %3736 = vmatmul.mubr.bf16.gmra.mrb[0].mxu0 %v3698
        %v3737 = vpop.f32.mrb[0].mxu0
        %v3738 = vadd.f32 0.0, %v3737
        %v3739 = vpop.f32.mrb[0].mxu0
        %v3740 = vpop.f32.mrb[0].mxu0
        %v3741 = vpop.f32.mrb[0].mxu0
        %3742 = vdwg.mxu0
        %v3743 = vsel %vm3426, %v3738, -inf
        %3744 = vmax.xlane.f32.xlu0 %v3743
        %v3745 = vpop.xlane.xlu0 %3744
        %v3746 = vsub.f32 %v3738, %v3745
        %v3747 = vmul.f32 %v3746, 1.442695
        %v3748 = vpow.pop %v3747
        %v3749 = vsel %vm3426, %v3748, 0.0
        %3750 = vadd.xlane.f32.xlu0 %v3749
        %v3751 = vpop.xlane.xlu0 %3750
        %v3752 = vrcp.pop %v3751
        %v3753 = vmul.f32 %v3748, %v3752
        %v3754 = vpack.c.bf16 %v3753, %v3753
        %3755 = vrot.lane.b32.xlu0 %v3379, 80
        %v3756 = vpop.permute.xlu0 %3755
        %v3758 = vsel %vm1536, %v3754, 0
        %v3761 = vsel %vm1600, %v3756, 0
        %3763 = vmatprep.subr.bf16.mxu0 0
        %3764 = vmatpush1.bf16.msra.mxu0 %v3761
        %3765 = vmatprep.subr.bf16.mxu0 0
        %3766 = vmatpush1.bf16.msra.mxu0 0
        %3767 = vmatprep.subr.bf16.mxu0 0
        %3768 = vmatpush1.bf16.msra.mxu0 0
        %3769 = vmatprep.subr.bf16.mxu0 0
        %3770 = vmatpush1.bf16.msra.mxu0 0
        %3771 = vmatprep.subr.bf16.mxu0 0
        %3772 = vmatpush1.bf16.msra.mxu0 0
        %3773 = vmatprep.subr.bf16.mxu0 0
        %3774 = vmatpush1.bf16.msra.mxu0 0
        %3775 = vmatprep.subr.bf16.mxu0 0
        %3776 = vmatpush1.bf16.msra.mxu0 0
        %3777 = vmatprep.subr.bf16.mxu0 0
        %3778 = vmatpush1.bf16.msra.mxu0 0
        %3779 = vmatprep.subr.bf16.mxu0 0
        %3780 = vmatpush1.bf16.msra.mxu0 0
        %3781 = vmatprep.subr.bf16.mxu0 0
        %3782 = vmatpush1.bf16.msra.mxu0 0
        %3783 = vmatprep.subr.bf16.mxu0 0
        %3784 = vmatpush1.bf16.msra.mxu0 0
        %3785 = vmatprep.subr.bf16.mxu0 0
        %3786 = vmatpush1.bf16.msra.mxu0 0
        %3787 = vmatprep.subr.bf16.mxu0 0
        %3788 = vmatpush1.bf16.msra.mxu0 0
        %3789 = vmatprep.subr.bf16.mxu0 0
        %3790 = vmatpush1.bf16.msra.mxu0 0
        %3791 = vmatprep.subr.bf16.mxu0 0
        %3792 = vmatpush1.bf16.msra.mxu0 0
        %3793 = vmatprep.subr.bf16.mxu0 0
        %3794 = vmatpush1.bf16.msra.mxu0 0
        %3795 = vmatprep.mubr.bf16.mxu0 0
        %3796 = vmatmul.mubr.bf16.gmra.mrb[0].mxu0 %v3758
        %v3797 = vpop.f32.mrb[0].mxu0
        %v3798 = vadd.f32 0.0, %v3797
        %v3799 = vpop.f32.mrb[0].mxu0
        %v3800 = vpop.f32.mrb[0].mxu0
        %v3801 = vpop.f32.mrb[0].mxu0
        %3802 = vdwg.mxu0
        %v3803 = vpack.c.bf16 %v3798, %v3798
        %v3805 = vsel %vm1536, %v3803, 0
        %v3808 = vsel %vm1600, %v3295, 0
        %3810 = vmatprep.subr.bf16.mxu0 0
        %3811 = vmatpush1.bf16.msra.mxu0 %v3808
        %3812 = vmatprep.subr.bf16.mxu0 0
        %3813 = vmatpush1.bf16.msra.mxu0 0
        %3814 = vmatprep.subr.bf16.mxu0 0
        %3815 = vmatpush1.bf16.msra.mxu0 0
        %3816 = vmatprep.subr.bf16.mxu0 0
        %3817 = vmatpush1.bf16.msra.mxu0 0
        %3818 = vmatprep.subr.bf16.mxu0 0
        %3819 = vmatpush1.bf16.msra.mxu0 0
        %3820 = vmatprep.subr.bf16.mxu0 0
        %3821 = vmatpush1.bf16.msra.mxu0 0
        %3822 = vmatprep.subr.bf16.mxu0 0
        %3823 = vmatpush1.bf16.msra.mxu0 0
        %3824 = vmatprep.subr.bf16.mxu0 0
        %3825 = vmatpush1.bf16.msra.mxu0 0
        %3826 = vmatprep.subr.bf16.mxu0 0
        %3827 = vmatpush1.bf16.msra.mxu0 0
        %3828 = vmatprep.subr.bf16.mxu0 0
        %3829 = vmatpush1.bf16.msra.mxu0 0
        %3830 = vmatprep.subr.bf16.mxu0 0
        %3831 = vmatpush1.bf16.msra.mxu0 0
        %3832 = vmatprep.subr.bf16.mxu0 0
        %3833 = vmatpush1.bf16.msra.mxu0 0
        %3834 = vmatprep.subr.bf16.mxu0 0
        %3835 = vmatpush1.bf16.msra.mxu0 0
        %3836 = vmatprep.subr.bf16.mxu0 0
        %3837 = vmatpush1.bf16.msra.mxu0 0
        %3838 = vmatprep.subr.bf16.mxu0 0
        %3839 = vmatpush1.bf16.msra.mxu0 0
        %3840 = vmatprep.subr.bf16.mxu0 0
        %3841 = vmatpush1.bf16.msra.mxu0 0
        %3842 = vmatprep.mubr.bf16.mxu0 0
        %3843 = vmatmul.mubr.bf16.gmra.mrb[0].mxu0 %v3805
        %v3844 = vpop.f32.mrb[0].mxu0
        %v3845 = vadd.f32 0.0, %v3844
        %v3846 = vpop.f32.mrb[0].mxu0
        %v3847 = vpop.f32.mrb[0].mxu0
        %v3848 = vpop.f32.mrb[0].mxu0
        %3849 = vdwg.mxu0
        %v3850 = vadd.f32 %v3688, %v3845
        %3851 = vrot.lane.b32.xlu0 %v3378, 104
        %v3852 = vpop.permute.xlu0 %3851
        %3853 = vrot.lane.b32.xlu0 %v3379, 104
        %v3854 = vpop.permute.xlu0 %3853
        %v3856 = vsel %vm1536, %v3852, 0
        %v3859 = vsel %vm1536, %v3854, 0
        %3861 = vmatprep.subr.bf16.mxu0 0
        %3862 = vmatpush1.bf16.xpose.msra.mxu0 %v3859
        %3863 = vmatprep.subr.bf16.mxu0 0
        %3864 = vmatpush1.bf16.xpose.msra.mxu0 0
        %3865 = vmatprep.subr.bf16.mxu0 0
        %3866 = vmatpush1.bf16.xpose.msra.mxu0 0
        %3867 = vmatprep.subr.bf16.mxu0 0
        %3868 = vmatpush1.bf16.xpose.msra.mxu0 0
        %3869 = vmatprep.subr.bf16.mxu0 0
        %3870 = vmatpush1.bf16.xpose.msra.mxu0 0
        %3871 = vmatprep.subr.bf16.mxu0 0
        %3872 = vmatpush1.bf16.xpose.msra.mxu0 0
        %3873 = vmatprep.subr.bf16.mxu0 0
        %3874 = vmatpush1.bf16.xpose.msra.mxu0 0
        %3875 = vmatprep.subr.bf16.mxu0 0
        %3876 = vmatpush1.bf16.xpose.msra.mxu0 0
        %3877 = vmatprep.subr.bf16.mxu0 0
        %3878 = vmatpush1.bf16.xpose.msra.mxu0 0
        %3879 = vmatprep.subr.bf16.mxu0 0
        %3880 = vmatpush1.bf16.xpose.msra.mxu0 0
        %3881 = vmatprep.subr.bf16.mxu0 0
        %3882 = vmatpush1.bf16.xpose.msra.mxu0 0
        %3883 = vmatprep.subr.bf16.mxu0 0
        %3884 = vmatpush1.bf16.xpose.msra.mxu0 0
        %3885 = vmatprep.subr.bf16.mxu0 0
        %3886 = vmatpush1.bf16.xpose.msra.mxu0 0
        %3887 = vmatprep.subr.bf16.mxu0 0
        %3888 = vmatpush1.bf16.xpose.msra.mxu0 0
        %3889 = vmatprep.subr.bf16.mxu0 0
        %3890 = vmatpush1.bf16.xpose.msra.mxu0 0
        %3891 = vmatprep.subr.bf16.mxu0 0
        %3892 = vmatpush1.bf16.xpose.msra.mxu0 0
        %3893 = vmatprep.mubr.bf16.mxu0 0
        %3894 = vmatmul.mubr.bf16.gmra.mrb[0].mxu0 %v3856
        %v3895 = vpop.f32.mrb[0].mxu0
        %v3896 = vadd.f32 0.0, %v3895
        %v3897 = vpop.f32.mrb[0].mxu0
        %v3898 = vpop.f32.mrb[0].mxu0
        %v3899 = vpop.f32.mrb[0].mxu0
        %3900 = vdwg.mxu0
        %v3901 = vsel %vm3426, %v3896, -inf
        %3902 = vmax.xlane.f32.xlu0 %v3901
        %v3903 = vpop.xlane.xlu0 %3902
        %v3904 = vsub.f32 %v3896, %v3903
        %v3905 = vmul.f32 %v3904, 1.442695
        %v3906 = vpow.pop %v3905
        %v3907 = vsel %vm3426, %v3906, 0.0
        %3908 = vadd.xlane.f32.xlu0 %v3907
        %v3909 = vpop.xlane.xlu0 %3908
        %v3910 = vrcp.pop %v3909
        %v3911 = vmul.f32 %v3906, %v3910
        %v3912 = vpack.c.bf16 %v3911, %v3911
        %3913 = vrot.lane.b32.xlu0 %v3379, 72
        %v3914 = vpop.permute.xlu0 %3913
        %v3916 = vsel %vm1536, %v3912, 0
        %v3919 = vsel %vm1600, %v3914, 0
        %3921 = vmatprep.subr.bf16.mxu0 0
        %3922 = vmatpush1.bf16.msra.mxu0 %v3919
        %3923 = vmatprep.subr.bf16.mxu0 0
        %3924 = vmatpush1.bf16.msra.mxu0 0
        %3925 = vmatprep.subr.bf16.mxu0 0
        %3926 = vmatpush1.bf16.msra.mxu0 0
        %3927 = vmatprep.subr.bf16.mxu0 0
        %3928 = vmatpush1.bf16.msra.mxu0 0
        %3929 = vmatprep.subr.bf16.mxu0 0
        %3930 = vmatpush1.bf16.msra.mxu0 0
        %3931 = vmatprep.subr.bf16.mxu0 0
        %3932 = vmatpush1.bf16.msra.mxu0 0
        %3933 = vmatprep.subr.bf16.mxu0 0
        %3934 = vmatpush1.bf16.msra.mxu0 0
        %3935 = vmatprep.subr.bf16.mxu0 0
        %3936 = vmatpush1.bf16.msra.mxu0 0
        %3937 = vmatprep.subr.bf16.mxu0 0
        %3938 = vmatpush1.bf16.msra.mxu0 0
        %3939 = vmatprep.subr.bf16.mxu0 0
        %3940 = vmatpush1.bf16.msra.mxu0 0
        %3941 = vmatprep.subr.bf16.mxu0 0
        %3942 = vmatpush1.bf16.msra.mxu0 0
        %3943 = vmatprep.subr.bf16.mxu0 0
        %3944 = vmatpush1.bf16.msra.mxu0 0
        %3945 = vmatprep.subr.bf16.mxu0 0
        %3946 = vmatpush1.bf16.msra.mxu0 0
        %3947 = vmatprep.subr.bf16.mxu0 0
        %3948 = vmatpush1.bf16.msra.mxu0 0
        %3949 = vmatprep.subr.bf16.mxu0 0
        %3950 = vmatpush1.bf16.msra.mxu0 0
        %3951 = vmatprep.subr.bf16.mxu0 0
        %3952 = vmatpush1.bf16.msra.mxu0 0
        %3953 = vmatprep.mubr.bf16.mxu0 0
        %3954 = vmatmul.mubr.bf16.gmra.mrb[0].mxu0 %v3916
        %v3955 = vpop.f32.mrb[0].mxu0
        %v3956 = vadd.f32 0.0, %v3955
        %v3957 = vpop.f32.mrb[0].mxu0
        %v3958 = vpop.f32.mrb[0].mxu0
        %v3959 = vpop.f32.mrb[0].mxu0
        %3960 = vdwg.mxu0
        %v3961 = vpack.c.bf16 %v3956, %v3956
        %v3963 = vsel %vm1536, %v3961, 0
        %v3966 = vsel %vm1600, %v3296, 0
        %3968 = vmatprep.subr.bf16.mxu0 0
        %3969 = vmatpush1.bf16.msra.mxu0 %v3966
        %3970 = vmatprep.subr.bf16.mxu0 0
        %3971 = vmatpush1.bf16.msra.mxu0 0
        %3972 = vmatprep.subr.bf16.mxu0 0
        %3973 = vmatpush1.bf16.msra.mxu0 0
        %3974 = vmatprep.subr.bf16.mxu0 0
        %3975 = vmatpush1.bf16.msra.mxu0 0
        %3976 = vmatprep.subr.bf16.mxu0 0
        %3977 = vmatpush1.bf16.msra.mxu0 0
        %3978 = vmatprep.subr.bf16.mxu0 0
        %3979 = vmatpush1.bf16.msra.mxu0 0
        %3980 = vmatprep.subr.bf16.mxu0 0
        %3981 = vmatpush1.bf16.msra.mxu0 0
        %3982 = vmatprep.subr.bf16.mxu0 0
        %3983 = vmatpush1.bf16.msra.mxu0 0
        %3984 = vmatprep.subr.bf16.mxu0 0
        %3985 = vmatpush1.bf16.msra.mxu0 0
        %3986 = vmatprep.subr.bf16.mxu0 0
        %3987 = vmatpush1.bf16.msra.mxu0 0
        %3988 = vmatprep.subr.bf16.mxu0 0
        %3989 = vmatpush1.bf16.msra.mxu0 0
        %3990 = vmatprep.subr.bf16.mxu0 0
        %3991 = vmatpush1.bf16.msra.mxu0 0
        %3992 = vmatprep.subr.bf16.mxu0 0
        %3993 = vmatpush1.bf16.msra.mxu0 0
        %3994 = vmatprep.subr.bf16.mxu0 0
        %3995 = vmatpush1.bf16.msra.mxu0 0
        %3996 = vmatprep.subr.bf16.mxu0 0
        %3997 = vmatpush1.bf16.msra.mxu0 0
        %3998 = vmatprep.subr.bf16.mxu0 0
        %3999 = vmatpush1.bf16.msra.mxu0 0
        %4000 = vmatprep.mubr.bf16.mxu0 0
        %4001 = vmatmul.mubr.bf16.gmra.mrb[0].mxu0 %v3963
        %v4002 = vpop.f32.mrb[0].mxu0
        %v4003 = vadd.f32 0.0, %v4002
        %v4004 = vpop.f32.mrb[0].mxu0
        %v4005 = vpop.f32.mrb[0].mxu0
        %v4006 = vpop.f32.mrb[0].mxu0
        %4007 = vdwg.mxu0
        %v4008 = vadd.f32 %v3850, %v4003
        %v4009 = vadd.f32 %v4008, %v3297
        %v4010 = vadd.f32 %v3286, %v4009
        %vm4011 = vcmask 253952
        %v4012 = vsel %vm4011, %v4010, 0.0
        %4013 = vadd.xlane.f32.xlu0 %v4012
        %v4014 = vpop.xlane.xlu0 %4013
        %v4015 = vmul.f32 %v4014, %v2175
        %v4016 = vsub.f32 %v4010, %v4015
        %v4017 = vmul.f32 %v4016, %v4016
        %v4018 = vsel %vm4011, %v4017, 0.0
        %4019 = vadd.xlane.f32.xlu0 %v4018
        %v4020 = vpop.xlane.xlu0 %4019
        %v4021 = vmul.f32 %v4020, %v2175
        %v4022 = vadd.f32 %v4021, 1e-05
        %v4023 = vrsqrt.pop %v4022
        %v4024 = vmul.f32 %v4016, %v4023
        %v4025 = vmul.f32 %v4024, %v3312
        %v4026 = vadd.f32 %v4025, %v3313
        %v4027 = vpack.c.bf16 %v4026, %v4026
        %v4032 = vunpack.c.l.b16 %v3298
        %v4033 = vunpack.c.l.b16 %v3299
        %v4034 = vunpack.c.l.b16 %v3300
        %v4035 = vunpack.c.l.b16 %v3301
        %v4036 = vpack.c.b16 %v4033, %v4032
        %v4037 = vpack.c.b16 %v4035, %v4034
        %v4041 = vsel %vm1488, %v4027, 0
        %4043 = vmatprep.subr.bf16.mxu0 0
        %4044 = vmatpush1.bf16.msra.mxu0 %v4036
        %4045 = vmatprep.subr.bf16.mxu0 0
        %4046 = vmatpush1.bf16.msra.mxu0 %v4037
        %4047 = vmatprep.subr.bf16.mxu0 0
        %4048 = vmatpush1.bf16.msra.mxu0 0
        %4049 = vmatprep.subr.bf16.mxu0 0
        %4050 = vmatpush1.bf16.msra.mxu0 0
        %4051 = vmatprep.subr.bf16.mxu0 0
        %4052 = vmatpush1.bf16.msra.mxu0 0
        %4053 = vmatprep.subr.bf16.mxu0 0
        %4054 = vmatpush1.bf16.msra.mxu0 0
        %4055 = vmatprep.subr.bf16.mxu0 0
        %4056 = vmatpush1.bf16.msra.mxu0 0
        %4057 = vmatprep.subr.bf16.mxu0 0
        %4058 = vmatpush1.bf16.msra.mxu0 0
        %4059 = vmatprep.subr.bf16.mxu0 0
        %4060 = vmatpush1.bf16.msra.mxu0 0
        %4061 = vmatprep.subr.bf16.mxu0 0
        %4062 = vmatpush1.bf16.msra.mxu0 0
        %4063 = vmatprep.subr.bf16.mxu0 0
        %4064 = vmatpush1.bf16.msra.mxu0 0
        %4065 = vmatprep.subr.bf16.mxu0 0
        %4066 = vmatpush1.bf16.msra.mxu0 0
        %4067 = vmatprep.subr.bf16.mxu0 0
        %4068 = vmatpush1.bf16.msra.mxu0 0
        %4069 = vmatprep.subr.bf16.mxu0 0
        %4070 = vmatpush1.bf16.msra.mxu0 0
        %4071 = vmatprep.subr.bf16.mxu0 0
        %4072 = vmatpush1.bf16.msra.mxu0 0
        %4073 = vmatprep.subr.bf16.mxu0 0
        %4074 = vmatpush1.bf16.msra.mxu0 0
        %4075 = vmatprep.mubr.bf16.mxu0 0
        %4076 = vmatmul.mubr.bf16.gmra.mrb[0].mxu0 %v4041
        %v4077 = vpop.f32.mrb[0].mxu0
        %v4078 = vadd.f32 %v3302, %v4077
        %v4079 = vpop.f32.mrb[0].mxu0
        %v4080 = vpop.f32.mrb[0].mxu0
        %v4081 = vpop.f32.mrb[0].mxu0
        %4082 = vdwg.mxu0
        %v4083 = vmax.f32 %v4078, 0.0
        %v4084 = vpack.c.bf16 %v4083, %v4083
        %v4093 = vunpack.c.l.b16 %v3303
        %v4094 = vunpack.c.l.b16 %v3304
        %v4095 = vunpack.c.l.b16 %v3305
        %v4096 = vunpack.c.l.b16 %v3306
        %v4097 = vunpack.c.l.b16 %v3307
        %v4098 = vunpack.c.l.b16 %v3308
        %v4099 = vunpack.c.l.b16 %v3309
        %v4100 = vunpack.c.l.b16 %v3310
        %v4101 = vpack.c.b16 %v4094, %v4093
        %v4102 = vpack.c.b16 %v4096, %v4095
        %v4103 = vpack.c.b16 %v4098, %v4097
        %v4104 = vpack.c.b16 %v4100, %v4099
        %v4110 = vsel %vm2294, %v4084, 0
        %4112 = vmatprep.subr.bf16.mxu0 0
        %4113 = vmatpush1.bf16.msra.mxu0 %v4101
        %4114 = vmatprep.subr.bf16.mxu0 0
        %4115 = vmatpush1.bf16.msra.mxu0 %v4102
        %4116 = vmatprep.subr.bf16.mxu0 0
        %4117 = vmatpush1.bf16.msra.mxu0 %v4103
        %4118 = vmatprep.subr.bf16.mxu0 0
        %4119 = vmatpush1.bf16.msra.mxu0 %v4104
        %4120 = vmatprep.subr.bf16.mxu0 0
        %4121 = vmatpush1.bf16.msra.mxu0 0
        %4122 = vmatprep.subr.bf16.mxu0 0
        %4123 = vmatpush1.bf16.msra.mxu0 0
        %4124 = vmatprep.subr.bf16.mxu0 0
        %4125 = vmatpush1.bf16.msra.mxu0 0
        %4126 = vmatprep.subr.bf16.mxu0 0
        %4127 = vmatpush1.bf16.msra.mxu0 0
        %4128 = vmatprep.subr.bf16.mxu0 0
        %4129 = vmatpush1.bf16.msra.mxu0 0
        %4130 = vmatprep.subr.bf16.mxu0 0
        %4131 = vmatpush1.bf16.msra.mxu0 0
        %4132 = vmatprep.subr.bf16.mxu0 0
        %4133 = vmatpush1.bf16.msra.mxu0 0
        %4134 = vmatprep.subr.bf16.mxu0 0
        %4135 = vmatpush1.bf16.msra.mxu0 0
        %4136 = vmatprep.subr.bf16.mxu0 0
        %4137 = vmatpush1.bf16.msra.mxu0 0
        %4138 = vmatprep.subr.bf16.mxu0 0
        %4139 = vmatpush1.bf16.msra.mxu0 0
        %4140 = vmatprep.subr.bf16.mxu0 0
        %4141 = vmatpush1.bf16.msra.mxu0 0
        %4142 = vmatprep.subr.bf16.mxu0 0
        %4143 = vmatpush1.bf16.msra.mxu0 0
        %4144 = vmatprep.mubr.bf16.mxu0 0
        %4145 = vmatmul.mubr.bf16.gmra.mrb[0].mxu0 %v4110
        %v4146 = vpop.f32.mrb[0].mxu0
        %v4147 = vadd.f32 %v3311, %v4146
        %v4148 = vpop.f32.mrb[0].mxu0
        %v4149 = vpop.f32.mrb[0].mxu0
        %v4150 = vpop.f32.mrb[0].mxu0
        %4151 = vdwg.mxu0
        %v4152 = vadd.f32 %v4026, %v4147
        %v4153 = vsel %vm4011, %v4152, 0.0
        %4154 = vadd.xlane.f32.xlu0 %v4153
        %v4155 = vpop.xlane.xlu0 %4154
        %v4156 = vmul.f32 %v4155, %v2175
        %v4157 = vsub.f32 %v4152, %v4156
        %v4158 = vmul.f32 %v4157, %v4157
        %v4159 = vsel %vm4011, %v4158, 0.0
        %4160 = vadd.xlane.f32.xlu0 %v4159
        %v4161 = vpop.xlane.xlu0 %4160
        %v4162 = vmul.f32 %v4161, %v2175
        %v4163 = vadd.f32 %v4162, 1e-05
        %v4164 = vrsqrt.pop %v4163
        %v4165 = vmul.f32 %v4157, %v4164
        %v4166 = vmul.f32 %v4165, %v3314
        %v4167 = vadd.f32 %v4166, %v3315
        %4168 = vst.msk [vmem:[%s1368] sm:$0x1] %vm4011, %v4167
        %s4169 = sand.u32 %s977, 1
        %s4170 = scalar_lea.sflag [#allocation4], %s4169
        %s4171 = sand.u32 %s977, 1
        %s4172 = scalar_lea.vmem [#allocation20], %s4171
        // Predicated region
        $region229: #{tpu_custom_call.1} parent=183 // pred_check
          %p4173 = pneg %p987
        $region230: #{tpu_custom_call.1} parent=183 // pred_check_branch
          %4175 = sbr.rel (%p4173) target = $region232
        $region231: #{tpu_custom_call.1} parent=183 // pred_region
          %s4177 = ssub.s32 16, 16
          %4178 = vsyncadd %s4170, %s4177
          %s4179 = smul.addr %s103, 16
          %s4180 = scalar_lea.hbm %s83, %s4179
          %s4182 = sshll.u32 %s4172, 4
          %s4183 = int_to_ptr.vmem [resolvable:$true] %s4182
          %4185 = dma.vmem_to_hbm [thread:$0]  %s4183, 16, %s4180, %s4170
        $region232: #{tpu_custom_call.1} parent=183 // pred_fallthru
          _
      $region184: #{tpu_custom_call.1} parent=5 // pred_fallthru
        _
      %p4186 = scmp.le.s32.totalorder 2, %s98
      // Predicated region
      $region233: #{tpu_custom_call.1} parent=5 // pred_check
        %p4187 = pneg %p4186
      $region234: #{tpu_custom_call.1} parent=5 // pred_check_branch
        %4189 = sbr.rel (%p4187) target = $region236
      $region235: #{tpu_custom_call.1} parent=5 // pred_region
        %s4190 = ssub.s32 %s98, 2
        // Predicated region
        $region237: #{tpu_custom_call.1} parent=235 // pred_check
          %p4191 = pneg %p993
        $region238: #{tpu_custom_call.1} parent=235 // pred_check_branch
          %4193 = sbr.rel (%p4191) target = $region240
        $region239: #{tpu_custom_call.1} parent=235 // pred_region
          %s4194 = sand.u32 %s978, 1
          %s4195 = scalar_lea.sflag [#allocation4], %s4194
          %s4196 = sand.u32 %s978, 1
          %s4197 = scalar_lea.vmem [#allocation20], %s4196
          %4198 = dma.done %s4195, 16
        $region240: #{tpu_custom_call.1} parent=235 // pred_fallthru
          _
      $region236: #{tpu_custom_call.1} parent=5 // pred_fallthru
        _
    $region6: #{tpu_custom_call.1} parent=1 // loop_footer
      %s102 = sadd.s32 1, %s98
    $region7: #{tpu_custom_call.1} parent=1 // loop_footer_branch
      %97 = sbr.rel target = $region3
    $region8: #{tpu_custom_call.1} parent=1 // loop_exit
      _
    %4199 = vsyncpa [#allocation3], 1
    %s4200 = scalar_lea.sflag [#allocation3], 1
    %4201 = vsyncpa %s4200, 1
    %4202 = vsyncpa [#allocation6], 1
    %4203 = vsyncpa [#allocation9], 1
    %4204 = vsyncpa [#allocation12], 1
    %4205 = vsyncpa [#allocation15], 1
    %4206 = vsyncpa [#allocation18], 1
    %4207 = vsyncpa [#allocation4], 1
    %s4208 = scalar_lea.sflag [#allocation4], 1
    %4209 = vsyncpa %s4208, 1

</llo_original>
